<compile_context>
chip_gen: v7x
topology: tpu7x:2x2x1
jax: 0.10.0
libtpu: 0.0.40
codegen_flags: <defaults>
</compile_context>

<pallas_src>
import functools

import jax
import jax.numpy as jnp
import numpy as np
from jax.experimental import pallas as pl
from jax.experimental.pallas import tpu as pltpu

NUM_EMBEDDINGS = 512   # codebook slices in the reference go up to index 511
EMBEDDING_DIM = 32

# (lo, hi) codebook ranges per atom-type group, exactly as in the PyTorch code
# (torch slicing `a:b` is half-open -> codes lo..hi-1 are eligible).
_RANGE_C = (0, 377)      # atom_type == 5
_RANGE_N = (378, 433)    # atom_type == 6
_RANGE_O = (434, 488)    # atom_type == 7
_RANGE_X = (489, 511)    # everything else


def _round_up(v, m):
    return (v + m - 1) // m * m


def _pick_tile_n(n, requested):
    t = min(_round_up(max(int(requested), 8), 8), _round_up(n, 8))
    num_blocks = -(-n // t)
    # v7x megacore sizing rule: make sure the "parallel" grid axis has >= 2
    # blocks so both TensorCores get work (no-op on single-TC v5e/v6e).
    if num_blocks < 2 and n > 8:
        t = _round_up(-(-n // 2), 8)
        num_blocks = -(-n // t)
    return t, num_blocks


def _vq_kernel(rng_ref, e_ref, w_ref, wsqh_ref, q_ref, loss_ref,
               *, n_total, tile_n):
    e = e_ref[...]                                   # (T, D) f32
    w = w_ref[...]                                   # (K, D) f32, resident
    t, d = e.shape
    k = w.shape[0]

    # Range-restricted nearest-code search.  Per row,
    #   argmin_k ||e - w_k||^2 == argmin_k (0.5*||w_k||^2 - e.w_k)
    # (||e||^2 is a per-row constant; the -2 scale is folded into the 0.5*
    # bias), so one MXU matmul + one (T, K) subtract gives the comparison key.
    cross = jax.lax.dot_general(
        e, w, (((1,), (1,)), ((), ())),
        preferred_element_type=jnp.float32)                            # (T, K)
    dist = wsqh_ref[...] - cross                                       # (T, K)

    ranges = rng_ref[...]                        # (T, 1) int32, hi<<16 | lo
    lo = ranges & 0xFFFF
    hi = ranges >> 16
    iota_k = jax.lax.broadcasted_iota(jnp.int32, (t, k), 1)            # (T, K)
    allowed = (iota_k >= lo) & (iota_k < hi)
    masked = jnp.where(allowed, dist, jnp.inf)

    # Single-lane-reduction argmin: onehot = (masked == rowmin).  Full f32
    # compare (no packed-key truncation).  On an exact f32 tie between two
    # *distinct* allowed codes onehot has multiple hits; the MXU hit-count
    # below averages them (identical to torch when the tied codebook rows are
    # duplicates, which is the only realistic tie source).
    min_d = jnp.min(masked, axis=1, keepdims=True)                     # (T, 1)
    onehot = (masked == min_d).astype(jnp.float32)                     # (T, K)

    # quantize(): embedding gather + hit count, both on the (otherwise idle)
    # MXU; division by count==1.0 is exact for the non-tied common case.
    gathered = jnp.dot(onehot, w, preferred_element_type=jnp.float32)  # (T, D)
    count = jnp.dot(onehot, jnp.ones((k, 1), jnp.float32),
                    preferred_element_type=jnp.float32)                # (T, 1)
    quantized = gathered / count
    # NOTE: q last dim (32) < 128 -> lane-masked stores; second-order on
    # v6e/v7x (2 store slots).  TODO(synk): on v5e, measure a lane-dense
    # (N*D/128, 128) output layout against these masked stores.
    q_ref[...] = quantized.astype(q_ref.dtype)

    # Per-block SSE partial.  Ragged-edge invariant: rows >= n_total of the
    # last tile contain unspecified data; their quantized value may be
    # garbage/NaN but (a) out-of-bounds rows of q_ref are never written back
    # and (b) they are masked out of the SSE here.  Do not reuse onehot /
    # quantized for those rows elsewhere without re-masking.
    row = (pl.program_id(0) * tile_n
           + jax.lax.broadcasted_iota(jnp.int32, (t, 1), 0))           # (T, 1)
    diff = quantized - e
    sse_rows = jnp.where(row < n_total,
                         jnp.sum(diff * diff, axis=1, keepdims=True),
                         0.0)                                          # (T, 1)
    loss_ref[...] = jnp.sum(sse_rows, axis=0, keepdims=True)[None]     # (1,1,1)


def vector_quantizer_forward(x, e, codebook, commitment_cost, *, tile_n=256):
    """Pallas forward pass of VectorQuantizer. Returns (quantized, loss)."""
    n, d = e.shape
    k = codebook.shape[0]
    e = e.astype(jnp.float32)
    codebook = codebook.astype(jnp.float32)

    # Per-row allowed codebook range from the atom type, packed into one int32
    # per row (hi<<16 | lo) so only a single narrow column is DMA'd per step.
    atom_type = x[:, 0:1].astype(jnp.int32)
    is_c = atom_type == 5
    is_n = atom_type == 6
    is_o = atom_type == 7
    lo = jnp.where(is_c, _RANGE_C[0],
         jnp.where(is_n, _RANGE_N[0],
         jnp.where(is_o, _RANGE_O[0], _RANGE_X[0]))).astype(jnp.int32)
    hi = jnp.where(is_c, _RANGE_C[1],
         jnp.where(is_n, _RANGE_N[1],
         jnp.where(is_o, _RANGE_O[1], _RANGE_X[1]))).astype(jnp.int32)
    ranges = (hi << 16) | lo                                            # (N, 1)

    # Precompute 0.5*||W||^2 once in XLA; the -2 scale of the classic distance
    # is folded into this bias so no scaled codebook copy is needed.
    w_sq_half = 0.5 * jnp.sum(codebook * codebook, axis=1)[None, :]     # (1, K)

    tile_n, num_blocks = _pick_tile_n(n, tile_n)

    kernel = functools.partial(_vq_kernel, n_total=n, tile_n=tile_n)

    quantized, loss_parts = pl.pallas_call(
        kernel,
        grid=(num_blocks,),
        in_specs=[
            pl.BlockSpec((tile_n, 1), lambda i: (i, 0)),   # packed lo/hi
            pl.BlockSpec((tile_n, d), lambda i: (i, 0)),   # e
            pl.BlockSpec((k, d), lambda i: (0, 0)),        # codebook (resident)
            pl.BlockSpec((1, k), lambda i: (0, 0)),        # 0.5*||W||^2 (resident)
        ],
        out_specs=(
            pl.BlockSpec((tile_n, d), lambda i: (i, 0)),   # quantized
            pl.BlockSpec((1, 1, 1), lambda i: (i, 0, 0)),  # per-block SSE
        ),
        out_shape=(
            jax.ShapeDtypeStruct((n, d), jnp.float32),
            jax.ShapeDtypeStruct((num_blocks, 1, 1), jnp.float32),
        ),
        compiler_params=pltpu.CompilerParams(
            dimension_semantics=("parallel",),   # megacore sharding on v7x
        ),
    )(ranges, e, codebook, w_sq_half)

    # loss = mse(quantized, sg[e]) + commitment_cost * mse(e, sg[quantized]);
    # the two terms are numerically identical in the forward pass.
    # TODO(synk): for training, wrap in a custom_vjp that reconstructs the two
    # stop-gradient-separated MSE terms (their gradients hit different params).
    mse = jnp.sum(loss_parts) / float(n * d)
    loss = (1.0 + commitment_cost) * mse

    # Straight-through estimator: quantized = e + (quantized - e).detach()
    quantized_st = e + jax.lax.stop_gradient(quantized - e)
    return quantized_st, loss


def _reference_forward(x, e, codebook, commitment_cost):
    """Pure-JAX reference mirroring the PyTorch module, for verification."""
    atom_type = x[:, 0]
    lo = jnp.where(atom_type == 5, _RANGE_C[0],
         jnp.where(atom_type == 6, _RANGE_N[0],
         jnp.where(atom_type == 7, _RANGE_O[0], _RANGE_X[0])))
    hi = jnp.where(atom_type == 5, _RANGE_C[1],
         jnp.where(atom_type == 6, _RANGE_N[1],
         jnp.where(atom_type == 7, _RANGE_O[1], _RANGE_X[1])))
    dist = (jnp.sum(e ** 2, axis=1, keepdims=True)
            + jnp.sum(codebook ** 2, axis=1)[None, :]
            - 2.0 * e @ codebook.T)
    ks = jnp.arange(codebook.shape[0])[None, :]
    masked = jnp.where((ks >= lo[:, None]) & (ks < hi[:, None]), dist, jnp.inf)
    idx = jnp.argmin(masked, axis=1)
    quantized = codebook[idx]
    mse = jnp.mean((quantized - e) ** 2)
    return quantized, (1.0 + commitment_cost) * mse


if __name__ == "__main__":
    key = jax.random.PRNGKey(0)
    k_e, k_w, k_t = jax.random.split(key, 3)

    # Small synthetic molecule batch: ragged vs tile_n=256 so the test
    # exercises two grid steps (both v7x TCs) + edge-row masking.
    n_nodes = 300
    commitment_cost = 0.25

    # x: (N, 2) int32 node features; column 0 = atom type (mix of 5/6/7/other).
    atom_types = jax.random.choice(
        k_t, jnp.array([5, 6, 7, 1, 8, 9], dtype=jnp.int32), (n_nodes,))
    other_feat = jnp.zeros((n_nodes,), dtype=jnp.int32)
    x = jnp.stack([atom_types, other_feat], axis=1)

    # e: (N, D) encoder outputs.
    e = jax.random.normal(k_e, (n_nodes, EMBEDDING_DIM), dtype=jnp.float32)

    # Deterministic codebook init (nn.Embedding default: N(0, 1)).
    codebook = jax.random.normal(k_w, (NUM_EMBEDDINGS, EMBEDDING_DIM),
                                 dtype=jnp.float32)

    quantized, loss = vector_quantizer_forward(
        x, e, codebook, commitment_cost)
    jax.block_until_ready((quantized, loss))

    q_ref, loss_ref = _reference_forward(x, e, codebook, commitment_cost)
    np.testing.assert_allclose(np.asarray(quantized), np.asarray(q_ref),
                               rtol=1e-5, atol=1e-5)
    np.testing.assert_allclose(np.asarray(loss), np.asarray(loss_ref),
                               rtol=1e-5, atol=1e-5)

    print("KERNEL_OK")
</pallas_src>

<mosaic_0001>
module attributes {stable_mosaic.version = 11 : i64} {
  func.func @_vq_kernel(%arg0: i32, %arg1: memref<256x1xi32, #tpu.memory_space<vmem>>, %arg2: memref<256x32xf32, #tpu.memory_space<vmem>>, %arg3: memref<512x32xf32, #tpu.memory_space<vmem>>, %arg4: memref<1x512xf32, #tpu.memory_space<vmem>>, %arg5: memref<256x32xf32, #tpu.memory_space<vmem>>, %arg6: memref<1x1x1xf32, #tpu.memory_space<vmem>>) attributes {dimension_semantics = [#tpu.dimension_semantics<parallel>], iteration_bounds = array<i64: 2>, scalar_prefetch = 0 : i64, scratch_operands = 0 : i64, tpu.core_type = #tpu.core_type<tc>, window_params = [{transform_indices = @transform_0, window_bounds = array<i64: 256, 1>}, {transform_indices = @transform_1, window_bounds = array<i64: 256, 32>}, {pipeline_mode = #tpu.pipeline_mode<synchronous>, transform_indices = @transform_2, window_bounds = array<i64: 512, 32>}, {pipeline_mode = #tpu.pipeline_mode<synchronous>, transform_indices = @transform_3, window_bounds = array<i64: 1, 512>}, {transform_indices = @transform_4, window_bounds = array<i64: 256, 32>}, {transform_indices = @transform_5, window_bounds = array<i64: 1, 1, 1>}]} {
    %c0 = arith.constant 0 : index
    %c0_0 = arith.constant 0 : index
    %0 = vector.load %arg2[%c0, %c0_0] : memref<256x32xf32, #tpu.memory_space<vmem>>, vector<256x32xf32>
    %c0_1 = arith.constant 0 : index
    %c0_2 = arith.constant 0 : index
    %1 = vector.load %arg3[%c0_1, %c0_2] : memref<512x32xf32, #tpu.memory_space<vmem>>, vector<512x32xf32>
    %cst = arith.constant dense<0.000000e+00> : vector<256x512xf32>
    %2 = tpu.matmul %0, %1, %cst {dimension_numbers = #tpu.dot_dimension_numbers<[1], [1], [0], [0], [0, 0, 1, 0], [], []>} : vector<256x32xf32>, vector<512x32xf32>, vector<256x512xf32> -> vector<256x512xf32>
    %c0_3 = arith.constant 0 : index
    %c0_4 = arith.constant 0 : index
    %3 = vector.load %arg4[%c0_3, %c0_4] : memref<1x512xf32, #tpu.memory_space<vmem>>, vector<1x512xf32>
    %4 = vector.broadcast %3 : vector<1x512xf32> to vector<256x512xf32>
    %5 = arith.subf %4, %2 : vector<256x512xf32>
    %c0_5 = arith.constant 0 : index
    %c0_6 = arith.constant 0 : index
    %6 = vector.load %arg1[%c0_5, %c0_6] : memref<256x1xi32, #tpu.memory_space<vmem>>, vector<256x1xi32>
    %c65535_i32 = arith.constant 65535 : i32
    %7 = vector.broadcast %c65535_i32 : i32 to vector<256x1xi32>
    %8 = arith.andi %6, %7 : vector<256x1xi32>
    %c16_i32 = arith.constant 16 : i32
    %9 = vector.broadcast %c16_i32 : i32 to vector<256x1xi32>
    %10 = arith.shrsi %6, %9 : vector<256x1xi32>
    %11 = tpu.iota {dimensions = array<i32: 1>} : vector<256x512xi32>
    %12 = vector.broadcast %8 : vector<256x1xi32> to vector<256x512xi32>
    %13 = arith.cmpi sge, %11, %12 : vector<256x512xi32>
    %14 = vector.broadcast %10 : vector<256x1xi32> to vector<256x512xi32>
    %15 = arith.cmpi slt, %11, %14 : vector<256x512xi32>
    %16 = arith.andi %13, %15 : vector<256x512xi1>
    %cst_7 = arith.constant 0x7F800000 : f32
    %17 = vector.broadcast %cst_7 : f32 to vector<256x512xf32>
    %18 = arith.select %16, %5, %17 : vector<256x512xi1>, vector<256x512xf32>
    %cst_8 = arith.constant dense<0x7F800000> : vector<256xf32>
    %19 = vector.multi_reduction <minimumf>, %18, %cst_8 [1] : vector<256x512xf32> to vector<256xf32>
    %20 = vector.shape_cast %19 : vector<256xf32> to vector<256x1xf32>
    %21 = vector.broadcast %20 : vector<256x1xf32> to vector<256x512xf32>
    %22 = arith.cmpf oeq, %18, %21 : vector<256x512xf32>
    %23 = arith.extui %22 : vector<256x512xi1> to vector<256x512xi32>
    %24 = arith.sitofp %23 : vector<256x512xi32> to vector<256x512xf32>
    %cst_9 = arith.constant dense<0.000000e+00> : vector<256x32xf32>
    %25 = tpu.matmul %24, %1, %cst_9 {dimension_numbers = #tpu.dot_dimension_numbers<[1], [0], [0], [1], [0, 0, 1, 1], [], []>} : vector<256x512xf32>, vector<512x32xf32>, vector<256x32xf32> -> vector<256x32xf32>
    %cst_10 = arith.constant 1.000000e+00 : f32
    %26 = vector.broadcast %cst_10 : f32 to vector<512x1xf32>
    %cst_11 = arith.constant dense<0.000000e+00> : vector<256x1xf32>
    %27 = tpu.matmul %24, %26, %cst_11 {dimension_numbers = #tpu.dot_dimension_numbers<[1], [0], [0], [1], [0, 0, 1, 1], [], []>} : vector<256x512xf32>, vector<512x1xf32>, vector<256x1xf32> -> vector<256x1xf32>
    %28 = vector.broadcast %27 : vector<256x1xf32> to vector<256x32xf32>
    %29 = arith.divf %25, %28 : vector<256x32xf32>
    %c0_12 = arith.constant 0 : index
    %c0_13 = arith.constant 0 : index
    %30 = vector.load %arg5[%c0_12, %c0_13] : memref<256x32xf32, #tpu.memory_space<vmem>>, vector<256x32xf32>
    tpu.vector_store %arg5[%c0_12, %c0_13], %29 {strides = array<i32>} : memref<256x32xf32, #tpu.memory_space<vmem>>, vector<256x32xf32>,
    %c256_i32 = arith.constant 256 : i32
    %31 = arith.muli %arg0, %c256_i32 : i32
    %32 = tpu.iota {dimensions = array<i32: 0>} : vector<256x1xi32>
    %33 = vector.broadcast %31 : i32 to vector<256x1xi32>
    %34 = arith.addi %33, %32 : vector<256x1xi32>
    %35 = arith.subf %29, %0 : vector<256x32xf32>
    %c300_i32 = arith.constant 300 : i32
    %36 = vector.broadcast %c300_i32 : i32 to vector<256x1xi32>
    %37 = arith.cmpi slt, %34, %36 : vector<256x1xi32>
    %38 = arith.mulf %35, %35 : vector<256x32xf32>
    %cst_14 = arith.constant dense<0.000000e+00> : vector<256xf32>
    %39 = vector.multi_reduction <add>, %38, %cst_14 [1] : vector<256x32xf32> to vector<256xf32>
    %40 = vector.shape_cast %39 : vector<256xf32> to vector<256x1xf32>
    %cst_15 = arith.constant 0.000000e+00 : f32
    %41 = vector.broadcast %cst_15 : f32 to vector<256x1xf32>
    %42 = arith.select %37, %40, %41 : vector<256x1xi1>, vector<256x1xf32>
    %cst_16 = arith.constant dense<0.000000e+00> : vector<1xf32>
    %43 = vector.multi_reduction <add>, %42, %cst_16 [0] : vector<256x1xf32> to vector<1xf32>
    %44 = vector.shape_cast %43 : vector<1xf32> to vector<1x1xf32>
    %45 = vector.shape_cast %44 : vector<1x1xf32> to vector<1x1x1xf32>
    %c0_17 = arith.constant 0 : index
    %c0_18 = arith.constant 0 : index
    %c0_19 = arith.constant 0 : index
    %46 = vector.load %arg6[%c0_17, %c0_18, %c0_19] : memref<1x1x1xf32, #tpu.memory_space<vmem>>, vector<1x1x1xf32>
    tpu.vector_store %arg6[%c0_17, %c0_18, %c0_19], %45 {strides = array<i32>} : memref<1x1x1xf32, #tpu.memory_space<vmem>>, vector<1x1x1xf32>,
    return
  }
  func.func @transform_0(%arg0: i32) -> (i32, i32) {
    %c0_i32 = arith.constant 0 : i32
    %c0_i32_0 = arith.constant 0 : i32
    return %arg0, %c0_i32 : i32, i32
  }
  func.func @transform_1(%arg0: i32) -> (i32, i32) {
    %c0_i32 = arith.constant 0 : i32
    %c0_i32_0 = arith.constant 0 : i32
    return %arg0, %c0_i32 : i32, i32
  }
  func.func @transform_2(%arg0: i32) -> (i32, i32) {
    %c0_i32 = arith.constant 0 : i32
    %c0_i32_0 = arith.constant 0 : i32
    %c0_i32_1 = arith.constant 0 : i32
    return %c0_i32, %c0_i32_0 : i32, i32
  }
  func.func @transform_3(%arg0: i32) -> (i32, i32) {
    %c0_i32 = arith.constant 0 : i32
    %c0_i32_0 = arith.constant 0 : i32
    %c0_i32_1 = arith.constant 0 : i32
    return %c0_i32, %c0_i32_0 : i32, i32
  }
  func.func @transform_4(%arg0: i32) -> (i32, i32) {
    %c0_i32 = arith.constant 0 : i32
    %c0_i32_0 = arith.constant 0 : i32
    return %arg0, %c0_i32 : i32, i32
  }
  func.func @transform_5(%arg0: i32) -> (i32, i32, i32) {
    %c0_i32 = arith.constant 0 : i32
    %c0_i32_0 = arith.constant 0 : i32
    %c0_i32_1 = arith.constant 0 : i32
    return %arg0, %c0_i32, %c0_i32_0 : i32, i32, i32
  }
}

</mosaic_0001>

<llo_original>
// kernel: tpu_custom_call.1
$region0: #{tpu_custom_call.1}
  #allocation0 [shape = 'u32[]', space=smem, size = 0x4, offset = 0x4, fixed_abs, tag = 'smem constant byte address 0x4 - core index']
  #allocation1 [shape = 'u32[144,128]{1,0:T(1,128)}', space=vmem, size = 0x12000, scoped, tag = 'internal scratch']
  %s0 = inlined_call_operand.vmem [shape: s32[300,1], index: 0, kind: input, shape index: {}]
  %s1 = inlined_call_operand.vmem [shape: f32[300,32], index: 1, kind: input, shape index: {}]
  %s2 = inlined_call_operand.vmem [shape: f32[512,32], index: 2, kind: input, shape index: {}]
  %s3 = inlined_call_operand.vmem [shape: f32[1,512], index: 3, kind: input, shape index: {}]
  %s4 = inlined_call_operand.vmem [shape: f32[300,32], index: 4, kind: output, shape index: {0}]
  %s5 = inlined_call_operand.vmem [shape: f32[2,1,1], index: 5, kind: output, shape index: {1}]
  %6 = xla_tuple %s4, %s5
  %s7 = sld [smem:[#allocation0]]
  $region105: #{tpu_custom_call.1} parent=0
    _
  %s9 = ssub.s32 1, %s7
  %s10 = scalar_select 0, %s9, %s7
  $region1: #{tpu_custom_call.1} parent=0
    #allocation2 [shape = 'u8[262144]{0}', space=vmem, size = 0x40000, scoped, tag = 'output window, operand 0']
    loop: start=0, step=1, limit=4
    $region2: #{tpu_custom_call.1} parent=1 // loop_pre_header
      _
    $region3: #{tpu_custom_call.1} parent=1 // loop_header
      %s12 = sphi 0, %s16
      %p13 = scmp.ge.s32.totalorder %s12, 4
      %s22 = sphi 0, %s24
      %s25 = sphi 0, %s22
      %s26 = sphi 0, %s25
      %s42 = sphi 0, %s26
      %s48 = sphi 0, %s50
      %s51 = sphi 0, %s48
      %s52 = sphi 0, %s51
      %s68 = sphi 0, %s52
      %s72 = sphi 0, %s72
      %s74 = sphi 0, %s72
      %s75 = sphi 0, %s74
      %s89 = sphi 0, %s75
      %s93 = sphi 0, %s93
      %s95 = sphi 0, %s93
      %s96 = sphi 0, %s95
      %s110 = sphi 0, %s96
      %s116 = sphi 0, %s118
      %s119 = sphi 0, %s116
      %s120 = sphi 0, %s119
      %s136 = sphi 0, %s120
      %s142 = sphi 0, %s144
      %s145 = sphi 0, %s142
      %s146 = sphi 0, %s145
      %s162 = sphi 0, %s146
    $region4: #{tpu_custom_call.1} parent=1 // loop_header_branch
      %15 = sbr.rel (%p13) target = $region8
    $region5: #{tpu_custom_call.1} parent=1 // loop_body
      %s17 = ssub.s32 %s12, 1
      %s18 = ssub.s32 %s12, 2
      %s19 = sadd.s32 %s12, 1
      %s20 = ssub.s32 %s12, %s19
      %p21 = scmp.eq.s32.totalorder %s20, 0
      %s23 = sadd.s32 %s22, 1
      %s24 = scalar_select %p21, %s22, %s23
      %p27 = pneg %p21
      %p28 = scmp.eq.s32.totalorder %s12, 1
      %p29 = por %p27, %p28
      %p30 = scmp.ne.s32.totalorder %s22, %s25
      %p31 = scmp.eq.s32.totalorder %s12, 0
      %p32 = por %p30, %p31
      %p33 = scmp.ne.s32.totalorder %s22, %s25
      %p34 = scmp.eq.s32.totalorder %s17, 1
      %p35 = por %p33, %p34
      %p36 = scmp.ne.s32.totalorder %s25, %s26
      %p37 = scmp.eq.s32.totalorder %s17, 0
      %p38 = por %p36, %p37
      %p39 = scmp.ne.s32.totalorder %s25, %s26
      %p40 = scmp.eq.s32.totalorder %s18, 1
      %p41 = por %p39, %p40
      %p43 = scmp.ne.s32.totalorder %s26, %s42
      %p44 = scmp.eq.s32.totalorder %s18, 0
      %p45 = por %p43, %p44
      %s46 = ssub.s32 %s12, %s19
      %p47 = scmp.eq.s32.totalorder %s46, 0
      %s49 = sadd.s32 %s48, 1
      %s50 = scalar_select %p47, %s48, %s49
      %p53 = pneg %p47
      %p54 = scmp.eq.s32.totalorder %s12, 1
      %p55 = por %p53, %p54
      %p56 = scmp.ne.s32.totalorder %s48, %s51
      %p57 = scmp.eq.s32.totalorder %s12, 0
      %p58 = por %p56, %p57
      %p59 = scmp.ne.s32.totalorder %s48, %s51
      %p60 = scmp.eq.s32.totalorder %s17, 1
      %p61 = por %p59, %p60
      %p62 = scmp.ne.s32.totalorder %s51, %s52
      %p63 = scmp.eq.s32.totalorder %s17, 0
      %p64 = por %p62, %p63
      %p65 = scmp.ne.s32.totalorder %s51, %s52
      %p66 = scmp.eq.s32.totalorder %s18, 1
      %p67 = por %p65, %p66
      %p69 = scmp.ne.s32.totalorder %s52, %s68
      %p70 = scmp.eq.s32.totalorder %s18, 0
      %p71 = por %p69, %p70
      %s73 = sadd.s32 %s72, 1
      %p76 = scmp.eq.s32.totalorder %s12, 1
      %p77 = scmp.ne.s32.totalorder %s72, %s74
      %p78 = scmp.eq.s32.totalorder %s12, 0
      %p79 = por %p77, %p78
      %p80 = scmp.ne.s32.totalorder %s72, %s74
      %p81 = scmp.eq.s32.totalorder %s17, 1
      %p82 = por %p80, %p81
      %p83 = scmp.ne.s32.totalorder %s74, %s75
      %p84 = scmp.eq.s32.totalorder %s17, 0
      %p85 = por %p83, %p84
      %p86 = scmp.ne.s32.totalorder %s74, %s75
      %p87 = scmp.eq.s32.totalorder %s18, 1
      %p88 = por %p86, %p87
      %p90 = scmp.ne.s32.totalorder %s75, %s89
      %p91 = scmp.eq.s32.totalorder %s18, 0
      %p92 = por %p90, %p91
      %s94 = sadd.s32 %s93, 1
      %p97 = scmp.eq.s32.totalorder %s12, 1
      %p98 = scmp.ne.s32.totalorder %s93, %s95
      %p99 = scmp.eq.s32.totalorder %s12, 0
      %p100 = por %p98, %p99
      %p101 = scmp.ne.s32.totalorder %s93, %s95
      %p102 = scmp.eq.s32.totalorder %s17, 1
      %p103 = por %p101, %p102
      %p104 = scmp.ne.s32.totalorder %s95, %s96
      %p105 = scmp.eq.s32.totalorder %s17, 0
      %p106 = por %p104, %p105
      %p107 = scmp.ne.s32.totalorder %s95, %s96
      %p108 = scmp.eq.s32.totalorder %s18, 1
      %p109 = por %p107, %p108
      %p111 = scmp.ne.s32.totalorder %s96, %s110
      %p112 = scmp.eq.s32.totalorder %s18, 0
      %p113 = por %p111, %p112
      %s114 = ssub.s32 %s12, %s19
      %p115 = scmp.eq.s32.totalorder %s114, 0
      %s117 = sadd.s32 %s116, 1
      %s118 = scalar_select %p115, %s116, %s117
      %p121 = pneg %p115
      %p122 = scmp.eq.s32.totalorder %s12, 1
      %p123 = por %p121, %p122
      %p124 = scmp.ne.s32.totalorder %s116, %s119
      %p125 = scmp.eq.s32.totalorder %s12, 0
      %p126 = por %p124, %p125
      %p127 = scmp.ne.s32.totalorder %s116, %s119
      %p128 = scmp.eq.s32.totalorder %s17, 1
      %p129 = por %p127, %p128
      %p130 = scmp.ne.s32.totalorder %s119, %s120
      %p131 = scmp.eq.s32.totalorder %s17, 0
      %p132 = por %p130, %p131
      %p133 = scmp.ne.s32.totalorder %s119, %s120
      %p134 = scmp.eq.s32.totalorder %s18, 1
      %p135 = por %p133, %p134
      %p137 = scmp.ne.s32.totalorder %s120, %s136
      %p138 = scmp.eq.s32.totalorder %s18, 0
      %p139 = por %p137, %p138
      %s140 = ssub.s32 %s12, %s19
      %p141 = scmp.eq.s32.totalorder %s140, 0
      %s143 = sadd.s32 %s142, 1
      %s144 = scalar_select %p141, %s142, %s143
      %p147 = pneg %p141
      %p148 = scmp.eq.s32.totalorder %s12, 1
      %p149 = por %p147, %p148
      %p150 = scmp.ne.s32.totalorder %s142, %s145
      %p151 = scmp.eq.s32.totalorder %s12, 0
      %p152 = por %p150, %p151
      %p153 = scmp.ne.s32.totalorder %s142, %s145
      %p154 = scmp.eq.s32.totalorder %s17, 1
      %p155 = por %p153, %p154
      %p156 = scmp.ne.s32.totalorder %s145, %s146
      %p157 = scmp.eq.s32.totalorder %s17, 0
      %p158 = por %p156, %p157
      %p159 = scmp.ne.s32.totalorder %s145, %s146
      %p160 = scmp.eq.s32.totalorder %s18, 1
      %p161 = por %p159, %p160
      %p163 = scmp.ne.s32.totalorder %s146, %s162
      %p164 = scmp.eq.s32.totalorder %s18, 0
      %p165 = por %p163, %p164
      %p166 = scmp.le.s32.totalorder 1, %s12
      %p167 = scmp.lt.s32.totalorder %s12, 3
      %p168 = pnand %p166, %p167
      %p169 = pneg %p168
      // Predicated region
      $region9: #{tpu_custom_call.1} parent=5 // pred_check
        _
      $region10: #{tpu_custom_call.1} parent=5 // pred_check_branch
        %171 = sbr.rel (%p168) target = $region12
      $region11: #{tpu_custom_call.1} parent=5 // pred_region
        %s172 = ssub.s32 %s12, 1
        // Predicated region
        $region13: #{tpu_custom_call.1} parent=11 // pred_check
          %p173 = pneg %p85
        $region14: #{tpu_custom_call.1} parent=11 // pred_check_branch
          %175 = sbr.rel (%p173) target = $region16
        $region15: #{tpu_custom_call.1} parent=11 // pred_region
          _
        $region16: #{tpu_custom_call.1} parent=11 // pred_fallthru
          _
        // Predicated region
        $region17: #{tpu_custom_call.1} parent=11 // pred_check
          %p176 = pneg %p106
        $region18: #{tpu_custom_call.1} parent=11 // pred_check_branch
          %178 = sbr.rel (%p176) target = $region20
        $region19: #{tpu_custom_call.1} parent=11 // pred_region
          _
        $region20: #{tpu_custom_call.1} parent=11 // pred_fallthru
          _
      $region12: #{tpu_custom_call.1} parent=5 // pred_fallthru
        _
      %p179 = scmp.lt.s32.totalorder %s12, 2
      // Predicated region
      $region21: #{tpu_custom_call.1} parent=5 // pred_check
        %p180 = pneg %p179
      $region22: #{tpu_custom_call.1} parent=5 // pred_check_branch
        %182 = sbr.rel (%p180) target = $region24
      $region23: #{tpu_custom_call.1} parent=5 // pred_region
        // Predicated region
        $region25: #{tpu_custom_call.1} parent=23 // pred_check
          %p183 = pneg %p32
        $region26: #{tpu_custom_call.1} parent=23 // pred_check_branch
          %185 = sbr.rel (%p183) target = $region28
        $region27: #{tpu_custom_call.1} parent=23 // pred_region
          %s186 = smul.u32 32, %s12
          %s187 = ssub.s32 38, %s186
          %p188 = scmp.lt.s32.totalorder %s187, 32
          %s189 = scalar_select %p188, %s187, 32
          %s190 = smul.u32 128, %s189
          %p191 = scmp.lt.s32.totalorder %s186, 37
          %s192 = scalar_select %p191, %s186, 37
          %s193 = smul.addr %s192, 8
          %s194 = scalar_lea.vmem %s0, %s193
          %s195 = smul.u32 32, %s12
          %s196 = ssub.s32 38, %s195
          %p197 = scmp.lt.s32.totalorder %s196, 32
          %s198 = scalar_select %p197, %s196, 32
          %s199 = smul.u32 128, %s198
        $region28: #{tpu_custom_call.1} parent=23 // pred_fallthru
          _
        // Predicated region
        $region29: #{tpu_custom_call.1} parent=23 // pred_check
          %p200 = pneg %p58
        $region30: #{tpu_custom_call.1} parent=23 // pred_check_branch
          %202 = sbr.rel (%p200) target = $region32
        $region31: #{tpu_custom_call.1} parent=23 // pred_region
          %s203 = smul.u32 32, %s12
          %s204 = ssub.s32 38, %s203
          %p205 = scmp.lt.s32.totalorder %s204, 32
          %s206 = scalar_select %p205, %s204, 32
          %s207 = smul.u32 128, %s206
          %p208 = scmp.lt.s32.totalorder %s203, 37
          %s209 = scalar_select %p208, %s203, 37
          %s210 = smul.addr %s209, 8
          %s211 = scalar_lea.vmem %s1, %s210
          %s212 = smul.u32 32, %s12
          %s213 = ssub.s32 38, %s212
          %p214 = scmp.lt.s32.totalorder %s213, 32
          %s215 = scalar_select %p214, %s213, 32
          %s216 = smul.u32 128, %s215
        $region32: #{tpu_custom_call.1} parent=23 // pred_fallthru
          _
      $region24: #{tpu_custom_call.1} parent=5 // pred_fallthru
        _
      %p217 = scmp.le.s32.totalorder 1, %s12
      %p218 = scmp.lt.s32.totalorder %s12, 3
      %p219 = pnand %p217, %p218
      %p220 = pneg %p219
      // Predicated region
      $region33: #{tpu_custom_call.1} parent=5 // pred_check
        _
      $region34: #{tpu_custom_call.1} parent=5 // pred_check_branch
        %222 = sbr.rel (%p219) target = $region36
      $region35: #{tpu_custom_call.1} parent=5 // pred_region
        %s223 = ssub.s32 %s12, 1
        %s224 = smul.u32 32, %s17
        %s225 = ssub.s32 38, %s224
        %p226 = scmp.lt.s32.totalorder %s225, 32
        %s227 = scalar_select %p226, %s225, 32
        %s228 = smul.u32 128, %s227
        %p229 = scmp.lt.s32.totalorder %s224, 37
        %s230 = scalar_select %p229, %s224, 37
        %s231 = smul.addr %s230, 8
        %s232 = scalar_lea.vmem %s0, %s231
        %p233 = pneg %p38
        %p234 = pneg %p35
        %s235 = smul.u32 32, %s17
        %s236 = ssub.s32 38, %s235
        %p237 = scmp.lt.s32.totalorder %s236, 32
        %s238 = scalar_select %p237, %s236, 32
        %s239 = smul.u32 128, %s238
        %p240 = scmp.lt.s32.totalorder %s235, 37
        %s241 = scalar_select %p240, %s235, 37
        %s242 = smul.addr %s241, 8
        %s243 = scalar_lea.vmem %s1, %s242
        %p244 = pneg %p64
        %p245 = pneg %p61
        %p246 = pneg %p85
        %p247 = pneg %p82
        %p248 = pneg %p106
        %p249 = pneg %p103
        %p250 = pneg %p132
        %p251 = pneg %p129
        %s252 = sand.u32 %s119, 1
        %s253 = sand.u32 %s119, 1
        %s254 = smul.addr %s253, 256
        %s255 = scalar_lea.vmem [#allocation2], %s254
        %p256 = pneg %p158
        %p257 = pneg %p155
        %p258 = scmp.lt.s32.totalorder %s17, 1
        %s259 = scalar_select %p258, %s17, 1
        %s260 = scalar_lea.vmem %s5, %s259
        %s261 = smul.u32 32, %s17
        %s262 = ssub.s32 38, %s261
        %p263 = scmp.lt.s32.totalorder %s262, 32
        %s264 = scalar_select %p263, %s262, 32
        %s265 = smul.u32 128, %s264
        %p266 = scmp.lt.s32.totalorder %s261, 37
        %s267 = scalar_select %p266, %s261, 37
        %s268 = smul.addr %s267, 8
        %s269 = scalar_lea.vmem %s0, %s268
        %s270 = smul.u32 32, %s17
        %s271 = ssub.s32 38, %s270
        %p272 = scmp.lt.s32.totalorder %s271, 32
        %s273 = scalar_select %p272, %s271, 32
        %s274 = smul.u32 128, %s273
        %s275 = smul.u32 32, %s17
        %s276 = ssub.s32 38, %s275
        %p277 = scmp.lt.s32.totalorder %s276, 32
        %s278 = scalar_select %p277, %s276, 32
        %s279 = smul.u32 128, %s278
        %p280 = scmp.lt.s32.totalorder %s275, 37
        %s281 = scalar_select %p280, %s275, 37
        %s282 = smul.addr %s281, 8
        %s283 = scalar_lea.vmem %s1, %s282
        %s284 = smul.u32 32, %s17
        %s285 = ssub.s32 38, %s284
        %p286 = scmp.lt.s32.totalorder %s285, 32
        %s287 = scalar_select %p286, %s285, 32
        %s288 = smul.u32 128, %s287
        %s289 = smul.u32 32, %s17
        %s290 = ssub.s32 38, %s289
        %p291 = scmp.lt.s32.totalorder %s290, 32
        %s292 = scalar_select %p291, %s290, 32
        %s293 = smul.u32 128, %s292
        %p294 = scmp.lt.s32.totalorder %s17, 1
        %s295 = scalar_select %p294, %s17, 1
        %s296 = scalar_lea.vmem %s5, %s295
        %v297 = vld [vmem:[%s283] sm:$0xff]
        %v298 = vld [vmem:[%s283 + $0x8] sm:$0xff]
        %v299 = vld [vmem:[%s283 + $0x10] sm:$0xff]
        %v300 = vld [vmem:[%s283 + $0x18] sm:$0xff]
        %v301 = vld [vmem:[%s283 + $0x20] sm:$0xff]
        %v302 = vld [vmem:[%s283 + $0x28] sm:$0xff]
        %v303 = vld [vmem:[%s283 + $0x30] sm:$0xff]
        %v304 = vld [vmem:[%s283 + $0x38] sm:$0xff]
        %v305 = vld [vmem:[%s283 + $0x40] sm:$0xff]
        %v306 = vld [vmem:[%s283 + $0x48] sm:$0xff]
        %v307 = vld [vmem:[%s283 + $0x50] sm:$0xff]
        %v308 = vld [vmem:[%s283 + $0x58] sm:$0xff]
        %v309 = vld [vmem:[%s283 + $0x60] sm:$0xff]
        %v310 = vld [vmem:[%s283 + $0x68] sm:$0xff]
        %v311 = vld [vmem:[%s283 + $0x70] sm:$0xff]
        %v312 = vld [vmem:[%s283 + $0x78] sm:$0xff]
        %v313 = vld [vmem:[%s283 + $0x80] sm:$0xff]
        %v314 = vld [vmem:[%s283 + $0x88] sm:$0xff]
        %v315 = vld [vmem:[%s283 + $0x90] sm:$0xff]
        %v316 = vld [vmem:[%s283 + $0x98] sm:$0xff]
        %v317 = vld [vmem:[%s283 + $0xa0] sm:$0xff]
        %v318 = vld [vmem:[%s283 + $0xa8] sm:$0xff]
        %v319 = vld [vmem:[%s283 + $0xb0] sm:$0xff]
        %v320 = vld [vmem:[%s283 + $0xb8] sm:$0xff]
        %v321 = vld [vmem:[%s283 + $0xc0] sm:$0xff]
        %v322 = vld [vmem:[%s283 + $0xc8] sm:$0xff]
        %v323 = vld [vmem:[%s283 + $0xd0] sm:$0xff]
        %v324 = vld [vmem:[%s283 + $0xd8] sm:$0xff]
        %v325 = vld [vmem:[%s283 + $0xe0] sm:$0xff]
        %v326 = vld [vmem:[%s283 + $0xe8] sm:$0xff]
        %v327 = vld [vmem:[%s283 + $0xf0] sm:$0xff]
        %v328 = vld [vmem:[%s283 + $0xf8] sm:$0xff]
        %v329 = vld [vmem:[%s2] sm:$0xff]
        %v330 = vld [vmem:[%s2 + $0x8] sm:$0xff]
        %v331 = vld [vmem:[%s2 + $0x10] sm:$0xff]
        %v332 = vld [vmem:[%s2 + $0x18] sm:$0xff]
        %v333 = vld [vmem:[%s2 + $0x20] sm:$0xff]
        %v334 = vld [vmem:[%s2 + $0x28] sm:$0xff]
        %v335 = vld [vmem:[%s2 + $0x30] sm:$0xff]
        %v336 = vld [vmem:[%s2 + $0x38] sm:$0xff]
        %v337 = vld [vmem:[%s2 + $0x40] sm:$0xff]
        %v338 = vld [vmem:[%s2 + $0x48] sm:$0xff]
        %v339 = vld [vmem:[%s2 + $0x50] sm:$0xff]
        %v340 = vld [vmem:[%s2 + $0x58] sm:$0xff]
        %v341 = vld [vmem:[%s2 + $0x60] sm:$0xff]
        %v342 = vld [vmem:[%s2 + $0x68] sm:$0xff]
        %v343 = vld [vmem:[%s2 + $0x70] sm:$0xff]
        %v344 = vld [vmem:[%s2 + $0x78] sm:$0xff]
        %v345 = vld [vmem:[%s2 + $0x80] sm:$0xff]
        %v346 = vld [vmem:[%s2 + $0x88] sm:$0xff]
        %v347 = vld [vmem:[%s2 + $0x90] sm:$0xff]
        %v348 = vld [vmem:[%s2 + $0x98] sm:$0xff]
        %v349 = vld [vmem:[%s2 + $0xa0] sm:$0xff]
        %v350 = vld [vmem:[%s2 + $0xa8] sm:$0xff]
        %v351 = vld [vmem:[%s2 + $0xb0] sm:$0xff]
        %v352 = vld [vmem:[%s2 + $0xb8] sm:$0xff]
        %v353 = vld [vmem:[%s2 + $0xc0] sm:$0xff]
        %v354 = vld [vmem:[%s2 + $0xc8] sm:$0xff]
        %v355 = vld [vmem:[%s2 + $0xd0] sm:$0xff]
        %v356 = vld [vmem:[%s2 + $0xd8] sm:$0xff]
        %v357 = vld [vmem:[%s2 + $0xe0] sm:$0xff]
        %v358 = vld [vmem:[%s2 + $0xe8] sm:$0xff]
        %v359 = vld [vmem:[%s2 + $0xf0] sm:$0xff]
        %v360 = vld [vmem:[%s2 + $0xf8] sm:$0xff]
        %v361 = vld [vmem:[%s2 + $0x100] sm:$0xff]
        %v362 = vld [vmem:[%s2 + $0x108] sm:$0xff]
        %v363 = vld [vmem:[%s2 + $0x110] sm:$0xff]
        %v364 = vld [vmem:[%s2 + $0x118] sm:$0xff]
        %v365 = vld [vmem:[%s2 + $0x120] sm:$0xff]
        %v366 = vld [vmem:[%s2 + $0x128] sm:$0xff]
        %v367 = vld [vmem:[%s2 + $0x130] sm:$0xff]
        %v368 = vld [vmem:[%s2 + $0x138] sm:$0xff]
        %v369 = vld [vmem:[%s2 + $0x140] sm:$0xff]
        %v370 = vld [vmem:[%s2 + $0x148] sm:$0xff]
        %v371 = vld [vmem:[%s2 + $0x150] sm:$0xff]
        %v372 = vld [vmem:[%s2 + $0x158] sm:$0xff]
        %v373 = vld [vmem:[%s2 + $0x160] sm:$0xff]
        %v374 = vld [vmem:[%s2 + $0x168] sm:$0xff]
        %v375 = vld [vmem:[%s2 + $0x170] sm:$0xff]
        %v376 = vld [vmem:[%s2 + $0x178] sm:$0xff]
        %v377 = vld [vmem:[%s2 + $0x180] sm:$0xff]
        %v378 = vld [vmem:[%s2 + $0x188] sm:$0xff]
        %v379 = vld [vmem:[%s2 + $0x190] sm:$0xff]
        %v380 = vld [vmem:[%s2 + $0x198] sm:$0xff]
        %v381 = vld [vmem:[%s2 + $0x1a0] sm:$0xff]
        %v382 = vld [vmem:[%s2 + $0x1a8] sm:$0xff]
        %v383 = vld [vmem:[%s2 + $0x1b0] sm:$0xff]
        %v384 = vld [vmem:[%s2 + $0x1b8] sm:$0xff]
        %v385 = vld [vmem:[%s2 + $0x1c0] sm:$0xff]
        %v386 = vld [vmem:[%s2 + $0x1c8] sm:$0xff]
        %v387 = vld [vmem:[%s2 + $0x1d0] sm:$0xff]
        %v388 = vld [vmem:[%s2 + $0x1d8] sm:$0xff]
        %v389 = vld [vmem:[%s2 + $0x1e0] sm:$0xff]
        %v390 = vld [vmem:[%s2 + $0x1e8] sm:$0xff]
        %v391 = vld [vmem:[%s2 + $0x1f0] sm:$0xff]
        %v392 = vld [vmem:[%s2 + $0x1f8] sm:$0xff]
        %vm393 = vcmask 261120
        %v395 = vsel %vm393, %v297, 0
        %v398 = vsel %vm393, %v298, 0
        %v401 = vsel %vm393, %v299, 0
        %v404 = vsel %vm393, %v300, 0
        %v407 = vsel %vm393, %v301, 0
        %v410 = vsel %vm393, %v302, 0
        %v413 = vsel %vm393, %v303, 0
        %v416 = vsel %vm393, %v304, 0
        %v419 = vsel %vm393, %v305, 0
        %v422 = vsel %vm393, %v306, 0
        %v425 = vsel %vm393, %v307, 0
        %v428 = vsel %vm393, %v308, 0
        %v431 = vsel %vm393, %v309, 0
        %v434 = vsel %vm393, %v310, 0
        %v437 = vsel %vm393, %v311, 0
        %v440 = vsel %vm393, %v312, 0
        %v443 = vsel %vm393, %v313, 0
        %v446 = vsel %vm393, %v314, 0
        %v449 = vsel %vm393, %v315, 0
        %v452 = vsel %vm393, %v316, 0
        %v455 = vsel %vm393, %v317, 0
        %v458 = vsel %vm393, %v318, 0
        %v461 = vsel %vm393, %v319, 0
        %v464 = vsel %vm393, %v320, 0
        %v467 = vsel %vm393, %v321, 0
        %v470 = vsel %vm393, %v322, 0
        %v473 = vsel %vm393, %v323, 0
        %v476 = vsel %vm393, %v324, 0
        %v479 = vsel %vm393, %v325, 0
        %v482 = vsel %vm393, %v326, 0
        %v485 = vsel %vm393, %v327, 0
        %v488 = vsel %vm393, %v328, 0
        %v491 = vsel %vm393, %v329, 0
        %v494 = vsel %vm393, %v330, 0
        %v497 = vsel %vm393, %v331, 0
        %v500 = vsel %vm393, %v332, 0
        %v503 = vsel %vm393, %v333, 0
        %v506 = vsel %vm393, %v334, 0
        %v509 = vsel %vm393, %v335, 0
        %v512 = vsel %vm393, %v336, 0
        %v515 = vsel %vm393, %v337, 0
        %v518 = vsel %vm393, %v338, 0
        %v521 = vsel %vm393, %v339, 0
        %v524 = vsel %vm393, %v340, 0
        %v527 = vsel %vm393, %v341, 0
        %v530 = vsel %vm393, %v342, 0
        %v533 = vsel %vm393, %v343, 0
        %v536 = vsel %vm393, %v344, 0
        %v539 = vsel %vm393, %v345, 0
        %v542 = vsel %vm393, %v346, 0
        %v545 = vsel %vm393, %v347, 0
        %v548 = vsel %vm393, %v348, 0
        %v551 = vsel %vm393, %v349, 0
        %v554 = vsel %vm393, %v350, 0
        %v557 = vsel %vm393, %v351, 0
        %v560 = vsel %vm393, %v352, 0
        %v563 = vsel %vm393, %v353, 0
        %v566 = vsel %vm393, %v354, 0
        %v569 = vsel %vm393, %v355, 0
        %v572 = vsel %vm393, %v356, 0
        %v575 = vsel %vm393, %v357, 0
        %v578 = vsel %vm393, %v358, 0
        %v581 = vsel %vm393, %v359, 0
        %v584 = vsel %vm393, %v360, 0
        %v587 = vsel %vm393, %v361, 0
        %v590 = vsel %vm393, %v362, 0
        %v593 = vsel %vm393, %v363, 0
        %v596 = vsel %vm393, %v364, 0
        %v599 = vsel %vm393, %v365, 0
        %v602 = vsel %vm393, %v366, 0
        %v605 = vsel %vm393, %v367, 0
        %v608 = vsel %vm393, %v368, 0
        %v611 = vsel %vm393, %v369, 0
        %v614 = vsel %vm393, %v370, 0
        %v617 = vsel %vm393, %v371, 0
        %v620 = vsel %vm393, %v372, 0
        %v623 = vsel %vm393, %v373, 0
        %v626 = vsel %vm393, %v374, 0
        %v629 = vsel %vm393, %v375, 0
        %v632 = vsel %vm393, %v376, 0
        %v635 = vsel %vm393, %v377, 0
        %v638 = vsel %vm393, %v378, 0
        %v641 = vsel %vm393, %v379, 0
        %v644 = vsel %vm393, %v380, 0
        %v647 = vsel %vm393, %v381, 0
        %v650 = vsel %vm393, %v382, 0
        %v653 = vsel %vm393, %v383, 0
        %v656 = vsel %vm393, %v384, 0
        %v659 = vsel %vm393, %v385, 0
        %v662 = vsel %vm393, %v386, 0
        %v665 = vsel %vm393, %v387, 0
        %v668 = vsel %vm393, %v388, 0
        %v671 = vsel %vm393, %v389, 0
        %v674 = vsel %vm393, %v390, 0
        %v677 = vsel %vm393, %v391, 0
        %v680 = vsel %vm393, %v392, 0
        %682 = vmatprep.subr.mxu0 0.0
        %683 = vmatpush1.xpose.msra.mxu0 %v491
        %684 = vmatprep.subr.mxu0 0.0
        %685 = vmatpush1.xpose.msra.mxu0 %v494
        %686 = vmatprep.subr.mxu0 0.0
        %687 = vmatpush1.xpose.msra.mxu0 %v497
        %688 = vmatprep.subr.mxu0 0.0
        %689 = vmatpush1.xpose.msra.mxu0 %v500
        %690 = vmatprep.subr.mxu0 0.0
        %691 = vmatpush1.xpose.msra.mxu0 %v503
        %692 = vmatprep.subr.mxu0 0.0
        %693 = vmatpush1.xpose.msra.mxu0 %v506
        %694 = vmatprep.subr.mxu0 0.0
        %695 = vmatpush1.xpose.msra.mxu0 %v509
        %696 = vmatprep.subr.mxu0 0.0
        %697 = vmatpush1.xpose.msra.mxu0 %v512
        %698 = vmatprep.subr.mxu0 0.0
        %699 = vmatpush1.xpose.msra.mxu0 %v515
        %700 = vmatprep.subr.mxu0 0.0
        %701 = vmatpush1.xpose.msra.mxu0 %v518
        %702 = vmatprep.subr.mxu0 0.0
        %703 = vmatpush1.xpose.msra.mxu0 %v521
        %704 = vmatprep.subr.mxu0 0.0
        %705 = vmatpush1.xpose.msra.mxu0 %v524
        %706 = vmatprep.subr.mxu0 0.0
        %707 = vmatpush1.xpose.msra.mxu0 %v527
        %708 = vmatprep.subr.mxu0 0.0
        %709 = vmatpush1.xpose.msra.mxu0 %v530
        %710 = vmatprep.subr.mxu0 0.0
        %711 = vmatpush1.xpose.msra.mxu0 %v533
        %712 = vmatprep.subr.mxu0 0.0
        %713 = vmatpush1.xpose.msra.mxu0 %v536
        %714 = vmatprep.subr.mxu0 0.0
        %715 = vmatpush1.xpose.msra.mxu0 %v539
        %716 = vmatprep.subr.mxu0 0.0
        %717 = vmatpush1.xpose.msra.mxu0 %v542
        %718 = vmatprep.subr.mxu0 0.0
        %719 = vmatpush1.xpose.msra.mxu0 %v545
        %720 = vmatprep.subr.mxu0 0.0
        %721 = vmatpush1.xpose.msra.mxu0 %v548
        %722 = vmatprep.subr.mxu0 0.0
        %723 = vmatpush1.xpose.msra.mxu0 %v551
        %724 = vmatprep.subr.mxu0 0.0
        %725 = vmatpush1.xpose.msra.mxu0 %v554
        %726 = vmatprep.subr.mxu0 0.0
        %727 = vmatpush1.xpose.msra.mxu0 %v557
        %728 = vmatprep.subr.mxu0 0.0
        %729 = vmatpush1.xpose.msra.mxu0 %v560
        %730 = vmatprep.subr.mxu0 0.0
        %731 = vmatpush1.xpose.msra.mxu0 %v563
        %732 = vmatprep.subr.mxu0 0.0
        %733 = vmatpush1.xpose.msra.mxu0 %v566
        %734 = vmatprep.subr.mxu0 0.0
        %735 = vmatpush1.xpose.msra.mxu0 %v569
        %736 = vmatprep.subr.mxu0 0.0
        %737 = vmatpush1.xpose.msra.mxu0 %v572
        %738 = vmatprep.subr.mxu0 0.0
        %739 = vmatpush1.xpose.msra.mxu0 %v575
        %740 = vmatprep.subr.mxu0 0.0
        %741 = vmatpush1.xpose.msra.mxu0 %v578
        %742 = vmatprep.subr.mxu0 0.0
        %743 = vmatpush1.xpose.msra.mxu0 %v581
        %744 = vmatprep.subr.mxu0 0.0
        %745 = vmatpush1.xpose.msra.mxu0 %v584
        %746 = vmatprep.mubr.f32.mxu0 0.0
        %747 = vmatmul.mubr.f32.gmra.mrb[0].mxu0 %v395
        %v748 = vpop.f32.mrb[0].mxu0
        %v749 = vadd.f32 0.0, %v748
        %v750 = vpop.f32.mrb[0].mxu0
        %v751 = vadd.f32 0.0, %v750
        %752 = vmatprep.mubr.f32.mxu0 0.0
        %753 = vmatmul.mubr.f32.gmra.mrb[0].mxu0 %v398
        %v754 = vpop.f32.mrb[0].mxu0
        %v755 = vadd.f32 0.0, %v754
        %v756 = vpop.f32.mrb[0].mxu0
        %v757 = vadd.f32 0.0, %v756
        %758 = vmatprep.mubr.f32.mxu0 0.0
        %759 = vmatmul.mubr.f32.gmra.mrb[0].mxu0 %v401
        %v760 = vpop.f32.mrb[0].mxu0
        %v761 = vadd.f32 0.0, %v760
        %v762 = vpop.f32.mrb[0].mxu0
        %v763 = vadd.f32 0.0, %v762
        %764 = vmatprep.mubr.f32.mxu0 0.0
        %765 = vmatmul.mubr.f32.gmra.mrb[0].mxu0 %v404
        %v766 = vpop.f32.mrb[0].mxu0
        %v767 = vadd.f32 0.0, %v766
        %v768 = vpop.f32.mrb[0].mxu0
        %v769 = vadd.f32 0.0, %v768
        %770 = vmatprep.mubr.f32.mxu0 0.0
        %771 = vmatmul.mubr.f32.gmra.mrb[0].mxu0 %v407
        %v772 = vpop.f32.mrb[0].mxu0
        %v773 = vadd.f32 0.0, %v772
        %v774 = vpop.f32.mrb[0].mxu0
        %v775 = vadd.f32 0.0, %v774
        %776 = vmatprep.mubr.f32.mxu0 0.0
        %777 = vmatmul.mubr.f32.gmra.mrb[0].mxu0 %v410
        %v778 = vpop.f32.mrb[0].mxu0
        %v779 = vadd.f32 0.0, %v778
        %v780 = vpop.f32.mrb[0].mxu0
        %v781 = vadd.f32 0.0, %v780
        %782 = vmatprep.mubr.f32.mxu0 0.0
        %783 = vmatmul.mubr.f32.gmra.mrb[0].mxu0 %v413
        %v784 = vpop.f32.mrb[0].mxu0
        %v785 = vadd.f32 0.0, %v784
        %v786 = vpop.f32.mrb[0].mxu0
        %v787 = vadd.f32 0.0, %v786
        %788 = vmatprep.mubr.f32.mxu0 0.0
        %789 = vmatmul.mubr.f32.gmra.mrb[0].mxu0 %v416
        %v790 = vpop.f32.mrb[0].mxu0
        %v791 = vadd.f32 0.0, %v790
        %v792 = vpop.f32.mrb[0].mxu0
        %v793 = vadd.f32 0.0, %v792
        %794 = vmatprep.mubr.f32.mxu0 0.0
        %795 = vmatmul.mubr.f32.gmra.mrb[0].mxu0 %v419
        %v796 = vpop.f32.mrb[0].mxu0
        %v797 = vadd.f32 0.0, %v796
        %v798 = vpop.f32.mrb[0].mxu0
        %v799 = vadd.f32 0.0, %v798
        %800 = vmatprep.mubr.f32.mxu0 0.0
        %801 = vmatmul.mubr.f32.gmra.mrb[0].mxu0 %v422
        %v802 = vpop.f32.mrb[0].mxu0
        %v803 = vadd.f32 0.0, %v802
        %v804 = vpop.f32.mrb[0].mxu0
        %v805 = vadd.f32 0.0, %v804
        %806 = vmatprep.mubr.f32.mxu0 0.0
        %807 = vmatmul.mubr.f32.gmra.mrb[0].mxu0 %v425
        %v808 = vpop.f32.mrb[0].mxu0
        %v809 = vadd.f32 0.0, %v808
        %v810 = vpop.f32.mrb[0].mxu0
        %v811 = vadd.f32 0.0, %v810
        %812 = vmatprep.mubr.f32.mxu0 0.0
        %813 = vmatmul.mubr.f32.gmra.mrb[0].mxu0 %v428
        %v814 = vpop.f32.mrb[0].mxu0
        %v815 = vadd.f32 0.0, %v814
        %v816 = vpop.f32.mrb[0].mxu0
        %v817 = vadd.f32 0.0, %v816
        %818 = vmatprep.mubr.f32.mxu0 0.0
        %819 = vmatmul.mubr.f32.gmra.mrb[0].mxu0 %v431
        %v820 = vpop.f32.mrb[0].mxu0
        %v821 = vadd.f32 0.0, %v820
        %v822 = vpop.f32.mrb[0].mxu0
        %v823 = vadd.f32 0.0, %v822
        %824 = vmatprep.mubr.f32.mxu0 0.0
        %825 = vmatmul.mubr.f32.gmra.mrb[0].mxu0 %v434
        %v826 = vpop.f32.mrb[0].mxu0
        %v827 = vadd.f32 0.0, %v826
        %v828 = vpop.f32.mrb[0].mxu0
        %v829 = vadd.f32 0.0, %v828
        %830 = vmatprep.mubr.f32.mxu0 0.0
        %831 = vmatmul.mubr.f32.gmra.mrb[0].mxu0 %v437
        %v832 = vpop.f32.mrb[0].mxu0
        %v833 = vadd.f32 0.0, %v832
        %v834 = vpop.f32.mrb[0].mxu0
        %v835 = vadd.f32 0.0, %v834
        %836 = vmatprep.mubr.f32.mxu0 0.0
        %837 = vmatmul.mubr.f32.gmra.mrb[0].mxu0 %v440
        %v838 = vpop.f32.mrb[0].mxu0
        %v839 = vadd.f32 0.0, %v838
        %v840 = vpop.f32.mrb[0].mxu0
        %v841 = vadd.f32 0.0, %v840
        %842 = vmatprep.mubr.f32.mxu0 0.0
        %843 = vmatmul.mubr.f32.gmra.mrb[0].mxu0 %v443
        %v844 = vpop.f32.mrb[0].mxu0
        %v845 = vadd.f32 0.0, %v844
        %v846 = vpop.f32.mrb[0].mxu0
        %v847 = vadd.f32 0.0, %v846
        %848 = vmatprep.mubr.f32.mxu0 0.0
        %849 = vmatmul.mubr.f32.gmra.mrb[0].mxu0 %v446
        %v850 = vpop.f32.mrb[0].mxu0
        %v851 = vadd.f32 0.0, %v850
        %v852 = vpop.f32.mrb[0].mxu0
        %v853 = vadd.f32 0.0, %v852
        %854 = vmatprep.mubr.f32.mxu0 0.0
        %855 = vmatmul.mubr.f32.gmra.mrb[0].mxu0 %v449
        %v856 = vpop.f32.mrb[0].mxu0
        %v857 = vadd.f32 0.0, %v856
        %v858 = vpop.f32.mrb[0].mxu0
        %v859 = vadd.f32 0.0, %v858
        %860 = vmatprep.mubr.f32.mxu0 0.0
        %861 = vmatmul.mubr.f32.gmra.mrb[0].mxu0 %v452
        %v862 = vpop.f32.mrb[0].mxu0
        %v863 = vadd.f32 0.0, %v862
        %v864 = vpop.f32.mrb[0].mxu0
        %v865 = vadd.f32 0.0, %v864
        %866 = vmatprep.mubr.f32.mxu0 0.0
        %867 = vmatmul.mubr.f32.gmra.mrb[0].mxu0 %v455
        %v868 = vpop.f32.mrb[0].mxu0
        %v869 = vadd.f32 0.0, %v868
        %v870 = vpop.f32.mrb[0].mxu0
        %v871 = vadd.f32 0.0, %v870
        %872 = vmatprep.mubr.f32.mxu0 0.0
        %873 = vmatmul.mubr.f32.gmra.mrb[0].mxu0 %v458
        %v874 = vpop.f32.mrb[0].mxu0
        %v875 = vadd.f32 0.0, %v874
        %v876 = vpop.f32.mrb[0].mxu0
        %v877 = vadd.f32 0.0, %v876
        %878 = vmatprep.mubr.f32.mxu0 0.0
        %879 = vmatmul.mubr.f32.gmra.mrb[0].mxu0 %v461
        %v880 = vpop.f32.mrb[0].mxu0
        %v881 = vadd.f32 0.0, %v880
        %v882 = vpop.f32.mrb[0].mxu0
        %v883 = vadd.f32 0.0, %v882
        %884 = vmatprep.mubr.f32.mxu0 0.0
        %885 = vmatmul.mubr.f32.gmra.mrb[0].mxu0 %v464
        %v886 = vpop.f32.mrb[0].mxu0
        %v887 = vadd.f32 0.0, %v886
        %v888 = vpop.f32.mrb[0].mxu0
        %v889 = vadd.f32 0.0, %v888
        %890 = vmatprep.mubr.f32.mxu0 0.0
        %891 = vmatmul.mubr.f32.gmra.mrb[0].mxu0 %v467
        %v892 = vpop.f32.mrb[0].mxu0
        %v893 = vadd.f32 0.0, %v892
        %v894 = vpop.f32.mrb[0].mxu0
        %v895 = vadd.f32 0.0, %v894
        %896 = vmatprep.mubr.f32.mxu0 0.0
        %897 = vmatmul.mubr.f32.gmra.mrb[0].mxu0 %v470
        %v898 = vpop.f32.mrb[0].mxu0
        %v899 = vadd.f32 0.0, %v898
        %v900 = vpop.f32.mrb[0].mxu0
        %v901 = vadd.f32 0.0, %v900
        %902 = vmatprep.mubr.f32.mxu0 0.0
        %903 = vmatmul.mubr.f32.gmra.mrb[0].mxu0 %v473
        %v904 = vpop.f32.mrb[0].mxu0
        %v905 = vadd.f32 0.0, %v904
        %v906 = vpop.f32.mrb[0].mxu0
        %v907 = vadd.f32 0.0, %v906
        %908 = vmatprep.mubr.f32.mxu0 0.0
        %909 = vmatmul.mubr.f32.gmra.mrb[0].mxu0 %v476
        %v910 = vpop.f32.mrb[0].mxu0
        %v911 = vadd.f32 0.0, %v910
        %v912 = vpop.f32.mrb[0].mxu0
        %v913 = vadd.f32 0.0, %v912
        %914 = vmatprep.mubr.f32.mxu0 0.0
        %915 = vmatmul.mubr.f32.gmra.mrb[0].mxu0 %v479
        %v916 = vpop.f32.mrb[0].mxu0
        %v917 = vadd.f32 0.0, %v916
        %v918 = vpop.f32.mrb[0].mxu0
        %v919 = vadd.f32 0.0, %v918
        %920 = vmatprep.mubr.f32.mxu0 0.0
        %921 = vmatmul.mubr.f32.gmra.mrb[0].mxu0 %v482
        %v922 = vpop.f32.mrb[0].mxu0
        %v923 = vadd.f32 0.0, %v922
        %v924 = vpop.f32.mrb[0].mxu0
        %v925 = vadd.f32 0.0, %v924
        %926 = vmatprep.mubr.f32.mxu0 0.0
        %927 = vmatmul.mubr.f32.gmra.mrb[0].mxu0 %v485
        %v928 = vpop.f32.mrb[0].mxu0
        %v929 = vadd.f32 0.0, %v928
        %v930 = vpop.f32.mrb[0].mxu0
        %v931 = vadd.f32 0.0, %v930
        %932 = vmatprep.mubr.f32.mxu0 0.0
        %933 = vmatmul.mubr.f32.gmra.mrb[0].mxu0 %v488
        %v934 = vpop.f32.mrb[0].mxu0
        %v935 = vadd.f32 0.0, %v934
        %v936 = vpop.f32.mrb[0].mxu0
        %v937 = vadd.f32 0.0, %v936
        %938 = vdwg.mxu0
        %939 = vmatprep.subr.mxu0 0.0
        %940 = vmatpush1.xpose.msra.mxu0 %v587
        %941 = vmatprep.subr.mxu0 0.0
        %942 = vmatpush1.xpose.msra.mxu0 %v590
        %943 = vmatprep.subr.mxu0 0.0
        %944 = vmatpush1.xpose.msra.mxu0 %v593
        %945 = vmatprep.subr.mxu0 0.0
        %946 = vmatpush1.xpose.msra.mxu0 %v596
        %947 = vmatprep.subr.mxu0 0.0
        %948 = vmatpush1.xpose.msra.mxu0 %v599
        %949 = vmatprep.subr.mxu0 0.0
        %950 = vmatpush1.xpose.msra.mxu0 %v602
        %951 = vmatprep.subr.mxu0 0.0
        %952 = vmatpush1.xpose.msra.mxu0 %v605
        %953 = vmatprep.subr.mxu0 0.0
        %954 = vmatpush1.xpose.msra.mxu0 %v608
        %955 = vmatprep.subr.mxu0 0.0
        %956 = vmatpush1.xpose.msra.mxu0 %v611
        %957 = vmatprep.subr.mxu0 0.0
        %958 = vmatpush1.xpose.msra.mxu0 %v614
        %959 = vmatprep.subr.mxu0 0.0
        %960 = vmatpush1.xpose.msra.mxu0 %v617
        %961 = vmatprep.subr.mxu0 0.0
        %962 = vmatpush1.xpose.msra.mxu0 %v620
        %963 = vmatprep.subr.mxu0 0.0
        %964 = vmatpush1.xpose.msra.mxu0 %v623
        %965 = vmatprep.subr.mxu0 0.0
        %966 = vmatpush1.xpose.msra.mxu0 %v626
        %967 = vmatprep.subr.mxu0 0.0
        %968 = vmatpush1.xpose.msra.mxu0 %v629
        %969 = vmatprep.subr.mxu0 0.0
        %970 = vmatpush1.xpose.msra.mxu0 %v632
        %971 = vmatprep.subr.mxu0 0.0
        %972 = vmatpush1.xpose.msra.mxu0 %v635
        %973 = vmatprep.subr.mxu0 0.0
        %974 = vmatpush1.xpose.msra.mxu0 %v638
        %975 = vmatprep.subr.mxu0 0.0
        %976 = vmatpush1.xpose.msra.mxu0 %v641
        %977 = vmatprep.subr.mxu0 0.0
        %978 = vmatpush1.xpose.msra.mxu0 %v644
        %979 = vmatprep.subr.mxu0 0.0
        %980 = vmatpush1.xpose.msra.mxu0 %v647
        %981 = vmatprep.subr.mxu0 0.0
        %982 = vmatpush1.xpose.msra.mxu0 %v650
        %983 = vmatprep.subr.mxu0 0.0
        %984 = vmatpush1.xpose.msra.mxu0 %v653
        %985 = vmatprep.subr.mxu0 0.0
        %986 = vmatpush1.xpose.msra.mxu0 %v656
        %987 = vmatprep.subr.mxu0 0.0
        %988 = vmatpush1.xpose.msra.mxu0 %v659
        %989 = vmatprep.subr.mxu0 0.0
        %990 = vmatpush1.xpose.msra.mxu0 %v662
        %991 = vmatprep.subr.mxu0 0.0
        %992 = vmatpush1.xpose.msra.mxu0 %v665
        %993 = vmatprep.subr.mxu0 0.0
        %994 = vmatpush1.xpose.msra.mxu0 %v668
        %995 = vmatprep.subr.mxu0 0.0
        %996 = vmatpush1.xpose.msra.mxu0 %v671
        %997 = vmatprep.subr.mxu0 0.0
        %998 = vmatpush1.xpose.msra.mxu0 %v674
        %999 = vmatprep.subr.mxu0 0.0
        %1000 = vmatpush1.xpose.msra.mxu0 %v677
        %1001 = vmatprep.subr.mxu0 0.0
        %1002 = vmatpush1.xpose.msra.mxu0 %v680
        %1003 = vmatprep.mubr.f32.mxu0 0.0
        %1004 = vmatmul.mubr.f32.gmra.mrb[0].mxu0 %v395
        %v1005 = vpop.f32.mrb[0].mxu0
        %v1006 = vadd.f32 0.0, %v1005
        %v1007 = vpop.f32.mrb[0].mxu0
        %v1008 = vadd.f32 0.0, %v1007
        %1009 = vmatprep.mubr.f32.mxu0 0.0
        %1010 = vmatmul.mubr.f32.gmra.mrb[0].mxu0 %v398
        %v1011 = vpop.f32.mrb[0].mxu0
        %v1012 = vadd.f32 0.0, %v1011
        %v1013 = vpop.f32.mrb[0].mxu0
        %v1014 = vadd.f32 0.0, %v1013
        %1015 = vmatprep.mubr.f32.mxu0 0.0
        %1016 = vmatmul.mubr.f32.gmra.mrb[0].mxu0 %v401
        %v1017 = vpop.f32.mrb[0].mxu0
        %v1018 = vadd.f32 0.0, %v1017
        %v1019 = vpop.f32.mrb[0].mxu0
        %v1020 = vadd.f32 0.0, %v1019
        %1021 = vmatprep.mubr.f32.mxu0 0.0
        %1022 = vmatmul.mubr.f32.gmra.mrb[0].mxu0 %v404
        %v1023 = vpop.f32.mrb[0].mxu0
        %v1024 = vadd.f32 0.0, %v1023
        %v1025 = vpop.f32.mrb[0].mxu0
        %v1026 = vadd.f32 0.0, %v1025
        %1027 = vmatprep.mubr.f32.mxu0 0.0
        %1028 = vmatmul.mubr.f32.gmra.mrb[0].mxu0 %v407
        %v1029 = vpop.f32.mrb[0].mxu0
        %v1030 = vadd.f32 0.0, %v1029
        %v1031 = vpop.f32.mrb[0].mxu0
        %v1032 = vadd.f32 0.0, %v1031
        %1033 = vmatprep.mubr.f32.mxu0 0.0
        %1034 = vmatmul.mubr.f32.gmra.mrb[0].mxu0 %v410
        %v1035 = vpop.f32.mrb[0].mxu0
        %v1036 = vadd.f32 0.0, %v1035
        %v1037 = vpop.f32.mrb[0].mxu0
        %v1038 = vadd.f32 0.0, %v1037
        %1039 = vmatprep.mubr.f32.mxu0 0.0
        %1040 = vmatmul.mubr.f32.gmra.mrb[0].mxu0 %v413
        %v1041 = vpop.f32.mrb[0].mxu0
        %v1042 = vadd.f32 0.0, %v1041
        %v1043 = vpop.f32.mrb[0].mxu0
        %v1044 = vadd.f32 0.0, %v1043
        %1045 = vmatprep.mubr.f32.mxu0 0.0
        %1046 = vmatmul.mubr.f32.gmra.mrb[0].mxu0 %v416
        %v1047 = vpop.f32.mrb[0].mxu0
        %v1048 = vadd.f32 0.0, %v1047
        %v1049 = vpop.f32.mrb[0].mxu0
        %v1050 = vadd.f32 0.0, %v1049
        %1051 = vmatprep.mubr.f32.mxu0 0.0
        %1052 = vmatmul.mubr.f32.gmra.mrb[0].mxu0 %v419
        %v1053 = vpop.f32.mrb[0].mxu0
        %v1054 = vadd.f32 0.0, %v1053
        %v1055 = vpop.f32.mrb[0].mxu0
        %v1056 = vadd.f32 0.0, %v1055
        %1057 = vmatprep.mubr.f32.mxu0 0.0
        %1058 = vmatmul.mubr.f32.gmra.mrb[0].mxu0 %v422
        %v1059 = vpop.f32.mrb[0].mxu0
        %v1060 = vadd.f32 0.0, %v1059
        %v1061 = vpop.f32.mrb[0].mxu0
        %v1062 = vadd.f32 0.0, %v1061
        %1063 = vmatprep.mubr.f32.mxu0 0.0
        %1064 = vmatmul.mubr.f32.gmra.mrb[0].mxu0 %v425
        %v1065 = vpop.f32.mrb[0].mxu0
        %v1066 = vadd.f32 0.0, %v1065
        %v1067 = vpop.f32.mrb[0].mxu0
        %v1068 = vadd.f32 0.0, %v1067
        %1069 = vmatprep.mubr.f32.mxu0 0.0
        %1070 = vmatmul.mubr.f32.gmra.mrb[0].mxu0 %v428
        %v1071 = vpop.f32.mrb[0].mxu0
        %v1072 = vadd.f32 0.0, %v1071
        %v1073 = vpop.f32.mrb[0].mxu0
        %v1074 = vadd.f32 0.0, %v1073
        %1075 = vmatprep.mubr.f32.mxu0 0.0
        %1076 = vmatmul.mubr.f32.gmra.mrb[0].mxu0 %v431
        %v1077 = vpop.f32.mrb[0].mxu0
        %v1078 = vadd.f32 0.0, %v1077
        %v1079 = vpop.f32.mrb[0].mxu0
        %v1080 = vadd.f32 0.0, %v1079
        %1081 = vmatprep.mubr.f32.mxu0 0.0
        %1082 = vmatmul.mubr.f32.gmra.mrb[0].mxu0 %v434
        %v1083 = vpop.f32.mrb[0].mxu0
        %v1084 = vadd.f32 0.0, %v1083
        %v1085 = vpop.f32.mrb[0].mxu0
        %v1086 = vadd.f32 0.0, %v1085
        %1087 = vmatprep.mubr.f32.mxu0 0.0
        %1088 = vmatmul.mubr.f32.gmra.mrb[0].mxu0 %v437
        %v1089 = vpop.f32.mrb[0].mxu0
        %v1090 = vadd.f32 0.0, %v1089
        %v1091 = vpop.f32.mrb[0].mxu0
        %v1092 = vadd.f32 0.0, %v1091
        %1093 = vmatprep.mubr.f32.mxu0 0.0
        %1094 = vmatmul.mubr.f32.gmra.mrb[0].mxu0 %v440
        %v1095 = vpop.f32.mrb[0].mxu0
        %v1096 = vadd.f32 0.0, %v1095
        %v1097 = vpop.f32.mrb[0].mxu0
        %v1098 = vadd.f32 0.0, %v1097
        %1099 = vmatprep.mubr.f32.mxu0 0.0
        %1100 = vmatmul.mubr.f32.gmra.mrb[0].mxu0 %v443
        %v1101 = vpop.f32.mrb[0].mxu0
        %v1102 = vadd.f32 0.0, %v1101
        %v1103 = vpop.f32.mrb[0].mxu0
        %v1104 = vadd.f32 0.0, %v1103
        %1105 = vmatprep.mubr.f32.mxu0 0.0
        %1106 = vmatmul.mubr.f32.gmra.mrb[0].mxu0 %v446
        %v1107 = vpop.f32.mrb[0].mxu0
        %v1108 = vadd.f32 0.0, %v1107
        %v1109 = vpop.f32.mrb[0].mxu0
        %v1110 = vadd.f32 0.0, %v1109
        %1111 = vmatprep.mubr.f32.mxu0 0.0
        %1112 = vmatmul.mubr.f32.gmra.mrb[0].mxu0 %v449
        %v1113 = vpop.f32.mrb[0].mxu0
        %v1114 = vadd.f32 0.0, %v1113
        %v1115 = vpop.f32.mrb[0].mxu0
        %v1116 = vadd.f32 0.0, %v1115
        %1117 = vmatprep.mubr.f32.mxu0 0.0
        %1118 = vmatmul.mubr.f32.gmra.mrb[0].mxu0 %v452
        %v1119 = vpop.f32.mrb[0].mxu0
        %v1120 = vadd.f32 0.0, %v1119
        %v1121 = vpop.f32.mrb[0].mxu0
        %v1122 = vadd.f32 0.0, %v1121
        %1123 = vmatprep.mubr.f32.mxu0 0.0
        %1124 = vmatmul.mubr.f32.gmra.mrb[0].mxu0 %v455
        %v1125 = vpop.f32.mrb[0].mxu0
        %v1126 = vadd.f32 0.0, %v1125
        %v1127 = vpop.f32.mrb[0].mxu0
        %v1128 = vadd.f32 0.0, %v1127
        %1129 = vmatprep.mubr.f32.mxu0 0.0
        %1130 = vmatmul.mubr.f32.gmra.mrb[0].mxu0 %v458
        %v1131 = vpop.f32.mrb[0].mxu0
        %v1132 = vadd.f32 0.0, %v1131
        %v1133 = vpop.f32.mrb[0].mxu0
        %v1134 = vadd.f32 0.0, %v1133
        %1135 = vmatprep.mubr.f32.mxu0 0.0
        %1136 = vmatmul.mubr.f32.gmra.mrb[0].mxu0 %v461
        %v1137 = vpop.f32.mrb[0].mxu0
        %v1138 = vadd.f32 0.0, %v1137
        %v1139 = vpop.f32.mrb[0].mxu0
        %v1140 = vadd.f32 0.0, %v1139
        %1141 = vmatprep.mubr.f32.mxu0 0.0
        %1142 = vmatmul.mubr.f32.gmra.mrb[0].mxu0 %v464
        %v1143 = vpop.f32.mrb[0].mxu0
        %v1144 = vadd.f32 0.0, %v1143
        %v1145 = vpop.f32.mrb[0].mxu0
        %v1146 = vadd.f32 0.0, %v1145
        %1147 = vmatprep.mubr.f32.mxu0 0.0
        %1148 = vmatmul.mubr.f32.gmra.mrb[0].mxu0 %v467
        %v1149 = vpop.f32.mrb[0].mxu0
        %v1150 = vadd.f32 0.0, %v1149
        %v1151 = vpop.f32.mrb[0].mxu0
        %v1152 = vadd.f32 0.0, %v1151
        %1153 = vmatprep.mubr.f32.mxu0 0.0
        %1154 = vmatmul.mubr.f32.gmra.mrb[0].mxu0 %v470
        %v1155 = vpop.f32.mrb[0].mxu0
        %v1156 = vadd.f32 0.0, %v1155
        %v1157 = vpop.f32.mrb[0].mxu0
        %v1158 = vadd.f32 0.0, %v1157
        %1159 = vmatprep.mubr.f32.mxu0 0.0
        %1160 = vmatmul.mubr.f32.gmra.mrb[0].mxu0 %v473
        %v1161 = vpop.f32.mrb[0].mxu0
        %v1162 = vadd.f32 0.0, %v1161
        %v1163 = vpop.f32.mrb[0].mxu0
        %v1164 = vadd.f32 0.0, %v1163
        %1165 = vmatprep.mubr.f32.mxu0 0.0
        %1166 = vmatmul.mubr.f32.gmra.mrb[0].mxu0 %v476
        %v1167 = vpop.f32.mrb[0].mxu0
        %v1168 = vadd.f32 0.0, %v1167
        %v1169 = vpop.f32.mrb[0].mxu0
        %v1170 = vadd.f32 0.0, %v1169
        %1171 = vmatprep.mubr.f32.mxu0 0.0
        %1172 = vmatmul.mubr.f32.gmra.mrb[0].mxu0 %v479
        %v1173 = vpop.f32.mrb[0].mxu0
        %v1174 = vadd.f32 0.0, %v1173
        %v1175 = vpop.f32.mrb[0].mxu0
        %v1176 = vadd.f32 0.0, %v1175
        %1177 = vmatprep.mubr.f32.mxu0 0.0
        %1178 = vmatmul.mubr.f32.gmra.mrb[0].mxu0 %v482
        %v1179 = vpop.f32.mrb[0].mxu0
        %v1180 = vadd.f32 0.0, %v1179
        %v1181 = vpop.f32.mrb[0].mxu0
        %v1182 = vadd.f32 0.0, %v1181
        %1183 = vmatprep.mubr.f32.mxu0 0.0
        %1184 = vmatmul.mubr.f32.gmra.mrb[0].mxu0 %v485
        %v1185 = vpop.f32.mrb[0].mxu0
        %v1186 = vadd.f32 0.0, %v1185
        %v1187 = vpop.f32.mrb[0].mxu0
        %v1188 = vadd.f32 0.0, %v1187
        %1189 = vmatprep.mubr.f32.mxu0 0.0
        %1190 = vmatmul.mubr.f32.gmra.mrb[0].mxu0 %v488
        %v1191 = vpop.f32.mrb[0].mxu0
        %v1192 = vadd.f32 0.0, %v1191
        %v1193 = vpop.f32.mrb[0].mxu0
        %v1194 = vadd.f32 0.0, %v1193
        %1195 = vdwg.mxu0
        %v1196 = vld [vmem:[%s3] sm:$0xf]
        %v1198 = vlaneseq
        %v1199 = vshrl.u32 %v1198, 7
        %v1200 = vsub.s32 0, %v1199
        %v1201 = vrot.slane %v1196, %v1200
        %v1202 = vlaneseq
        %v1203 = vshrl.u32 %v1202, 7
        %v1204 = vsub.s32 1, %v1203
        %v1205 = vrot.slane %v1196, %v1204
        %v1206 = vlaneseq
        %v1207 = vshrl.u32 %v1206, 7
        %v1208 = vsub.s32 2, %v1207
        %v1209 = vrot.slane %v1196, %v1208
        %v1210 = vlaneseq
        %v1211 = vshrl.u32 %v1210, 7
        %v1212 = vsub.s32 3, %v1211
        %v1213 = vrot.slane %v1196, %v1212
        %v1218 = vsub.f32 %v1201, %v749
        %v1219 = vsub.f32 %v1205, %v751
        %v1220 = vsub.f32 %v1209, %v1006
        %v1221 = vsub.f32 %v1213, %v1008
        %v1222 = vsub.f32 %v1201, %v755
        %v1223 = vsub.f32 %v1205, %v757
        %v1224 = vsub.f32 %v1209, %v1012
        %v1225 = vsub.f32 %v1213, %v1014
        %v1226 = vsub.f32 %v1201, %v761
        %v1227 = vsub.f32 %v1205, %v763
        %v1228 = vsub.f32 %v1209, %v1018
        %v1229 = vsub.f32 %v1213, %v1020
        %v1230 = vsub.f32 %v1201, %v767
        %v1231 = vsub.f32 %v1205, %v769
        %v1232 = vsub.f32 %v1209, %v1024
        %v1233 = vsub.f32 %v1213, %v1026
        %v1234 = vsub.f32 %v1201, %v773
        %v1235 = vsub.f32 %v1205, %v775
        %v1236 = vsub.f32 %v1209, %v1030
        %v1237 = vsub.f32 %v1213, %v1032
        %v1238 = vsub.f32 %v1201, %v779
        %v1239 = vsub.f32 %v1205, %v781
        %v1240 = vsub.f32 %v1209, %v1036
        %v1241 = vsub.f32 %v1213, %v1038
        %v1242 = vsub.f32 %v1201, %v785
        %v1243 = vsub.f32 %v1205, %v787
        %v1244 = vsub.f32 %v1209, %v1042
        %v1245 = vsub.f32 %v1213, %v1044
        %v1246 = vsub.f32 %v1201, %v791
        %v1247 = vsub.f32 %v1205, %v793
        %v1248 = vsub.f32 %v1209, %v1048
        %v1249 = vsub.f32 %v1213, %v1050
        %v1250 = vsub.f32 %v1201, %v797
        %v1251 = vsub.f32 %v1205, %v799
        %v1252 = vsub.f32 %v1209, %v1054
        %v1253 = vsub.f32 %v1213, %v1056
        %v1254 = vsub.f32 %v1201, %v803
        %v1255 = vsub.f32 %v1205, %v805
        %v1256 = vsub.f32 %v1209, %v1060
        %v1257 = vsub.f32 %v1213, %v1062
        %v1258 = vsub.f32 %v1201, %v809
        %v1259 = vsub.f32 %v1205, %v811
        %v1260 = vsub.f32 %v1209, %v1066
        %v1261 = vsub.f32 %v1213, %v1068
        %v1262 = vsub.f32 %v1201, %v815
        %v1263 = vsub.f32 %v1205, %v817
        %v1264 = vsub.f32 %v1209, %v1072
        %v1265 = vsub.f32 %v1213, %v1074
        %v1266 = vsub.f32 %v1201, %v821
        %v1267 = vsub.f32 %v1205, %v823
        %v1268 = vsub.f32 %v1209, %v1078
        %v1269 = vsub.f32 %v1213, %v1080
        %v1270 = vsub.f32 %v1201, %v827
        %v1271 = vsub.f32 %v1205, %v829
        %v1272 = vsub.f32 %v1209, %v1084
        %v1273 = vsub.f32 %v1213, %v1086
        %v1274 = vsub.f32 %v1201, %v833
        %v1275 = vsub.f32 %v1205, %v835
        %v1276 = vsub.f32 %v1209, %v1090
        %v1277 = vsub.f32 %v1213, %v1092
        %v1278 = vsub.f32 %v1201, %v839
        %v1279 = vsub.f32 %v1205, %v841
        %v1280 = vsub.f32 %v1209, %v1096
        %v1281 = vsub.f32 %v1213, %v1098
        %v1282 = vsub.f32 %v1201, %v845
        %v1283 = vsub.f32 %v1205, %v847
        %v1284 = vsub.f32 %v1209, %v1102
        %v1285 = vsub.f32 %v1213, %v1104
        %v1286 = vsub.f32 %v1201, %v851
        %v1287 = vsub.f32 %v1205, %v853
        %v1288 = vsub.f32 %v1209, %v1108
        %v1289 = vsub.f32 %v1213, %v1110
        %v1290 = vsub.f32 %v1201, %v857
        %v1291 = vsub.f32 %v1205, %v859
        %v1292 = vsub.f32 %v1209, %v1114
        %v1293 = vsub.f32 %v1213, %v1116
        %v1294 = vsub.f32 %v1201, %v863
        %v1295 = vsub.f32 %v1205, %v865
        %v1296 = vsub.f32 %v1209, %v1120
        %v1297 = vsub.f32 %v1213, %v1122
        %v1298 = vsub.f32 %v1201, %v869
        %v1299 = vsub.f32 %v1205, %v871
        %v1300 = vsub.f32 %v1209, %v1126
        %v1301 = vsub.f32 %v1213, %v1128
        %v1302 = vsub.f32 %v1201, %v875
        %v1303 = vsub.f32 %v1205, %v877
        %v1304 = vsub.f32 %v1209, %v1132
        %v1305 = vsub.f32 %v1213, %v1134
        %v1306 = vsub.f32 %v1201, %v881
        %v1307 = vsub.f32 %v1205, %v883
        %v1308 = vsub.f32 %v1209, %v1138
        %v1309 = vsub.f32 %v1213, %v1140
        %v1310 = vsub.f32 %v1201, %v887
        %v1311 = vsub.f32 %v1205, %v889
        %v1312 = vsub.f32 %v1209, %v1144
        %v1313 = vsub.f32 %v1213, %v1146
        %v1314 = vsub.f32 %v1201, %v893
        %v1315 = vsub.f32 %v1205, %v895
        %v1316 = vsub.f32 %v1209, %v1150
        %v1317 = vsub.f32 %v1213, %v1152
        %v1318 = vsub.f32 %v1201, %v899
        %v1319 = vsub.f32 %v1205, %v901
        %v1320 = vsub.f32 %v1209, %v1156
        %v1321 = vsub.f32 %v1213, %v1158
        %v1322 = vsub.f32 %v1201, %v905
        %v1323 = vsub.f32 %v1205, %v907
        %v1324 = vsub.f32 %v1209, %v1162
        %v1325 = vsub.f32 %v1213, %v1164
        %v1326 = vsub.f32 %v1201, %v911
        %v1327 = vsub.f32 %v1205, %v913
        %v1328 = vsub.f32 %v1209, %v1168
        %v1329 = vsub.f32 %v1213, %v1170
        %v1330 = vsub.f32 %v1201, %v917
        %v1331 = vsub.f32 %v1205, %v919
        %v1332 = vsub.f32 %v1209, %v1174
        %v1333 = vsub.f32 %v1213, %v1176
        %v1334 = vsub.f32 %v1201, %v923
        %v1335 = vsub.f32 %v1205, %v925
        %v1336 = vsub.f32 %v1209, %v1180
        %v1337 = vsub.f32 %v1213, %v1182
        %v1338 = vsub.f32 %v1201, %v929
        %v1339 = vsub.f32 %v1205, %v931
        %v1340 = vsub.f32 %v1209, %v1186
        %v1341 = vsub.f32 %v1213, %v1188
        %v1342 = vsub.f32 %v1201, %v935
        %v1343 = vsub.f32 %v1205, %v937
        %v1344 = vsub.f32 %v1209, %v1192
        %v1345 = vsub.f32 %v1213, %v1194
        %v1346 = vld [vmem:[%s269] sm:$0xff]
        %v1347 = vld [vmem:[%s269 + $0x8] sm:$0xff]
        %v1348 = vld [vmem:[%s269 + $0x10] sm:$0xff]
        %v1349 = vld [vmem:[%s269 + $0x18] sm:$0xff]
        %v1350 = vld [vmem:[%s269 + $0x20] sm:$0xff]
        %v1351 = vld [vmem:[%s269 + $0x28] sm:$0xff]
        %v1352 = vld [vmem:[%s269 + $0x30] sm:$0xff]
        %v1353 = vld [vmem:[%s269 + $0x38] sm:$0xff]
        %v1354 = vld [vmem:[%s269 + $0x40] sm:$0xff]
        %v1355 = vld [vmem:[%s269 + $0x48] sm:$0xff]
        %v1356 = vld [vmem:[%s269 + $0x50] sm:$0xff]
        %v1357 = vld [vmem:[%s269 + $0x58] sm:$0xff]
        %v1358 = vld [vmem:[%s269 + $0x60] sm:$0xff]
        %v1359 = vld [vmem:[%s269 + $0x68] sm:$0xff]
        %v1360 = vld [vmem:[%s269 + $0x70] sm:$0xff]
        %v1361 = vld [vmem:[%s269 + $0x78] sm:$0xff]
        %v1362 = vld [vmem:[%s269 + $0x80] sm:$0xff]
        %v1363 = vld [vmem:[%s269 + $0x88] sm:$0xff]
        %v1364 = vld [vmem:[%s269 + $0x90] sm:$0xff]
        %v1365 = vld [vmem:[%s269 + $0x98] sm:$0xff]
        %v1366 = vld [vmem:[%s269 + $0xa0] sm:$0xff]
        %v1367 = vld [vmem:[%s269 + $0xa8] sm:$0xff]
        %v1368 = vld [vmem:[%s269 + $0xb0] sm:$0xff]
        %v1369 = vld [vmem:[%s269 + $0xb8] sm:$0xff]
        %v1370 = vld [vmem:[%s269 + $0xc0] sm:$0xff]
        %v1371 = vld [vmem:[%s269 + $0xc8] sm:$0xff]
        %v1372 = vld [vmem:[%s269 + $0xd0] sm:$0xff]
        %v1373 = vld [vmem:[%s269 + $0xd8] sm:$0xff]
        %v1374 = vld [vmem:[%s269 + $0xe0] sm:$0xff]
        %v1375 = vld [vmem:[%s269 + $0xe8] sm:$0xff]
        %v1376 = vld [vmem:[%s269 + $0xf0] sm:$0xff]
        %v1377 = vld [vmem:[%s269 + $0xf8] sm:$0xff]
        %v1378 = vand.u32 %v1346, 65535
        %v1379 = vand.u32 %v1347, 65535
        %v1380 = vand.u32 %v1348, 65535
        %v1381 = vand.u32 %v1349, 65535
        %v1382 = vand.u32 %v1350, 65535
        %v1383 = vand.u32 %v1351, 65535
        %v1384 = vand.u32 %v1352, 65535
        %v1385 = vand.u32 %v1353, 65535
        %v1386 = vand.u32 %v1354, 65535
        %v1387 = vand.u32 %v1355, 65535
        %v1388 = vand.u32 %v1356, 65535
        %v1389 = vand.u32 %v1357, 65535
        %v1390 = vand.u32 %v1358, 65535
        %v1391 = vand.u32 %v1359, 65535
        %v1392 = vand.u32 %v1360, 65535
        %v1393 = vand.u32 %v1361, 65535
        %v1394 = vand.u32 %v1362, 65535
        %v1395 = vand.u32 %v1363, 65535
        %v1396 = vand.u32 %v1364, 65535
        %v1397 = vand.u32 %v1365, 65535
        %v1398 = vand.u32 %v1366, 65535
        %v1399 = vand.u32 %v1367, 65535
        %v1400 = vand.u32 %v1368, 65535
        %v1401 = vand.u32 %v1369, 65535
        %v1402 = vand.u32 %v1370, 65535
        %v1403 = vand.u32 %v1371, 65535
        %v1404 = vand.u32 %v1372, 65535
        %v1405 = vand.u32 %v1373, 65535
        %v1406 = vand.u32 %v1374, 65535
        %v1407 = vand.u32 %v1375, 65535
        %v1408 = vand.u32 %v1376, 65535
        %v1409 = vand.u32 %v1377, 65535
        %v1410 = vshra.s32 %v1346, 16
        %v1411 = vshra.s32 %v1347, 16
        %v1412 = vshra.s32 %v1348, 16
        %v1413 = vshra.s32 %v1349, 16
        %v1414 = vshra.s32 %v1350, 16
        %v1415 = vshra.s32 %v1351, 16
        %v1416 = vshra.s32 %v1352, 16
        %v1417 = vshra.s32 %v1353, 16
        %v1418 = vshra.s32 %v1354, 16
        %v1419 = vshra.s32 %v1355, 16
        %v1420 = vshra.s32 %v1356, 16
        %v1421 = vshra.s32 %v1357, 16
        %v1422 = vshra.s32 %v1358, 16
        %v1423 = vshra.s32 %v1359, 16
        %v1424 = vshra.s32 %v1360, 16
        %v1425 = vshra.s32 %v1361, 16
        %v1426 = vshra.s32 %v1362, 16
        %v1427 = vshra.s32 %v1363, 16
        %v1428 = vshra.s32 %v1364, 16
        %v1429 = vshra.s32 %v1365, 16
        %v1430 = vshra.s32 %v1366, 16
        %v1431 = vshra.s32 %v1367, 16
        %v1432 = vshra.s32 %v1368, 16
        %v1433 = vshra.s32 %v1369, 16
        %v1434 = vshra.s32 %v1370, 16
        %v1435 = vshra.s32 %v1371, 16
        %v1436 = vshra.s32 %v1372, 16
        %v1437 = vshra.s32 %v1373, 16
        %v1438 = vshra.s32 %v1374, 16
        %v1439 = vshra.s32 %v1375, 16
        %v1440 = vshra.s32 %v1376, 16
        %v1441 = vshra.s32 %v1377, 16
        %v1442 = vlaneseq
        %v1443 = vand.u32 %v1442, 127
        %v1444 = vadd.s32 %v1443, 128
        %v1445 = vadd.s32 %v1443, 256
        %v1446 = vadd.s32 %v1443, 384
        %1447 = vset.pattern.permute.xlu0 0
        %1448 = vperm.xlu0 %1447, %v1378
        %v1449 = vpop.permute.xlu0 %1448
        %1450 = vset.pattern.permute.xlu0 0
        %1451 = vperm.xlu0 %1450, %v1379
        %v1452 = vpop.permute.xlu0 %1451
        %1453 = vset.pattern.permute.xlu0 0
        %1454 = vperm.xlu0 %1453, %v1380
        %v1455 = vpop.permute.xlu0 %1454
        %1456 = vset.pattern.permute.xlu0 0
        %1457 = vperm.xlu0 %1456, %v1381
        %v1458 = vpop.permute.xlu0 %1457
        %1459 = vset.pattern.permute.xlu0 0
        %1460 = vperm.xlu0 %1459, %v1382
        %v1461 = vpop.permute.xlu0 %1460
        %1462 = vset.pattern.permute.xlu0 0
        %1463 = vperm.xlu0 %1462, %v1383
        %v1464 = vpop.permute.xlu0 %1463
        %1465 = vset.pattern.permute.xlu0 0
        %1466 = vperm.xlu0 %1465, %v1384
        %v1467 = vpop.permute.xlu0 %1466
        %1468 = vset.pattern.permute.xlu0 0
        %1469 = vperm.xlu0 %1468, %v1385
        %v1470 = vpop.permute.xlu0 %1469
        %1471 = vset.pattern.permute.xlu0 0
        %1472 = vperm.xlu0 %1471, %v1386
        %v1473 = vpop.permute.xlu0 %1472
        %1474 = vset.pattern.permute.xlu0 0
        %1475 = vperm.xlu0 %1474, %v1387
        %v1476 = vpop.permute.xlu0 %1475
        %1477 = vset.pattern.permute.xlu0 0
        %1478 = vperm.xlu0 %1477, %v1388
        %v1479 = vpop.permute.xlu0 %1478
        %1480 = vset.pattern.permute.xlu0 0
        %1481 = vperm.xlu0 %1480, %v1389
        %v1482 = vpop.permute.xlu0 %1481
        %1483 = vset.pattern.permute.xlu0 0
        %1484 = vperm.xlu0 %1483, %v1390
        %v1485 = vpop.permute.xlu0 %1484
        %1486 = vset.pattern.permute.xlu0 0
        %1487 = vperm.xlu0 %1486, %v1391
        %v1488 = vpop.permute.xlu0 %1487
        %1489 = vset.pattern.permute.xlu0 0
        %1490 = vperm.xlu0 %1489, %v1392
        %v1491 = vpop.permute.xlu0 %1490
        %1492 = vset.pattern.permute.xlu0 0
        %1493 = vperm.xlu0 %1492, %v1393
        %v1494 = vpop.permute.xlu0 %1493
        %1495 = vset.pattern.permute.xlu0 0
        %1496 = vperm.xlu0 %1495, %v1394
        %v1497 = vpop.permute.xlu0 %1496
        %1498 = vset.pattern.permute.xlu0 0
        %1499 = vperm.xlu0 %1498, %v1395
        %v1500 = vpop.permute.xlu0 %1499
        %1501 = vset.pattern.permute.xlu0 0
        %1502 = vperm.xlu0 %1501, %v1396
        %v1503 = vpop.permute.xlu0 %1502
        %1504 = vset.pattern.permute.xlu0 0
        %1505 = vperm.xlu0 %1504, %v1397
        %v1506 = vpop.permute.xlu0 %1505
        %1507 = vset.pattern.permute.xlu0 0
        %1508 = vperm.xlu0 %1507, %v1398
        %v1509 = vpop.permute.xlu0 %1508
        %1510 = vset.pattern.permute.xlu0 0
        %1511 = vperm.xlu0 %1510, %v1399
        %v1512 = vpop.permute.xlu0 %1511
        %1513 = vset.pattern.permute.xlu0 0
        %1514 = vperm.xlu0 %1513, %v1400
        %v1515 = vpop.permute.xlu0 %1514
        %1516 = vset.pattern.permute.xlu0 0
        %1517 = vperm.xlu0 %1516, %v1401
        %v1518 = vpop.permute.xlu0 %1517
        %1519 = vset.pattern.permute.xlu0 0
        %1520 = vperm.xlu0 %1519, %v1402
        %v1521 = vpop.permute.xlu0 %1520
        %1522 = vset.pattern.permute.xlu0 0
        %1523 = vperm.xlu0 %1522, %v1403
        %v1524 = vpop.permute.xlu0 %1523
        %1525 = vset.pattern.permute.xlu0 0
        %1526 = vperm.xlu0 %1525, %v1404
        %v1527 = vpop.permute.xlu0 %1526
        %1528 = vset.pattern.permute.xlu0 0
        %1529 = vperm.xlu0 %1528, %v1405
        %v1530 = vpop.permute.xlu0 %1529
        %1531 = vset.pattern.permute.xlu0 0
        %1532 = vperm.xlu0 %1531, %v1406
        %v1533 = vpop.permute.xlu0 %1532
        %1534 = vset.pattern.permute.xlu0 0
        %1535 = vperm.xlu0 %1534, %v1407
        %v1536 = vpop.permute.xlu0 %1535
        %1537 = vset.pattern.permute.xlu0 0
        %1538 = vperm.xlu0 %1537, %v1408
        %v1539 = vpop.permute.xlu0 %1538
        %1540 = vset.pattern.permute.xlu0 0
        %1541 = vperm.xlu0 %1540, %v1409
        %v1542 = vpop.permute.xlu0 %1541
        %vm1543 = vcmp.ge.s32.totalorder %v1443, %v1449
        %vm1544 = vcmp.ge.s32.totalorder %v1444, %v1449
        %vm1545 = vcmp.ge.s32.totalorder %v1445, %v1449
        %vm1546 = vcmp.ge.s32.totalorder %v1446, %v1449
        %vm1547 = vcmp.ge.s32.totalorder %v1443, %v1452
        %vm1548 = vcmp.ge.s32.totalorder %v1444, %v1452
        %vm1549 = vcmp.ge.s32.totalorder %v1445, %v1452
        %vm1550 = vcmp.ge.s32.totalorder %v1446, %v1452
        %vm1551 = vcmp.ge.s32.totalorder %v1443, %v1455
        %vm1552 = vcmp.ge.s32.totalorder %v1444, %v1455
        %vm1553 = vcmp.ge.s32.totalorder %v1445, %v1455
        %vm1554 = vcmp.ge.s32.totalorder %v1446, %v1455
        %vm1555 = vcmp.ge.s32.totalorder %v1443, %v1458
        %vm1556 = vcmp.ge.s32.totalorder %v1444, %v1458
        %vm1557 = vcmp.ge.s32.totalorder %v1445, %v1458
        %vm1558 = vcmp.ge.s32.totalorder %v1446, %v1458
        %vm1559 = vcmp.ge.s32.totalorder %v1443, %v1461
        %vm1560 = vcmp.ge.s32.totalorder %v1444, %v1461
        %vm1561 = vcmp.ge.s32.totalorder %v1445, %v1461
        %vm1562 = vcmp.ge.s32.totalorder %v1446, %v1461
        %vm1563 = vcmp.ge.s32.totalorder %v1443, %v1464
        %vm1564 = vcmp.ge.s32.totalorder %v1444, %v1464
        %vm1565 = vcmp.ge.s32.totalorder %v1445, %v1464
        %vm1566 = vcmp.ge.s32.totalorder %v1446, %v1464
        %vm1567 = vcmp.ge.s32.totalorder %v1443, %v1467
        %vm1568 = vcmp.ge.s32.totalorder %v1444, %v1467
        %vm1569 = vcmp.ge.s32.totalorder %v1445, %v1467
        %vm1570 = vcmp.ge.s32.totalorder %v1446, %v1467
        %vm1571 = vcmp.ge.s32.totalorder %v1443, %v1470
        %vm1572 = vcmp.ge.s32.totalorder %v1444, %v1470
        %vm1573 = vcmp.ge.s32.totalorder %v1445, %v1470
        %vm1574 = vcmp.ge.s32.totalorder %v1446, %v1470
        %vm1575 = vcmp.ge.s32.totalorder %v1443, %v1473
        %vm1576 = vcmp.ge.s32.totalorder %v1444, %v1473
        %vm1577 = vcmp.ge.s32.totalorder %v1445, %v1473
        %vm1578 = vcmp.ge.s32.totalorder %v1446, %v1473
        %vm1579 = vcmp.ge.s32.totalorder %v1443, %v1476
        %vm1580 = vcmp.ge.s32.totalorder %v1444, %v1476
        %vm1581 = vcmp.ge.s32.totalorder %v1445, %v1476
        %vm1582 = vcmp.ge.s32.totalorder %v1446, %v1476
        %vm1583 = vcmp.ge.s32.totalorder %v1443, %v1479
        %vm1584 = vcmp.ge.s32.totalorder %v1444, %v1479
        %vm1585 = vcmp.ge.s32.totalorder %v1445, %v1479
        %vm1586 = vcmp.ge.s32.totalorder %v1446, %v1479
        %vm1587 = vcmp.ge.s32.totalorder %v1443, %v1482
        %vm1588 = vcmp.ge.s32.totalorder %v1444, %v1482
        %vm1589 = vcmp.ge.s32.totalorder %v1445, %v1482
        %vm1590 = vcmp.ge.s32.totalorder %v1446, %v1482
        %vm1591 = vcmp.ge.s32.totalorder %v1443, %v1485
        %vm1592 = vcmp.ge.s32.totalorder %v1444, %v1485
        %vm1593 = vcmp.ge.s32.totalorder %v1445, %v1485
        %vm1594 = vcmp.ge.s32.totalorder %v1446, %v1485
        %vm1595 = vcmp.ge.s32.totalorder %v1443, %v1488
        %vm1596 = vcmp.ge.s32.totalorder %v1444, %v1488
        %vm1597 = vcmp.ge.s32.totalorder %v1445, %v1488
        %vm1598 = vcmp.ge.s32.totalorder %v1446, %v1488
        %vm1599 = vcmp.ge.s32.totalorder %v1443, %v1491
        %vm1600 = vcmp.ge.s32.totalorder %v1444, %v1491
        %vm1601 = vcmp.ge.s32.totalorder %v1445, %v1491
        %vm1602 = vcmp.ge.s32.totalorder %v1446, %v1491
        %vm1603 = vcmp.ge.s32.totalorder %v1443, %v1494
        %vm1604 = vcmp.ge.s32.totalorder %v1444, %v1494
        %vm1605 = vcmp.ge.s32.totalorder %v1445, %v1494
        %vm1606 = vcmp.ge.s32.totalorder %v1446, %v1494
        %vm1607 = vcmp.ge.s32.totalorder %v1443, %v1497
        %vm1608 = vcmp.ge.s32.totalorder %v1444, %v1497
        %vm1609 = vcmp.ge.s32.totalorder %v1445, %v1497
        %vm1610 = vcmp.ge.s32.totalorder %v1446, %v1497
        %vm1611 = vcmp.ge.s32.totalorder %v1443, %v1500
        %vm1612 = vcmp.ge.s32.totalorder %v1444, %v1500
        %vm1613 = vcmp.ge.s32.totalorder %v1445, %v1500
        %vm1614 = vcmp.ge.s32.totalorder %v1446, %v1500
        %vm1615 = vcmp.ge.s32.totalorder %v1443, %v1503
        %vm1616 = vcmp.ge.s32.totalorder %v1444, %v1503
        %vm1617 = vcmp.ge.s32.totalorder %v1445, %v1503
        %vm1618 = vcmp.ge.s32.totalorder %v1446, %v1503
        %vm1619 = vcmp.ge.s32.totalorder %v1443, %v1506
        %vm1620 = vcmp.ge.s32.totalorder %v1444, %v1506
        %vm1621 = vcmp.ge.s32.totalorder %v1445, %v1506
        %vm1622 = vcmp.ge.s32.totalorder %v1446, %v1506
        %vm1623 = vcmp.ge.s32.totalorder %v1443, %v1509
        %vm1624 = vcmp.ge.s32.totalorder %v1444, %v1509
        %vm1625 = vcmp.ge.s32.totalorder %v1445, %v1509
        %vm1626 = vcmp.ge.s32.totalorder %v1446, %v1509
        %vm1627 = vcmp.ge.s32.totalorder %v1443, %v1512
        %vm1628 = vcmp.ge.s32.totalorder %v1444, %v1512
        %vm1629 = vcmp.ge.s32.totalorder %v1445, %v1512
        %vm1630 = vcmp.ge.s32.totalorder %v1446, %v1512
        %vm1631 = vcmp.ge.s32.totalorder %v1443, %v1515
        %vm1632 = vcmp.ge.s32.totalorder %v1444, %v1515
        %vm1633 = vcmp.ge.s32.totalorder %v1445, %v1515
        %vm1634 = vcmp.ge.s32.totalorder %v1446, %v1515
        %vm1635 = vcmp.ge.s32.totalorder %v1443, %v1518
        %vm1636 = vcmp.ge.s32.totalorder %v1444, %v1518
        %vm1637 = vcmp.ge.s32.totalorder %v1445, %v1518
        %vm1638 = vcmp.ge.s32.totalorder %v1446, %v1518
        %vm1639 = vcmp.ge.s32.totalorder %v1443, %v1521
        %vm1640 = vcmp.ge.s32.totalorder %v1444, %v1521
        %vm1641 = vcmp.ge.s32.totalorder %v1445, %v1521
        %vm1642 = vcmp.ge.s32.totalorder %v1446, %v1521
        %vm1643 = vcmp.ge.s32.totalorder %v1443, %v1524
        %vm1644 = vcmp.ge.s32.totalorder %v1444, %v1524
        %vm1645 = vcmp.ge.s32.totalorder %v1445, %v1524
        %vm1646 = vcmp.ge.s32.totalorder %v1446, %v1524
        %vm1647 = vcmp.ge.s32.totalorder %v1443, %v1527
        %vm1648 = vcmp.ge.s32.totalorder %v1444, %v1527
        %vm1649 = vcmp.ge.s32.totalorder %v1445, %v1527
        %vm1650 = vcmp.ge.s32.totalorder %v1446, %v1527
        %vm1651 = vcmp.ge.s32.totalorder %v1443, %v1530
        %vm1652 = vcmp.ge.s32.totalorder %v1444, %v1530
        %vm1653 = vcmp.ge.s32.totalorder %v1445, %v1530
        %vm1654 = vcmp.ge.s32.totalorder %v1446, %v1530
        %vm1655 = vcmp.ge.s32.totalorder %v1443, %v1533
        %vm1656 = vcmp.ge.s32.totalorder %v1444, %v1533
        %vm1657 = vcmp.ge.s32.totalorder %v1445, %v1533
        %vm1658 = vcmp.ge.s32.totalorder %v1446, %v1533
        %vm1659 = vcmp.ge.s32.totalorder %v1443, %v1536
        %vm1660 = vcmp.ge.s32.totalorder %v1444, %v1536
        %vm1661 = vcmp.ge.s32.totalorder %v1445, %v1536
        %vm1662 = vcmp.ge.s32.totalorder %v1446, %v1536
        %vm1663 = vcmp.ge.s32.totalorder %v1443, %v1539
        %vm1664 = vcmp.ge.s32.totalorder %v1444, %v1539
        %vm1665 = vcmp.ge.s32.totalorder %v1445, %v1539
        %vm1666 = vcmp.ge.s32.totalorder %v1446, %v1539
        %vm1667 = vcmp.ge.s32.totalorder %v1443, %v1542
        %vm1668 = vcmp.ge.s32.totalorder %v1444, %v1542
        %vm1669 = vcmp.ge.s32.totalorder %v1445, %v1542
        %vm1670 = vcmp.ge.s32.totalorder %v1446, %v1542
        %1671 = vset.pattern.permute.xlu0 0
        %1672 = vperm.xlu0 %1671, %v1410
        %v1673 = vpop.permute.xlu0 %1672
        %1674 = vset.pattern.permute.xlu0 0
        %1675 = vperm.xlu0 %1674, %v1411
        %v1676 = vpop.permute.xlu0 %1675
        %1677 = vset.pattern.permute.xlu0 0
        %1678 = vperm.xlu0 %1677, %v1412
        %v1679 = vpop.permute.xlu0 %1678
        %1680 = vset.pattern.permute.xlu0 0
        %1681 = vperm.xlu0 %1680, %v1413
        %v1682 = vpop.permute.xlu0 %1681
        %1683 = vset.pattern.permute.xlu0 0
        %1684 = vperm.xlu0 %1683, %v1414
        %v1685 = vpop.permute.xlu0 %1684
        %1686 = vset.pattern.permute.xlu0 0
        %1687 = vperm.xlu0 %1686, %v1415
        %v1688 = vpop.permute.xlu0 %1687
        %1689 = vset.pattern.permute.xlu0 0
        %1690 = vperm.xlu0 %1689, %v1416
        %v1691 = vpop.permute.xlu0 %1690
        %1692 = vset.pattern.permute.xlu0 0
        %1693 = vperm.xlu0 %1692, %v1417
        %v1694 = vpop.permute.xlu0 %1693
        %1695 = vset.pattern.permute.xlu0 0
        %1696 = vperm.xlu0 %1695, %v1418
        %v1697 = vpop.permute.xlu0 %1696
        %1698 = vset.pattern.permute.xlu0 0
        %1699 = vperm.xlu0 %1698, %v1419
        %v1700 = vpop.permute.xlu0 %1699
        %1701 = vset.pattern.permute.xlu0 0
        %1702 = vperm.xlu0 %1701, %v1420
        %v1703 = vpop.permute.xlu0 %1702
        %1704 = vset.pattern.permute.xlu0 0
        %1705 = vperm.xlu0 %1704, %v1421
        %v1706 = vpop.permute.xlu0 %1705
        %1707 = vset.pattern.permute.xlu0 0
        %1708 = vperm.xlu0 %1707, %v1422
        %v1709 = vpop.permute.xlu0 %1708
        %1710 = vset.pattern.permute.xlu0 0
        %1711 = vperm.xlu0 %1710, %v1423
        %v1712 = vpop.permute.xlu0 %1711
        %1713 = vset.pattern.permute.xlu0 0
        %1714 = vperm.xlu0 %1713, %v1424
        %v1715 = vpop.permute.xlu0 %1714
        %1716 = vset.pattern.permute.xlu0 0
        %1717 = vperm.xlu0 %1716, %v1425
        %v1718 = vpop.permute.xlu0 %1717
        %1719 = vset.pattern.permute.xlu0 0
        %1720 = vperm.xlu0 %1719, %v1426
        %v1721 = vpop.permute.xlu0 %1720
        %1722 = vset.pattern.permute.xlu0 0
        %1723 = vperm.xlu0 %1722, %v1427
        %v1724 = vpop.permute.xlu0 %1723
        %1725 = vset.pattern.permute.xlu0 0
        %1726 = vperm.xlu0 %1725, %v1428
        %v1727 = vpop.permute.xlu0 %1726
        %1728 = vset.pattern.permute.xlu0 0
        %1729 = vperm.xlu0 %1728, %v1429
        %v1730 = vpop.permute.xlu0 %1729
        %1731 = vset.pattern.permute.xlu0 0
        %1732 = vperm.xlu0 %1731, %v1430
        %v1733 = vpop.permute.xlu0 %1732
        %1734 = vset.pattern.permute.xlu0 0
        %1735 = vperm.xlu0 %1734, %v1431
        %v1736 = vpop.permute.xlu0 %1735
        %1737 = vset.pattern.permute.xlu0 0
        %1738 = vperm.xlu0 %1737, %v1432
        %v1739 = vpop.permute.xlu0 %1738
        %1740 = vset.pattern.permute.xlu0 0
        %1741 = vperm.xlu0 %1740, %v1433
        %v1742 = vpop.permute.xlu0 %1741
        %1743 = vset.pattern.permute.xlu0 0
        %1744 = vperm.xlu0 %1743, %v1434
        %v1745 = vpop.permute.xlu0 %1744
        %1746 = vset.pattern.permute.xlu0 0
        %1747 = vperm.xlu0 %1746, %v1435
        %v1748 = vpop.permute.xlu0 %1747
        %1749 = vset.pattern.permute.xlu0 0
        %1750 = vperm.xlu0 %1749, %v1436
        %v1751 = vpop.permute.xlu0 %1750
        %1752 = vset.pattern.permute.xlu0 0
        %1753 = vperm.xlu0 %1752, %v1437
        %v1754 = vpop.permute.xlu0 %1753
        %1755 = vset.pattern.permute.xlu0 0
        %1756 = vperm.xlu0 %1755, %v1438
        %v1757 = vpop.permute.xlu0 %1756
        %1758 = vset.pattern.permute.xlu0 0
        %1759 = vperm.xlu0 %1758, %v1439
        %v1760 = vpop.permute.xlu0 %1759
        %1761 = vset.pattern.permute.xlu0 0
        %1762 = vperm.xlu0 %1761, %v1440
        %v1763 = vpop.permute.xlu0 %1762
        %1764 = vset.pattern.permute.xlu0 0
        %1765 = vperm.xlu0 %1764, %v1441
        %v1766 = vpop.permute.xlu0 %1765
        %vm1767 = vcmp.lt.s32.totalorder %v1443, %v1673
        %vm1768 = vcmp.lt.s32.totalorder %v1444, %v1673
        %vm1769 = vcmp.lt.s32.totalorder %v1445, %v1673
        %vm1770 = vcmp.lt.s32.totalorder %v1446, %v1673
        %vm1771 = vcmp.lt.s32.totalorder %v1443, %v1676
        %vm1772 = vcmp.lt.s32.totalorder %v1444, %v1676
        %vm1773 = vcmp.lt.s32.totalorder %v1445, %v1676
        %vm1774 = vcmp.lt.s32.totalorder %v1446, %v1676
        %vm1775 = vcmp.lt.s32.totalorder %v1443, %v1679
        %vm1776 = vcmp.lt.s32.totalorder %v1444, %v1679
        %vm1777 = vcmp.lt.s32.totalorder %v1445, %v1679
        %vm1778 = vcmp.lt.s32.totalorder %v1446, %v1679
        %vm1779 = vcmp.lt.s32.totalorder %v1443, %v1682
        %vm1780 = vcmp.lt.s32.totalorder %v1444, %v1682
        %vm1781 = vcmp.lt.s32.totalorder %v1445, %v1682
        %vm1782 = vcmp.lt.s32.totalorder %v1446, %v1682
        %vm1783 = vcmp.lt.s32.totalorder %v1443, %v1685
        %vm1784 = vcmp.lt.s32.totalorder %v1444, %v1685
        %vm1785 = vcmp.lt.s32.totalorder %v1445, %v1685
        %vm1786 = vcmp.lt.s32.totalorder %v1446, %v1685
        %vm1787 = vcmp.lt.s32.totalorder %v1443, %v1688
        %vm1788 = vcmp.lt.s32.totalorder %v1444, %v1688
        %vm1789 = vcmp.lt.s32.totalorder %v1445, %v1688
        %vm1790 = vcmp.lt.s32.totalorder %v1446, %v1688
        %vm1791 = vcmp.lt.s32.totalorder %v1443, %v1691
        %vm1792 = vcmp.lt.s32.totalorder %v1444, %v1691
        %vm1793 = vcmp.lt.s32.totalorder %v1445, %v1691
        %vm1794 = vcmp.lt.s32.totalorder %v1446, %v1691
        %vm1795 = vcmp.lt.s32.totalorder %v1443, %v1694
        %vm1796 = vcmp.lt.s32.totalorder %v1444, %v1694
        %vm1797 = vcmp.lt.s32.totalorder %v1445, %v1694
        %vm1798 = vcmp.lt.s32.totalorder %v1446, %v1694
        %vm1799 = vcmp.lt.s32.totalorder %v1443, %v1697
        %vm1800 = vcmp.lt.s32.totalorder %v1444, %v1697
        %vm1801 = vcmp.lt.s32.totalorder %v1445, %v1697
        %vm1802 = vcmp.lt.s32.totalorder %v1446, %v1697
        %vm1803 = vcmp.lt.s32.totalorder %v1443, %v1700
        %vm1804 = vcmp.lt.s32.totalorder %v1444, %v1700
        %vm1805 = vcmp.lt.s32.totalorder %v1445, %v1700
        %vm1806 = vcmp.lt.s32.totalorder %v1446, %v1700
        %vm1807 = vcmp.lt.s32.totalorder %v1443, %v1703
        %vm1808 = vcmp.lt.s32.totalorder %v1444, %v1703
        %vm1809 = vcmp.lt.s32.totalorder %v1445, %v1703
        %vm1810 = vcmp.lt.s32.totalorder %v1446, %v1703
        %vm1811 = vcmp.lt.s32.totalorder %v1443, %v1706
        %vm1812 = vcmp.lt.s32.totalorder %v1444, %v1706
        %vm1813 = vcmp.lt.s32.totalorder %v1445, %v1706
        %vm1814 = vcmp.lt.s32.totalorder %v1446, %v1706
        %vm1815 = vcmp.lt.s32.totalorder %v1443, %v1709
        %vm1816 = vcmp.lt.s32.totalorder %v1444, %v1709
        %vm1817 = vcmp.lt.s32.totalorder %v1445, %v1709
        %vm1818 = vcmp.lt.s32.totalorder %v1446, %v1709
        %vm1819 = vcmp.lt.s32.totalorder %v1443, %v1712
        %vm1820 = vcmp.lt.s32.totalorder %v1444, %v1712
        %vm1821 = vcmp.lt.s32.totalorder %v1445, %v1712
        %vm1822 = vcmp.lt.s32.totalorder %v1446, %v1712
        %vm1823 = vcmp.lt.s32.totalorder %v1443, %v1715
        %vm1824 = vcmp.lt.s32.totalorder %v1444, %v1715
        %vm1825 = vcmp.lt.s32.totalorder %v1445, %v1715
        %vm1826 = vcmp.lt.s32.totalorder %v1446, %v1715
        %vm1827 = vcmp.lt.s32.totalorder %v1443, %v1718
        %vm1828 = vcmp.lt.s32.totalorder %v1444, %v1718
        %vm1829 = vcmp.lt.s32.totalorder %v1445, %v1718
        %vm1830 = vcmp.lt.s32.totalorder %v1446, %v1718
        %vm1831 = vcmp.lt.s32.totalorder %v1443, %v1721
        %vm1832 = vcmp.lt.s32.totalorder %v1444, %v1721
        %vm1833 = vcmp.lt.s32.totalorder %v1445, %v1721
        %vm1834 = vcmp.lt.s32.totalorder %v1446, %v1721
        %vm1835 = vcmp.lt.s32.totalorder %v1443, %v1724
        %vm1836 = vcmp.lt.s32.totalorder %v1444, %v1724
        %vm1837 = vcmp.lt.s32.totalorder %v1445, %v1724
        %vm1838 = vcmp.lt.s32.totalorder %v1446, %v1724
        %vm1839 = vcmp.lt.s32.totalorder %v1443, %v1727
        %vm1840 = vcmp.lt.s32.totalorder %v1444, %v1727
        %vm1841 = vcmp.lt.s32.totalorder %v1445, %v1727
        %vm1842 = vcmp.lt.s32.totalorder %v1446, %v1727
        %vm1843 = vcmp.lt.s32.totalorder %v1443, %v1730
        %vm1844 = vcmp.lt.s32.totalorder %v1444, %v1730
        %vm1845 = vcmp.lt.s32.totalorder %v1445, %v1730
        %vm1846 = vcmp.lt.s32.totalorder %v1446, %v1730
        %vm1847 = vcmp.lt.s32.totalorder %v1443, %v1733
        %vm1848 = vcmp.lt.s32.totalorder %v1444, %v1733
        %vm1849 = vcmp.lt.s32.totalorder %v1445, %v1733
        %vm1850 = vcmp.lt.s32.totalorder %v1446, %v1733
        %vm1851 = vcmp.lt.s32.totalorder %v1443, %v1736
        %vm1852 = vcmp.lt.s32.totalorder %v1444, %v1736
        %vm1853 = vcmp.lt.s32.totalorder %v1445, %v1736
        %vm1854 = vcmp.lt.s32.totalorder %v1446, %v1736
        %vm1855 = vcmp.lt.s32.totalorder %v1443, %v1739
        %vm1856 = vcmp.lt.s32.totalorder %v1444, %v1739
        %vm1857 = vcmp.lt.s32.totalorder %v1445, %v1739
        %vm1858 = vcmp.lt.s32.totalorder %v1446, %v1739
        %vm1859 = vcmp.lt.s32.totalorder %v1443, %v1742
        %vm1860 = vcmp.lt.s32.totalorder %v1444, %v1742
        %vm1861 = vcmp.lt.s32.totalorder %v1445, %v1742
        %vm1862 = vcmp.lt.s32.totalorder %v1446, %v1742
        %vm1863 = vcmp.lt.s32.totalorder %v1443, %v1745
        %vm1864 = vcmp.lt.s32.totalorder %v1444, %v1745
        %vm1865 = vcmp.lt.s32.totalorder %v1445, %v1745
        %vm1866 = vcmp.lt.s32.totalorder %v1446, %v1745
        %vm1867 = vcmp.lt.s32.totalorder %v1443, %v1748
        %vm1868 = vcmp.lt.s32.totalorder %v1444, %v1748
        %vm1869 = vcmp.lt.s32.totalorder %v1445, %v1748
        %vm1870 = vcmp.lt.s32.totalorder %v1446, %v1748
        %vm1871 = vcmp.lt.s32.totalorder %v1443, %v1751
        %vm1872 = vcmp.lt.s32.totalorder %v1444, %v1751
        %vm1873 = vcmp.lt.s32.totalorder %v1445, %v1751
        %vm1874 = vcmp.lt.s32.totalorder %v1446, %v1751
        %vm1875 = vcmp.lt.s32.totalorder %v1443, %v1754
        %vm1876 = vcmp.lt.s32.totalorder %v1444, %v1754
        %vm1877 = vcmp.lt.s32.totalorder %v1445, %v1754
        %vm1878 = vcmp.lt.s32.totalorder %v1446, %v1754
        %vm1879 = vcmp.lt.s32.totalorder %v1443, %v1757
        %vm1880 = vcmp.lt.s32.totalorder %v1444, %v1757
        %vm1881 = vcmp.lt.s32.totalorder %v1445, %v1757
        %vm1882 = vcmp.lt.s32.totalorder %v1446, %v1757
        %vm1883 = vcmp.lt.s32.totalorder %v1443, %v1760
        %vm1884 = vcmp.lt.s32.totalorder %v1444, %v1760
        %vm1885 = vcmp.lt.s32.totalorder %v1445, %v1760
        %vm1886 = vcmp.lt.s32.totalorder %v1446, %v1760
        %vm1887 = vcmp.lt.s32.totalorder %v1443, %v1763
        %vm1888 = vcmp.lt.s32.totalorder %v1444, %v1763
        %vm1889 = vcmp.lt.s32.totalorder %v1445, %v1763
        %vm1890 = vcmp.lt.s32.totalorder %v1446, %v1763
        %vm1891 = vcmp.lt.s32.totalorder %v1443, %v1766
        %vm1892 = vcmp.lt.s32.totalorder %v1444, %v1766
        %vm1893 = vcmp.lt.s32.totalorder %v1445, %v1766
        %vm1894 = vcmp.lt.s32.totalorder %v1446, %v1766
        %vm1895 = vmand %vm1543, %vm1767
        %vm1896 = vmand %vm1544, %vm1768
        %vm1897 = vmand %vm1545, %vm1769
        %vm1898 = vmand %vm1546, %vm1770
        %vm1899 = vmand %vm1547, %vm1771
        %vm1900 = vmand %vm1548, %vm1772
        %vm1901 = vmand %vm1549, %vm1773
        %vm1902 = vmand %vm1550, %vm1774
        %vm1903 = vmand %vm1551, %vm1775
        %vm1904 = vmand %vm1552, %vm1776
        %vm1905 = vmand %vm1553, %vm1777
        %vm1906 = vmand %vm1554, %vm1778
        %vm1907 = vmand %vm1555, %vm1779
        %vm1908 = vmand %vm1556, %vm1780
        %vm1909 = vmand %vm1557, %vm1781
        %vm1910 = vmand %vm1558, %vm1782
        %vm1911 = vmand %vm1559, %vm1783
        %vm1912 = vmand %vm1560, %vm1784
        %vm1913 = vmand %vm1561, %vm1785
        %vm1914 = vmand %vm1562, %vm1786
        %vm1915 = vmand %vm1563, %vm1787
        %vm1916 = vmand %vm1564, %vm1788
        %vm1917 = vmand %vm1565, %vm1789
        %vm1918 = vmand %vm1566, %vm1790
        %vm1919 = vmand %vm1567, %vm1791
        %vm1920 = vmand %vm1568, %vm1792
        %vm1921 = vmand %vm1569, %vm1793
        %vm1922 = vmand %vm1570, %vm1794
        %vm1923 = vmand %vm1571, %vm1795
        %vm1924 = vmand %vm1572, %vm1796
        %vm1925 = vmand %vm1573, %vm1797
        %vm1926 = vmand %vm1574, %vm1798
        %vm1927 = vmand %vm1575, %vm1799
        %vm1928 = vmand %vm1576, %vm1800
        %vm1929 = vmand %vm1577, %vm1801
        %vm1930 = vmand %vm1578, %vm1802
        %vm1931 = vmand %vm1579, %vm1803
        %vm1932 = vmand %vm1580, %vm1804
        %vm1933 = vmand %vm1581, %vm1805
        %vm1934 = vmand %vm1582, %vm1806
        %vm1935 = vmand %vm1583, %vm1807
        %vm1936 = vmand %vm1584, %vm1808
        %vm1937 = vmand %vm1585, %vm1809
        %vm1938 = vmand %vm1586, %vm1810
        %vm1939 = vmand %vm1587, %vm1811
        %vm1940 = vmand %vm1588, %vm1812
        %vm1941 = vmand %vm1589, %vm1813
        %vm1942 = vmand %vm1590, %vm1814
        %vm1943 = vmand %vm1591, %vm1815
        %vm1944 = vmand %vm1592, %vm1816
        %vm1945 = vmand %vm1593, %vm1817
        %vm1946 = vmand %vm1594, %vm1818
        %vm1947 = vmand %vm1595, %vm1819
        %vm1948 = vmand %vm1596, %vm1820
        %vm1949 = vmand %vm1597, %vm1821
        %vm1950 = vmand %vm1598, %vm1822
        %vm1951 = vmand %vm1599, %vm1823
        %vm1952 = vmand %vm1600, %vm1824
        %vm1953 = vmand %vm1601, %vm1825
        %vm1954 = vmand %vm1602, %vm1826
        %vm1955 = vmand %vm1603, %vm1827
        %vm1956 = vmand %vm1604, %vm1828
        %vm1957 = vmand %vm1605, %vm1829
        %vm1958 = vmand %vm1606, %vm1830
        %vm1959 = vmand %vm1607, %vm1831
        %vm1960 = vmand %vm1608, %vm1832
        %vm1961 = vmand %vm1609, %vm1833
        %vm1962 = vmand %vm1610, %vm1834
        %vm1963 = vmand %vm1611, %vm1835
        %vm1964 = vmand %vm1612, %vm1836
        %vm1965 = vmand %vm1613, %vm1837
        %vm1966 = vmand %vm1614, %vm1838
        %vm1967 = vmand %vm1615, %vm1839
        %vm1968 = vmand %vm1616, %vm1840
        %vm1969 = vmand %vm1617, %vm1841
        %vm1970 = vmand %vm1618, %vm1842
        %vm1971 = vmand %vm1619, %vm1843
        %vm1972 = vmand %vm1620, %vm1844
        %vm1973 = vmand %vm1621, %vm1845
        %vm1974 = vmand %vm1622, %vm1846
        %vm1975 = vmand %vm1623, %vm1847
        %vm1976 = vmand %vm1624, %vm1848
        %vm1977 = vmand %vm1625, %vm1849
        %vm1978 = vmand %vm1626, %vm1850
        %vm1979 = vmand %vm1627, %vm1851
        %vm1980 = vmand %vm1628, %vm1852
        %vm1981 = vmand %vm1629, %vm1853
        %vm1982 = vmand %vm1630, %vm1854
        %vm1983 = vmand %vm1631, %vm1855
        %vm1984 = vmand %vm1632, %vm1856
        %vm1985 = vmand %vm1633, %vm1857
        %vm1986 = vmand %vm1634, %vm1858
        %vm1987 = vmand %vm1635, %vm1859
        %vm1988 = vmand %vm1636, %vm1860
        %vm1989 = vmand %vm1637, %vm1861
        %vm1990 = vmand %vm1638, %vm1862
        %vm1991 = vmand %vm1639, %vm1863
        %vm1992 = vmand %vm1640, %vm1864
        %vm1993 = vmand %vm1641, %vm1865
        %vm1994 = vmand %vm1642, %vm1866
        %vm1995 = vmand %vm1643, %vm1867
        %vm1996 = vmand %vm1644, %vm1868
        %vm1997 = vmand %vm1645, %vm1869
        %vm1998 = vmand %vm1646, %vm1870
        %vm1999 = vmand %vm1647, %vm1871
        %vm2000 = vmand %vm1648, %vm1872
        %vm2001 = vmand %vm1649, %vm1873
        %vm2002 = vmand %vm1650, %vm1874
        %vm2003 = vmand %vm1651, %vm1875
        %vm2004 = vmand %vm1652, %vm1876
        %vm2005 = vmand %vm1653, %vm1877
        %vm2006 = vmand %vm1654, %vm1878
        %vm2007 = vmand %vm1655, %vm1879
        %vm2008 = vmand %vm1656, %vm1880
        %vm2009 = vmand %vm1657, %vm1881
        %vm2010 = vmand %vm1658, %vm1882
        %vm2011 = vmand %vm1659, %vm1883
        %vm2012 = vmand %vm1660, %vm1884
        %vm2013 = vmand %vm1661, %vm1885
        %vm2014 = vmand %vm1662, %vm1886
        %vm2015 = vmand %vm1663, %vm1887
        %vm2016 = vmand %vm1664, %vm1888
        %vm2017 = vmand %vm1665, %vm1889
        %vm2018 = vmand %vm1666, %vm1890
        %vm2019 = vmand %vm1667, %vm1891
        %vm2020 = vmand %vm1668, %vm1892
        %vm2021 = vmand %vm1669, %vm1893
        %vm2022 = vmand %vm1670, %vm1894
        %v2023 = vsel %vm1895, %v1218, inf
        %v2024 = vsel %vm1896, %v1219, inf
        %v2025 = vsel %vm1897, %v1220, inf
        %v2026 = vsel %vm1898, %v1221, inf
        %v2027 = vsel %vm1899, %v1222, inf
        %v2028 = vsel %vm1900, %v1223, inf
        %v2029 = vsel %vm1901, %v1224, inf
        %v2030 = vsel %vm1902, %v1225, inf
        %v2031 = vsel %vm1903, %v1226, inf
        %v2032 = vsel %vm1904, %v1227, inf
        %v2033 = vsel %vm1905, %v1228, inf
        %v2034 = vsel %vm1906, %v1229, inf
        %v2035 = vsel %vm1907, %v1230, inf
        %v2036 = vsel %vm1908, %v1231, inf
        %v2037 = vsel %vm1909, %v1232, inf
        %v2038 = vsel %vm1910, %v1233, inf
        %v2039 = vsel %vm1911, %v1234, inf
        %v2040 = vsel %vm1912, %v1235, inf
        %v2041 = vsel %vm1913, %v1236, inf
        %v2042 = vsel %vm1914, %v1237, inf
        %v2043 = vsel %vm1915, %v1238, inf
        %v2044 = vsel %vm1916, %v1239, inf
        %v2045 = vsel %vm1917, %v1240, inf
        %v2046 = vsel %vm1918, %v1241, inf
        %v2047 = vsel %vm1919, %v1242, inf
        %v2048 = vsel %vm1920, %v1243, inf
        %v2049 = vsel %vm1921, %v1244, inf
        %v2050 = vsel %vm1922, %v1245, inf
        %v2051 = vsel %vm1923, %v1246, inf
        %v2052 = vsel %vm1924, %v1247, inf
        %v2053 = vsel %vm1925, %v1248, inf
        %v2054 = vsel %vm1926, %v1249, inf
        %v2055 = vsel %vm1927, %v1250, inf
        %v2056 = vsel %vm1928, %v1251, inf
        %v2057 = vsel %vm1929, %v1252, inf
        %v2058 = vsel %vm1930, %v1253, inf
        %v2059 = vsel %vm1931, %v1254, inf
        %v2060 = vsel %vm1932, %v1255, inf
        %v2061 = vsel %vm1933, %v1256, inf
        %v2062 = vsel %vm1934, %v1257, inf
        %v2063 = vsel %vm1935, %v1258, inf
        %v2064 = vsel %vm1936, %v1259, inf
        %v2065 = vsel %vm1937, %v1260, inf
        %v2066 = vsel %vm1938, %v1261, inf
        %v2067 = vsel %vm1939, %v1262, inf
        %v2068 = vsel %vm1940, %v1263, inf
        %v2069 = vsel %vm1941, %v1264, inf
        %v2070 = vsel %vm1942, %v1265, inf
        %v2071 = vsel %vm1943, %v1266, inf
        %v2072 = vsel %vm1944, %v1267, inf
        %v2073 = vsel %vm1945, %v1268, inf
        %v2074 = vsel %vm1946, %v1269, inf
        %v2075 = vsel %vm1947, %v1270, inf
        %v2076 = vsel %vm1948, %v1271, inf
        %v2077 = vsel %vm1949, %v1272, inf
        %v2078 = vsel %vm1950, %v1273, inf
        %v2079 = vsel %vm1951, %v1274, inf
        %v2080 = vsel %vm1952, %v1275, inf
        %v2081 = vsel %vm1953, %v1276, inf
        %v2082 = vsel %vm1954, %v1277, inf
        %v2083 = vsel %vm1955, %v1278, inf
        %v2084 = vsel %vm1956, %v1279, inf
        %v2085 = vsel %vm1957, %v1280, inf
        %v2086 = vsel %vm1958, %v1281, inf
        %v2087 = vsel %vm1959, %v1282, inf
        %v2088 = vsel %vm1960, %v1283, inf
        %v2089 = vsel %vm1961, %v1284, inf
        %v2090 = vsel %vm1962, %v1285, inf
        %v2091 = vsel %vm1963, %v1286, inf
        %v2092 = vsel %vm1964, %v1287, inf
        %v2093 = vsel %vm1965, %v1288, inf
        %v2094 = vsel %vm1966, %v1289, inf
        %v2095 = vsel %vm1967, %v1290, inf
        %v2096 = vsel %vm1968, %v1291, inf
        %v2097 = vsel %vm1969, %v1292, inf
        %v2098 = vsel %vm1970, %v1293, inf
        %v2099 = vsel %vm1971, %v1294, inf
        %v2100 = vsel %vm1972, %v1295, inf
        %v2101 = vsel %vm1973, %v1296, inf
        %v2102 = vsel %vm1974, %v1297, inf
        %v2103 = vsel %vm1975, %v1298, inf
        %v2104 = vsel %vm1976, %v1299, inf
        %v2105 = vsel %vm1977, %v1300, inf
        %v2106 = vsel %vm1978, %v1301, inf
        %v2107 = vsel %vm1979, %v1302, inf
        %v2108 = vsel %vm1980, %v1303, inf
        %v2109 = vsel %vm1981, %v1304, inf
        %v2110 = vsel %vm1982, %v1305, inf
        %v2111 = vsel %vm1983, %v1306, inf
        %v2112 = vsel %vm1984, %v1307, inf
        %v2113 = vsel %vm1985, %v1308, inf
        %v2114 = vsel %vm1986, %v1309, inf
        %v2115 = vsel %vm1987, %v1310, inf
        %v2116 = vsel %vm1988, %v1311, inf
        %v2117 = vsel %vm1989, %v1312, inf
        %v2118 = vsel %vm1990, %v1313, inf
        %v2119 = vsel %vm1991, %v1314, inf
        %v2120 = vsel %vm1992, %v1315, inf
        %v2121 = vsel %vm1993, %v1316, inf
        %v2122 = vsel %vm1994, %v1317, inf
        %v2123 = vsel %vm1995, %v1318, inf
        %v2124 = vsel %vm1996, %v1319, inf
        %v2125 = vsel %vm1997, %v1320, inf
        %v2126 = vsel %vm1998, %v1321, inf
        %v2127 = vsel %vm1999, %v1322, inf
        %v2128 = vsel %vm2000, %v1323, inf
        %v2129 = vsel %vm2001, %v1324, inf
        %v2130 = vsel %vm2002, %v1325, inf
        %v2131 = vsel %vm2003, %v1326, inf
        %v2132 = vsel %vm2004, %v1327, inf
        %v2133 = vsel %vm2005, %v1328, inf
        %v2134 = vsel %vm2006, %v1329, inf
        %v2135 = vsel %vm2007, %v1330, inf
        %v2136 = vsel %vm2008, %v1331, inf
        %v2137 = vsel %vm2009, %v1332, inf
        %v2138 = vsel %vm2010, %v1333, inf
        %v2139 = vsel %vm2011, %v1334, inf
        %v2140 = vsel %vm2012, %v1335, inf
        %v2141 = vsel %vm2013, %v1336, inf
        %v2142 = vsel %vm2014, %v1337, inf
        %v2143 = vsel %vm2015, %v1338, inf
        %v2144 = vsel %vm2016, %v1339, inf
        %v2145 = vsel %vm2017, %v1340, inf
        %v2146 = vsel %vm2018, %v1341, inf
        %v2147 = vsel %vm2019, %v1342, inf
        %v2148 = vsel %vm2020, %v1343, inf
        %v2149 = vsel %vm2021, %v1344, inf
        %v2150 = vsel %vm2022, %v1345, inf
        %v2151 = vmin.f32 %v2023, %v2024
        %v2152 = vmin.f32 %v2151, %v2025
        %v2153 = vmin.f32 %v2152, %v2026
        %2154 = vmin.xlane.f32.xlu0 %v2153
        %v2155 = vpop.xlane.xlu0 %2154
        %v2156 = vmin.f32 %v2027, %v2028
        %v2157 = vmin.f32 %v2156, %v2029
        %v2158 = vmin.f32 %v2157, %v2030
        %2159 = vmin.xlane.f32.xlu0 %v2158
        %v2160 = vpop.xlane.xlu0 %2159
        %v2161 = vmin.f32 %v2031, %v2032
        %v2162 = vmin.f32 %v2161, %v2033
        %v2163 = vmin.f32 %v2162, %v2034
        %2164 = vmin.xlane.f32.xlu0 %v2163
        %v2165 = vpop.xlane.xlu0 %2164
        %v2166 = vmin.f32 %v2035, %v2036
        %v2167 = vmin.f32 %v2166, %v2037
        %v2168 = vmin.f32 %v2167, %v2038
        %2169 = vmin.xlane.f32.xlu0 %v2168
        %v2170 = vpop.xlane.xlu0 %2169
        %v2171 = vmin.f32 %v2039, %v2040
        %v2172 = vmin.f32 %v2171, %v2041
        %v2173 = vmin.f32 %v2172, %v2042
        %2174 = vmin.xlane.f32.xlu0 %v2173
        %v2175 = vpop.xlane.xlu0 %2174
        %v2176 = vmin.f32 %v2043, %v2044
        %v2177 = vmin.f32 %v2176, %v2045
        %v2178 = vmin.f32 %v2177, %v2046
        %2179 = vmin.xlane.f32.xlu0 %v2178
        %v2180 = vpop.xlane.xlu0 %2179
        %v2181 = vmin.f32 %v2047, %v2048
        %v2182 = vmin.f32 %v2181, %v2049
        %v2183 = vmin.f32 %v2182, %v2050
        %2184 = vmin.xlane.f32.xlu0 %v2183
        %v2185 = vpop.xlane.xlu0 %2184
        %v2186 = vmin.f32 %v2051, %v2052
        %v2187 = vmin.f32 %v2186, %v2053
        %v2188 = vmin.f32 %v2187, %v2054
        %2189 = vmin.xlane.f32.xlu0 %v2188
        %v2190 = vpop.xlane.xlu0 %2189
        %v2191 = vmin.f32 %v2055, %v2056
        %v2192 = vmin.f32 %v2191, %v2057
        %v2193 = vmin.f32 %v2192, %v2058
        %2194 = vmin.xlane.f32.xlu0 %v2193
        %v2195 = vpop.xlane.xlu0 %2194
        %v2196 = vmin.f32 %v2059, %v2060
        %v2197 = vmin.f32 %v2196, %v2061
        %v2198 = vmin.f32 %v2197, %v2062
        %2199 = vmin.xlane.f32.xlu0 %v2198
        %v2200 = vpop.xlane.xlu0 %2199
        %v2201 = vmin.f32 %v2063, %v2064
        %v2202 = vmin.f32 %v2201, %v2065
        %v2203 = vmin.f32 %v2202, %v2066
        %2204 = vmin.xlane.f32.xlu0 %v2203
        %v2205 = vpop.xlane.xlu0 %2204
        %v2206 = vmin.f32 %v2067, %v2068
        %v2207 = vmin.f32 %v2206, %v2069
        %v2208 = vmin.f32 %v2207, %v2070
        %2209 = vmin.xlane.f32.xlu0 %v2208
        %v2210 = vpop.xlane.xlu0 %2209
        %v2211 = vmin.f32 %v2071, %v2072
        %v2212 = vmin.f32 %v2211, %v2073
        %v2213 = vmin.f32 %v2212, %v2074
        %2214 = vmin.xlane.f32.xlu0 %v2213
        %v2215 = vpop.xlane.xlu0 %2214
        %v2216 = vmin.f32 %v2075, %v2076
        %v2217 = vmin.f32 %v2216, %v2077
        %v2218 = vmin.f32 %v2217, %v2078
        %2219 = vmin.xlane.f32.xlu0 %v2218
        %v2220 = vpop.xlane.xlu0 %2219
        %v2221 = vmin.f32 %v2079, %v2080
        %v2222 = vmin.f32 %v2221, %v2081
        %v2223 = vmin.f32 %v2222, %v2082
        %2224 = vmin.xlane.f32.xlu0 %v2223
        %v2225 = vpop.xlane.xlu0 %2224
        %v2226 = vmin.f32 %v2083, %v2084
        %v2227 = vmin.f32 %v2226, %v2085
        %v2228 = vmin.f32 %v2227, %v2086
        %2229 = vmin.xlane.f32.xlu0 %v2228
        %v2230 = vpop.xlane.xlu0 %2229
        %v2231 = vmin.f32 %v2087, %v2088
        %v2232 = vmin.f32 %v2231, %v2089
        %v2233 = vmin.f32 %v2232, %v2090
        %2234 = vmin.xlane.f32.xlu0 %v2233
        %v2235 = vpop.xlane.xlu0 %2234
        %v2236 = vmin.f32 %v2091, %v2092
        %v2237 = vmin.f32 %v2236, %v2093
        %v2238 = vmin.f32 %v2237, %v2094
        %2239 = vmin.xlane.f32.xlu0 %v2238
        %v2240 = vpop.xlane.xlu0 %2239
        %v2241 = vmin.f32 %v2095, %v2096
        %v2242 = vmin.f32 %v2241, %v2097
        %v2243 = vmin.f32 %v2242, %v2098
        %2244 = vmin.xlane.f32.xlu0 %v2243
        %v2245 = vpop.xlane.xlu0 %2244
        %v2246 = vmin.f32 %v2099, %v2100
        %v2247 = vmin.f32 %v2246, %v2101
        %v2248 = vmin.f32 %v2247, %v2102
        %2249 = vmin.xlane.f32.xlu0 %v2248
        %v2250 = vpop.xlane.xlu0 %2249
        %v2251 = vmin.f32 %v2103, %v2104
        %v2252 = vmin.f32 %v2251, %v2105
        %v2253 = vmin.f32 %v2252, %v2106
        %2254 = vmin.xlane.f32.xlu0 %v2253
        %v2255 = vpop.xlane.xlu0 %2254
        %v2256 = vmin.f32 %v2107, %v2108
        %v2257 = vmin.f32 %v2256, %v2109
        %v2258 = vmin.f32 %v2257, %v2110
        %2259 = vmin.xlane.f32.xlu0 %v2258
        %v2260 = vpop.xlane.xlu0 %2259
        %v2261 = vmin.f32 %v2111, %v2112
        %v2262 = vmin.f32 %v2261, %v2113
        %v2263 = vmin.f32 %v2262, %v2114
        %2264 = vmin.xlane.f32.xlu0 %v2263
        %v2265 = vpop.xlane.xlu0 %2264
        %v2266 = vmin.f32 %v2115, %v2116
        %v2267 = vmin.f32 %v2266, %v2117
        %v2268 = vmin.f32 %v2267, %v2118
        %2269 = vmin.xlane.f32.xlu0 %v2268
        %v2270 = vpop.xlane.xlu0 %2269
        %v2271 = vmin.f32 %v2119, %v2120
        %v2272 = vmin.f32 %v2271, %v2121
        %v2273 = vmin.f32 %v2272, %v2122
        %2274 = vmin.xlane.f32.xlu0 %v2273
        %v2275 = vpop.xlane.xlu0 %2274
        %v2276 = vmin.f32 %v2123, %v2124
        %v2277 = vmin.f32 %v2276, %v2125
        %v2278 = vmin.f32 %v2277, %v2126
        %2279 = vmin.xlane.f32.xlu0 %v2278
        %v2280 = vpop.xlane.xlu0 %2279
        %v2281 = vmin.f32 %v2127, %v2128
        %v2282 = vmin.f32 %v2281, %v2129
        %v2283 = vmin.f32 %v2282, %v2130
        %2284 = vmin.xlane.f32.xlu0 %v2283
        %v2285 = vpop.xlane.xlu0 %2284
        %v2286 = vmin.f32 %v2131, %v2132
        %v2287 = vmin.f32 %v2286, %v2133
        %v2288 = vmin.f32 %v2287, %v2134
        %2289 = vmin.xlane.f32.xlu0 %v2288
        %v2290 = vpop.xlane.xlu0 %2289
        %v2291 = vmin.f32 %v2135, %v2136
        %v2292 = vmin.f32 %v2291, %v2137
        %v2293 = vmin.f32 %v2292, %v2138
        %2294 = vmin.xlane.f32.xlu0 %v2293
        %v2295 = vpop.xlane.xlu0 %2294
        %v2296 = vmin.f32 %v2139, %v2140
        %v2297 = vmin.f32 %v2296, %v2141
        %v2298 = vmin.f32 %v2297, %v2142
        %2299 = vmin.xlane.f32.xlu0 %v2298
        %v2300 = vpop.xlane.xlu0 %2299
        %v2301 = vmin.f32 %v2143, %v2144
        %v2302 = vmin.f32 %v2301, %v2145
        %v2303 = vmin.f32 %v2302, %v2146
        %2304 = vmin.xlane.f32.xlu0 %v2303
        %v2305 = vpop.xlane.xlu0 %2304
        %v2306 = vmin.f32 %v2147, %v2148
        %v2307 = vmin.f32 %v2306, %v2149
        %v2308 = vmin.f32 %v2307, %v2150
        %2309 = vmin.xlane.f32.xlu0 %v2308
        %v2310 = vpop.xlane.xlu0 %2309
        %vm2311 = vcmp.eq.f32.partialorder %v2023, %v2155
        %vm2312 = vcmp.eq.f32.partialorder %v2024, %v2155
        %vm2313 = vcmp.eq.f32.partialorder %v2025, %v2155
        %vm2314 = vcmp.eq.f32.partialorder %v2026, %v2155
        %vm2315 = vcmp.eq.f32.partialorder %v2027, %v2160
        %vm2316 = vcmp.eq.f32.partialorder %v2028, %v2160
        %vm2317 = vcmp.eq.f32.partialorder %v2029, %v2160
        %vm2318 = vcmp.eq.f32.partialorder %v2030, %v2160
        %vm2319 = vcmp.eq.f32.partialorder %v2031, %v2165
        %vm2320 = vcmp.eq.f32.partialorder %v2032, %v2165
        %vm2321 = vcmp.eq.f32.partialorder %v2033, %v2165
        %vm2322 = vcmp.eq.f32.partialorder %v2034, %v2165
        %vm2323 = vcmp.eq.f32.partialorder %v2035, %v2170
        %vm2324 = vcmp.eq.f32.partialorder %v2036, %v2170
        %vm2325 = vcmp.eq.f32.partialorder %v2037, %v2170
        %vm2326 = vcmp.eq.f32.partialorder %v2038, %v2170
        %vm2327 = vcmp.eq.f32.partialorder %v2039, %v2175
        %vm2328 = vcmp.eq.f32.partialorder %v2040, %v2175
        %vm2329 = vcmp.eq.f32.partialorder %v2041, %v2175
        %vm2330 = vcmp.eq.f32.partialorder %v2042, %v2175
        %vm2331 = vcmp.eq.f32.partialorder %v2043, %v2180
        %vm2332 = vcmp.eq.f32.partialorder %v2044, %v2180
        %vm2333 = vcmp.eq.f32.partialorder %v2045, %v2180
        %vm2334 = vcmp.eq.f32.partialorder %v2046, %v2180
        %vm2335 = vcmp.eq.f32.partialorder %v2047, %v2185
        %vm2336 = vcmp.eq.f32.partialorder %v2048, %v2185
        %vm2337 = vcmp.eq.f32.partialorder %v2049, %v2185
        %vm2338 = vcmp.eq.f32.partialorder %v2050, %v2185
        %vm2339 = vcmp.eq.f32.partialorder %v2051, %v2190
        %vm2340 = vcmp.eq.f32.partialorder %v2052, %v2190
        %vm2341 = vcmp.eq.f32.partialorder %v2053, %v2190
        %vm2342 = vcmp.eq.f32.partialorder %v2054, %v2190
        %vm2343 = vcmp.eq.f32.partialorder %v2055, %v2195
        %vm2344 = vcmp.eq.f32.partialorder %v2056, %v2195
        %vm2345 = vcmp.eq.f32.partialorder %v2057, %v2195
        %vm2346 = vcmp.eq.f32.partialorder %v2058, %v2195
        %vm2347 = vcmp.eq.f32.partialorder %v2059, %v2200
        %vm2348 = vcmp.eq.f32.partialorder %v2060, %v2200
        %vm2349 = vcmp.eq.f32.partialorder %v2061, %v2200
        %vm2350 = vcmp.eq.f32.partialorder %v2062, %v2200
        %vm2351 = vcmp.eq.f32.partialorder %v2063, %v2205
        %vm2352 = vcmp.eq.f32.partialorder %v2064, %v2205
        %vm2353 = vcmp.eq.f32.partialorder %v2065, %v2205
        %vm2354 = vcmp.eq.f32.partialorder %v2066, %v2205
        %vm2355 = vcmp.eq.f32.partialorder %v2067, %v2210
        %vm2356 = vcmp.eq.f32.partialorder %v2068, %v2210
        %vm2357 = vcmp.eq.f32.partialorder %v2069, %v2210
        %vm2358 = vcmp.eq.f32.partialorder %v2070, %v2210
        %vm2359 = vcmp.eq.f32.partialorder %v2071, %v2215
        %vm2360 = vcmp.eq.f32.partialorder %v2072, %v2215
        %vm2361 = vcmp.eq.f32.partialorder %v2073, %v2215
        %vm2362 = vcmp.eq.f32.partialorder %v2074, %v2215
        %vm2363 = vcmp.eq.f32.partialorder %v2075, %v2220
        %vm2364 = vcmp.eq.f32.partialorder %v2076, %v2220
        %vm2365 = vcmp.eq.f32.partialorder %v2077, %v2220
        %vm2366 = vcmp.eq.f32.partialorder %v2078, %v2220
        %vm2367 = vcmp.eq.f32.partialorder %v2079, %v2225
        %vm2368 = vcmp.eq.f32.partialorder %v2080, %v2225
        %vm2369 = vcmp.eq.f32.partialorder %v2081, %v2225
        %vm2370 = vcmp.eq.f32.partialorder %v2082, %v2225
        %vm2371 = vcmp.eq.f32.partialorder %v2083, %v2230
        %vm2372 = vcmp.eq.f32.partialorder %v2084, %v2230
        %vm2373 = vcmp.eq.f32.partialorder %v2085, %v2230
        %vm2374 = vcmp.eq.f32.partialorder %v2086, %v2230
        %vm2375 = vcmp.eq.f32.partialorder %v2087, %v2235
        %vm2376 = vcmp.eq.f32.partialorder %v2088, %v2235
        %vm2377 = vcmp.eq.f32.partialorder %v2089, %v2235
        %vm2378 = vcmp.eq.f32.partialorder %v2090, %v2235
        %vm2379 = vcmp.eq.f32.partialorder %v2091, %v2240
        %vm2380 = vcmp.eq.f32.partialorder %v2092, %v2240
        %vm2381 = vcmp.eq.f32.partialorder %v2093, %v2240
        %vm2382 = vcmp.eq.f32.partialorder %v2094, %v2240
        %vm2383 = vcmp.eq.f32.partialorder %v2095, %v2245
        %vm2384 = vcmp.eq.f32.partialorder %v2096, %v2245
        %vm2385 = vcmp.eq.f32.partialorder %v2097, %v2245
        %vm2386 = vcmp.eq.f32.partialorder %v2098, %v2245
        %vm2387 = vcmp.eq.f32.partialorder %v2099, %v2250
        %vm2388 = vcmp.eq.f32.partialorder %v2100, %v2250
        %vm2389 = vcmp.eq.f32.partialorder %v2101, %v2250
        %vm2390 = vcmp.eq.f32.partialorder %v2102, %v2250
        %vm2391 = vcmp.eq.f32.partialorder %v2103, %v2255
        %vm2392 = vcmp.eq.f32.partialorder %v2104, %v2255
        %vm2393 = vcmp.eq.f32.partialorder %v2105, %v2255
        %vm2394 = vcmp.eq.f32.partialorder %v2106, %v2255
        %vm2395 = vcmp.eq.f32.partialorder %v2107, %v2260
        %vm2396 = vcmp.eq.f32.partialorder %v2108, %v2260
        %vm2397 = vcmp.eq.f32.partialorder %v2109, %v2260
        %vm2398 = vcmp.eq.f32.partialorder %v2110, %v2260
        %vm2399 = vcmp.eq.f32.partialorder %v2111, %v2265
        %vm2400 = vcmp.eq.f32.partialorder %v2112, %v2265
        %vm2401 = vcmp.eq.f32.partialorder %v2113, %v2265
        %vm2402 = vcmp.eq.f32.partialorder %v2114, %v2265
        %vm2403 = vcmp.eq.f32.partialorder %v2115, %v2270
        %vm2404 = vcmp.eq.f32.partialorder %v2116, %v2270
        %vm2405 = vcmp.eq.f32.partialorder %v2117, %v2270
        %vm2406 = vcmp.eq.f32.partialorder %v2118, %v2270
        %vm2407 = vcmp.eq.f32.partialorder %v2119, %v2275
        %vm2408 = vcmp.eq.f32.partialorder %v2120, %v2275
        %vm2409 = vcmp.eq.f32.partialorder %v2121, %v2275
        %vm2410 = vcmp.eq.f32.partialorder %v2122, %v2275
        %vm2411 = vcmp.eq.f32.partialorder %v2123, %v2280
        %vm2412 = vcmp.eq.f32.partialorder %v2124, %v2280
        %vm2413 = vcmp.eq.f32.partialorder %v2125, %v2280
        %vm2414 = vcmp.eq.f32.partialorder %v2126, %v2280
        %vm2415 = vcmp.eq.f32.partialorder %v2127, %v2285
        %vm2416 = vcmp.eq.f32.partialorder %v2128, %v2285
        %vm2417 = vcmp.eq.f32.partialorder %v2129, %v2285
        %vm2418 = vcmp.eq.f32.partialorder %v2130, %v2285
        %vm2419 = vcmp.eq.f32.partialorder %v2131, %v2290
        %vm2420 = vcmp.eq.f32.partialorder %v2132, %v2290
        %vm2421 = vcmp.eq.f32.partialorder %v2133, %v2290
        %vm2422 = vcmp.eq.f32.partialorder %v2134, %v2290
        %vm2423 = vcmp.eq.f32.partialorder %v2135, %v2295
        %vm2424 = vcmp.eq.f32.partialorder %v2136, %v2295
        %vm2425 = vcmp.eq.f32.partialorder %v2137, %v2295
        %vm2426 = vcmp.eq.f32.partialorder %v2138, %v2295
        %vm2427 = vcmp.eq.f32.partialorder %v2139, %v2300
        %vm2428 = vcmp.eq.f32.partialorder %v2140, %v2300
        %vm2429 = vcmp.eq.f32.partialorder %v2141, %v2300
        %vm2430 = vcmp.eq.f32.partialorder %v2142, %v2300
        %vm2431 = vcmp.eq.f32.partialorder %v2143, %v2305
        %vm2432 = vcmp.eq.f32.partialorder %v2144, %v2305
        %vm2433 = vcmp.eq.f32.partialorder %v2145, %v2305
        %vm2434 = vcmp.eq.f32.partialorder %v2146, %v2305
        %vm2435 = vcmp.eq.f32.partialorder %v2147, %v2310
        %vm2436 = vcmp.eq.f32.partialorder %v2148, %v2310
        %vm2437 = vcmp.eq.f32.partialorder %v2149, %v2310
        %vm2438 = vcmp.eq.f32.partialorder %v2150, %v2310
        %v2439 = vsel %vm2311, 1, 0
        %v2440 = vsel %vm2312, 1, 0
        %v2441 = vsel %vm2313, 1, 0
        %v2442 = vsel %vm2314, 1, 0
        %v2443 = vsel %vm2315, 1, 0
        %v2444 = vsel %vm2316, 1, 0
        %v2445 = vsel %vm2317, 1, 0
        %v2446 = vsel %vm2318, 1, 0
        %v2447 = vsel %vm2319, 1, 0
        %v2448 = vsel %vm2320, 1, 0
        %v2449 = vsel %vm2321, 1, 0
        %v2450 = vsel %vm2322, 1, 0
        %v2451 = vsel %vm2323, 1, 0
        %v2452 = vsel %vm2324, 1, 0
        %v2453 = vsel %vm2325, 1, 0
        %v2454 = vsel %vm2326, 1, 0
        %v2455 = vsel %vm2327, 1, 0
        %v2456 = vsel %vm2328, 1, 0
        %v2457 = vsel %vm2329, 1, 0
        %v2458 = vsel %vm2330, 1, 0
        %v2459 = vsel %vm2331, 1, 0
        %v2460 = vsel %vm2332, 1, 0
        %v2461 = vsel %vm2333, 1, 0
        %v2462 = vsel %vm2334, 1, 0
        %v2463 = vsel %vm2335, 1, 0
        %v2464 = vsel %vm2336, 1, 0
        %v2465 = vsel %vm2337, 1, 0
        %v2466 = vsel %vm2338, 1, 0
        %v2467 = vsel %vm2339, 1, 0
        %v2468 = vsel %vm2340, 1, 0
        %v2469 = vsel %vm2341, 1, 0
        %v2470 = vsel %vm2342, 1, 0
        %v2471 = vsel %vm2343, 1, 0
        %v2472 = vsel %vm2344, 1, 0
        %v2473 = vsel %vm2345, 1, 0
        %v2474 = vsel %vm2346, 1, 0
        %v2475 = vsel %vm2347, 1, 0
        %v2476 = vsel %vm2348, 1, 0
        %v2477 = vsel %vm2349, 1, 0
        %v2478 = vsel %vm2350, 1, 0
        %v2479 = vsel %vm2351, 1, 0
        %v2480 = vsel %vm2352, 1, 0
        %v2481 = vsel %vm2353, 1, 0
        %v2482 = vsel %vm2354, 1, 0
        %v2483 = vsel %vm2355, 1, 0
        %v2484 = vsel %vm2356, 1, 0
        %v2485 = vsel %vm2357, 1, 0
        %v2486 = vsel %vm2358, 1, 0
        %v2487 = vsel %vm2359, 1, 0
        %v2488 = vsel %vm2360, 1, 0
        %v2489 = vsel %vm2361, 1, 0
        %v2490 = vsel %vm2362, 1, 0
        %v2491 = vsel %vm2363, 1, 0
        %v2492 = vsel %vm2364, 1, 0
        %v2493 = vsel %vm2365, 1, 0
        %v2494 = vsel %vm2366, 1, 0
        %v2495 = vsel %vm2367, 1, 0
        %v2496 = vsel %vm2368, 1, 0
        %v2497 = vsel %vm2369, 1, 0
        %v2498 = vsel %vm2370, 1, 0
        %v2499 = vsel %vm2371, 1, 0
        %v2500 = vsel %vm2372, 1, 0
        %v2501 = vsel %vm2373, 1, 0
        %v2502 = vsel %vm2374, 1, 0
        %v2503 = vsel %vm2375, 1, 0
        %v2504 = vsel %vm2376, 1, 0
        %v2505 = vsel %vm2377, 1, 0
        %v2506 = vsel %vm2378, 1, 0
        %v2507 = vsel %vm2379, 1, 0
        %v2508 = vsel %vm2380, 1, 0
        %v2509 = vsel %vm2381, 1, 0
        %v2510 = vsel %vm2382, 1, 0
        %v2511 = vsel %vm2383, 1, 0
        %v2512 = vsel %vm2384, 1, 0
        %v2513 = vsel %vm2385, 1, 0
        %v2514 = vsel %vm2386, 1, 0
        %v2515 = vsel %vm2387, 1, 0
        %v2516 = vsel %vm2388, 1, 0
        %v2517 = vsel %vm2389, 1, 0
        %v2518 = vsel %vm2390, 1, 0
        %v2519 = vsel %vm2391, 1, 0
        %v2520 = vsel %vm2392, 1, 0
        %v2521 = vsel %vm2393, 1, 0
        %v2522 = vsel %vm2394, 1, 0
        %v2523 = vsel %vm2395, 1, 0
        %v2524 = vsel %vm2396, 1, 0
        %v2525 = vsel %vm2397, 1, 0
        %v2526 = vsel %vm2398, 1, 0
        %v2527 = vsel %vm2399, 1, 0
        %v2528 = vsel %vm2400, 1, 0
        %v2529 = vsel %vm2401, 1, 0
        %v2530 = vsel %vm2402, 1, 0
        %v2531 = vsel %vm2403, 1, 0
        %v2532 = vsel %vm2404, 1, 0
        %v2533 = vsel %vm2405, 1, 0
        %v2534 = vsel %vm2406, 1, 0
        %v2535 = vsel %vm2407, 1, 0
        %v2536 = vsel %vm2408, 1, 0
        %v2537 = vsel %vm2409, 1, 0
        %v2538 = vsel %vm2410, 1, 0
        %v2539 = vsel %vm2411, 1, 0
        %v2540 = vsel %vm2412, 1, 0
        %v2541 = vsel %vm2413, 1, 0
        %v2542 = vsel %vm2414, 1, 0
        %v2543 = vsel %vm2415, 1, 0
        %v2544 = vsel %vm2416, 1, 0
        %v2545 = vsel %vm2417, 1, 0
        %v2546 = vsel %vm2418, 1, 0
        %v2547 = vsel %vm2419, 1, 0
        %v2548 = vsel %vm2420, 1, 0
        %v2549 = vsel %vm2421, 1, 0
        %v2550 = vsel %vm2422, 1, 0
        %v2551 = vsel %vm2423, 1, 0
        %v2552 = vsel %vm2424, 1, 0
        %v2553 = vsel %vm2425, 1, 0
        %v2554 = vsel %vm2426, 1, 0
        %v2555 = vsel %vm2427, 1, 0
        %v2556 = vsel %vm2428, 1, 0
        %v2557 = vsel %vm2429, 1, 0
        %v2558 = vsel %vm2430, 1, 0
        %v2559 = vsel %vm2431, 1, 0
        %v2560 = vsel %vm2432, 1, 0
        %v2561 = vsel %vm2433, 1, 0
        %v2562 = vsel %vm2434, 1, 0
        %v2563 = vsel %vm2435, 1, 0
        %v2564 = vsel %vm2436, 1, 0
        %v2565 = vsel %vm2437, 1, 0
        %v2566 = vsel %vm2438, 1, 0
        %v2567 = vcvt.s32.f32 %v2439
        %v2568 = vcvt.s32.f32 %v2440
        %v2569 = vcvt.s32.f32 %v2441
        %v2570 = vcvt.s32.f32 %v2442
        %v2571 = vcvt.s32.f32 %v2443
        %v2572 = vcvt.s32.f32 %v2444
        %v2573 = vcvt.s32.f32 %v2445
        %v2574 = vcvt.s32.f32 %v2446
        %v2575 = vcvt.s32.f32 %v2447
        %v2576 = vcvt.s32.f32 %v2448
        %v2577 = vcvt.s32.f32 %v2449
        %v2578 = vcvt.s32.f32 %v2450
        %v2579 = vcvt.s32.f32 %v2451
        %v2580 = vcvt.s32.f32 %v2452
        %v2581 = vcvt.s32.f32 %v2453
        %v2582 = vcvt.s32.f32 %v2454
        %v2583 = vcvt.s32.f32 %v2455
        %v2584 = vcvt.s32.f32 %v2456
        %v2585 = vcvt.s32.f32 %v2457
        %v2586 = vcvt.s32.f32 %v2458
        %v2587 = vcvt.s32.f32 %v2459
        %v2588 = vcvt.s32.f32 %v2460
        %v2589 = vcvt.s32.f32 %v2461
        %v2590 = vcvt.s32.f32 %v2462
        %v2591 = vcvt.s32.f32 %v2463
        %v2592 = vcvt.s32.f32 %v2464
        %v2593 = vcvt.s32.f32 %v2465
        %v2594 = vcvt.s32.f32 %v2466
        %v2595 = vcvt.s32.f32 %v2467
        %v2596 = vcvt.s32.f32 %v2468
        %v2597 = vcvt.s32.f32 %v2469
        %v2598 = vcvt.s32.f32 %v2470
        %v2599 = vcvt.s32.f32 %v2471
        %v2600 = vcvt.s32.f32 %v2472
        %v2601 = vcvt.s32.f32 %v2473
        %v2602 = vcvt.s32.f32 %v2474
        %v2603 = vcvt.s32.f32 %v2475
        %v2604 = vcvt.s32.f32 %v2476
        %v2605 = vcvt.s32.f32 %v2477
        %v2606 = vcvt.s32.f32 %v2478
        %v2607 = vcvt.s32.f32 %v2479
        %v2608 = vcvt.s32.f32 %v2480
        %v2609 = vcvt.s32.f32 %v2481
        %v2610 = vcvt.s32.f32 %v2482
        %v2611 = vcvt.s32.f32 %v2483
        %v2612 = vcvt.s32.f32 %v2484
        %v2613 = vcvt.s32.f32 %v2485
        %v2614 = vcvt.s32.f32 %v2486
        %v2615 = vcvt.s32.f32 %v2487
        %v2616 = vcvt.s32.f32 %v2488
        %v2617 = vcvt.s32.f32 %v2489
        %v2618 = vcvt.s32.f32 %v2490
        %v2619 = vcvt.s32.f32 %v2491
        %v2620 = vcvt.s32.f32 %v2492
        %v2621 = vcvt.s32.f32 %v2493
        %v2622 = vcvt.s32.f32 %v2494
        %v2623 = vcvt.s32.f32 %v2495
        %v2624 = vcvt.s32.f32 %v2496
        %v2625 = vcvt.s32.f32 %v2497
        %v2626 = vcvt.s32.f32 %v2498
        %v2627 = vcvt.s32.f32 %v2499
        %v2628 = vcvt.s32.f32 %v2500
        %v2629 = vcvt.s32.f32 %v2501
        %v2630 = vcvt.s32.f32 %v2502
        %v2631 = vcvt.s32.f32 %v2503
        %v2632 = vcvt.s32.f32 %v2504
        %v2633 = vcvt.s32.f32 %v2505
        %v2634 = vcvt.s32.f32 %v2506
        %v2635 = vcvt.s32.f32 %v2507
        %v2636 = vcvt.s32.f32 %v2508
        %v2637 = vcvt.s32.f32 %v2509
        %v2638 = vcvt.s32.f32 %v2510
        %v2639 = vcvt.s32.f32 %v2511
        %v2640 = vcvt.s32.f32 %v2512
        %v2641 = vcvt.s32.f32 %v2513
        %v2642 = vcvt.s32.f32 %v2514
        %v2643 = vcvt.s32.f32 %v2515
        %v2644 = vcvt.s32.f32 %v2516
        %v2645 = vcvt.s32.f32 %v2517
        %v2646 = vcvt.s32.f32 %v2518
        %v2647 = vcvt.s32.f32 %v2519
        %v2648 = vcvt.s32.f32 %v2520
        %v2649 = vcvt.s32.f32 %v2521
        %v2650 = vcvt.s32.f32 %v2522
        %v2651 = vcvt.s32.f32 %v2523
        %v2652 = vcvt.s32.f32 %v2524
        %v2653 = vcvt.s32.f32 %v2525
        %v2654 = vcvt.s32.f32 %v2526
        %v2655 = vcvt.s32.f32 %v2527
        %v2656 = vcvt.s32.f32 %v2528
        %v2657 = vcvt.s32.f32 %v2529
        %v2658 = vcvt.s32.f32 %v2530
        %v2659 = vcvt.s32.f32 %v2531
        %v2660 = vcvt.s32.f32 %v2532
        %v2661 = vcvt.s32.f32 %v2533
        %v2662 = vcvt.s32.f32 %v2534
        %v2663 = vcvt.s32.f32 %v2535
        %v2664 = vcvt.s32.f32 %v2536
        %v2665 = vcvt.s32.f32 %v2537
        %v2666 = vcvt.s32.f32 %v2538
        %v2667 = vcvt.s32.f32 %v2539
        %v2668 = vcvt.s32.f32 %v2540
        %v2669 = vcvt.s32.f32 %v2541
        %v2670 = vcvt.s32.f32 %v2542
        %v2671 = vcvt.s32.f32 %v2543
        %v2672 = vcvt.s32.f32 %v2544
        %v2673 = vcvt.s32.f32 %v2545
        %v2674 = vcvt.s32.f32 %v2546
        %v2675 = vcvt.s32.f32 %v2547
        %v2676 = vcvt.s32.f32 %v2548
        %v2677 = vcvt.s32.f32 %v2549
        %v2678 = vcvt.s32.f32 %v2550
        %v2679 = vcvt.s32.f32 %v2551
        %v2680 = vcvt.s32.f32 %v2552
        %v2681 = vcvt.s32.f32 %v2553
        %v2682 = vcvt.s32.f32 %v2554
        %v2683 = vcvt.s32.f32 %v2555
        %v2684 = vcvt.s32.f32 %v2556
        %v2685 = vcvt.s32.f32 %v2557
        %v2686 = vcvt.s32.f32 %v2558
        %v2687 = vcvt.s32.f32 %v2559
        %v2688 = vcvt.s32.f32 %v2560
        %v2689 = vcvt.s32.f32 %v2561
        %v2690 = vcvt.s32.f32 %v2562
        %v2691 = vcvt.s32.f32 %v2563
        %v2692 = vcvt.s32.f32 %v2564
        %v2693 = vcvt.s32.f32 %v2565
        %v2694 = vcvt.s32.f32 %v2566
        %2695 = vmatprep.subr.mxu0 0.0
        %2696 = vmatpush1.msra.mxu0 %v329
        %2697 = vmatprep.subr.mxu0 0.0
        %2698 = vmatpush1.msra.mxu0 %v330
        %2699 = vmatprep.subr.mxu0 0.0
        %2700 = vmatpush1.msra.mxu0 %v331
        %2701 = vmatprep.subr.mxu0 0.0
        %2702 = vmatpush1.msra.mxu0 %v332
        %2703 = vmatprep.subr.mxu0 0.0
        %2704 = vmatpush1.msra.mxu0 %v333
        %2705 = vmatprep.subr.mxu0 0.0
        %2706 = vmatpush1.msra.mxu0 %v334
        %2707 = vmatprep.subr.mxu0 0.0
        %2708 = vmatpush1.msra.mxu0 %v335
        %2709 = vmatprep.subr.mxu0 0.0
        %2710 = vmatpush1.msra.mxu0 %v336
        %2711 = vmatprep.subr.mxu0 0.0
        %2712 = vmatpush1.msra.mxu0 %v337
        %2713 = vmatprep.subr.mxu0 0.0
        %2714 = vmatpush1.msra.mxu0 %v338
        %2715 = vmatprep.subr.mxu0 0.0
        %2716 = vmatpush1.msra.mxu0 %v339
        %2717 = vmatprep.subr.mxu0 0.0
        %2718 = vmatpush1.msra.mxu0 %v340
        %2719 = vmatprep.subr.mxu0 0.0
        %2720 = vmatpush1.msra.mxu0 %v341
        %2721 = vmatprep.subr.mxu0 0.0
        %2722 = vmatpush1.msra.mxu0 %v342
        %2723 = vmatprep.subr.mxu0 0.0
        %2724 = vmatpush1.msra.mxu0 %v343
        %2725 = vmatprep.subr.mxu0 0.0
        %2726 = vmatpush1.msra.mxu0 %v344
        %2727 = vmatprep.subr.mxu0 0.0
        %2728 = vmatpush1.msra.mxu0 %v345
        %2729 = vmatprep.subr.mxu0 0.0
        %2730 = vmatpush1.msra.mxu0 %v346
        %2731 = vmatprep.subr.mxu0 0.0
        %2732 = vmatpush1.msra.mxu0 %v347
        %2733 = vmatprep.subr.mxu0 0.0
        %2734 = vmatpush1.msra.mxu0 %v348
        %2735 = vmatprep.subr.mxu0 0.0
        %2736 = vmatpush1.msra.mxu0 %v349
        %2737 = vmatprep.subr.mxu0 0.0
        %2738 = vmatpush1.msra.mxu0 %v350
        %2739 = vmatprep.subr.mxu0 0.0
        %2740 = vmatpush1.msra.mxu0 %v351
        %2741 = vmatprep.subr.mxu0 0.0
        %2742 = vmatpush1.msra.mxu0 %v352
        %2743 = vmatprep.subr.mxu0 0.0
        %2744 = vmatpush1.msra.mxu0 %v353
        %2745 = vmatprep.subr.mxu0 0.0
        %2746 = vmatpush1.msra.mxu0 %v354
        %2747 = vmatprep.subr.mxu0 0.0
        %2748 = vmatpush1.msra.mxu0 %v355
        %2749 = vmatprep.subr.mxu0 0.0
        %2750 = vmatpush1.msra.mxu0 %v356
        %2751 = vmatprep.subr.mxu0 0.0
        %2752 = vmatpush1.msra.mxu0 %v357
        %2753 = vmatprep.subr.mxu0 0.0
        %2754 = vmatpush1.msra.mxu0 %v358
        %2755 = vmatprep.subr.mxu0 0.0
        %2756 = vmatpush1.msra.mxu0 %v359
        %2757 = vmatprep.subr.mxu0 0.0
        %2758 = vmatpush1.msra.mxu0 %v360
        %2759 = vmatprep.mubr.f32.mxu0 %v2568
        %2760 = vmatmul.mubr.f32.gmra.mrb[0].mxu0 %v2567
        %v2761 = vpop.f32.mrb[0].mxu0
        %v2762 = vadd.f32 0.0, %v2761
        %v2763 = vpop.f32.mrb[0].mxu0
        %2764 = vmatprep.mubr.f32.mxu0 %v2572
        %2765 = vmatmul.mubr.f32.gmra.mrb[0].mxu0 %v2571
        %v2766 = vpop.f32.mrb[0].mxu0
        %v2767 = vadd.f32 0.0, %v2766
        %v2768 = vpop.f32.mrb[0].mxu0
        %2769 = vmatprep.mubr.f32.mxu0 %v2576
        %2770 = vmatmul.mubr.f32.gmra.mrb[0].mxu0 %v2575
        %v2771 = vpop.f32.mrb[0].mxu0
        %v2772 = vadd.f32 0.0, %v2771
        %v2773 = vpop.f32.mrb[0].mxu0
        %2774 = vmatprep.mubr.f32.mxu0 %v2580
        %2775 = vmatmul.mubr.f32.gmra.mrb[0].mxu0 %v2579
        %v2776 = vpop.f32.mrb[0].mxu0
        %v2777 = vadd.f32 0.0, %v2776
        %v2778 = vpop.f32.mrb[0].mxu0
        %2779 = vmatprep.mubr.f32.mxu0 %v2584
        %2780 = vmatmul.mubr.f32.gmra.mrb[0].mxu0 %v2583
        %v2781 = vpop.f32.mrb[0].mxu0
        %v2782 = vadd.f32 0.0, %v2781
        %v2783 = vpop.f32.mrb[0].mxu0
        %2784 = vmatprep.mubr.f32.mxu0 %v2588
        %2785 = vmatmul.mubr.f32.gmra.mrb[0].mxu0 %v2587
        %v2786 = vpop.f32.mrb[0].mxu0
        %v2787 = vadd.f32 0.0, %v2786
        %v2788 = vpop.f32.mrb[0].mxu0
        %2789 = vmatprep.mubr.f32.mxu0 %v2592
        %2790 = vmatmul.mubr.f32.gmra.mrb[0].mxu0 %v2591
        %v2791 = vpop.f32.mrb[0].mxu0
        %v2792 = vadd.f32 0.0, %v2791
        %v2793 = vpop.f32.mrb[0].mxu0
        %2794 = vmatprep.mubr.f32.mxu0 %v2596
        %2795 = vmatmul.mubr.f32.gmra.mrb[0].mxu0 %v2595
        %v2796 = vpop.f32.mrb[0].mxu0
        %v2797 = vadd.f32 0.0, %v2796
        %v2798 = vpop.f32.mrb[0].mxu0
        %2799 = vmatprep.mubr.f32.mxu0 %v2600
        %2800 = vmatmul.mubr.f32.gmra.mrb[0].mxu0 %v2599
        %v2801 = vpop.f32.mrb[0].mxu0
        %v2802 = vadd.f32 0.0, %v2801
        %v2803 = vpop.f32.mrb[0].mxu0
        %2804 = vmatprep.mubr.f32.mxu0 %v2604
        %2805 = vmatmul.mubr.f32.gmra.mrb[0].mxu0 %v2603
        %v2806 = vpop.f32.mrb[0].mxu0
        %v2807 = vadd.f32 0.0, %v2806
        %v2808 = vpop.f32.mrb[0].mxu0
        %2809 = vmatprep.mubr.f32.mxu0 %v2608
        %2810 = vmatmul.mubr.f32.gmra.mrb[0].mxu0 %v2607
        %v2811 = vpop.f32.mrb[0].mxu0
        %v2812 = vadd.f32 0.0, %v2811
        %v2813 = vpop.f32.mrb[0].mxu0
        %2814 = vmatprep.mubr.f32.mxu0 %v2612
        %2815 = vmatmul.mubr.f32.gmra.mrb[0].mxu0 %v2611
        %v2816 = vpop.f32.mrb[0].mxu0
        %v2817 = vadd.f32 0.0, %v2816
        %v2818 = vpop.f32.mrb[0].mxu0
        %2819 = vmatprep.mubr.f32.mxu0 %v2616
        %2820 = vmatmul.mubr.f32.gmra.mrb[0].mxu0 %v2615
        %v2821 = vpop.f32.mrb[0].mxu0
        %v2822 = vadd.f32 0.0, %v2821
        %v2823 = vpop.f32.mrb[0].mxu0
        %2824 = vmatprep.mubr.f32.mxu0 %v2620
        %2825 = vmatmul.mubr.f32.gmra.mrb[0].mxu0 %v2619
        %v2826 = vpop.f32.mrb[0].mxu0
        %v2827 = vadd.f32 0.0, %v2826
        %v2828 = vpop.f32.mrb[0].mxu0
        %2829 = vmatprep.mubr.f32.mxu0 %v2624
        %2830 = vmatmul.mubr.f32.gmra.mrb[0].mxu0 %v2623
        %v2831 = vpop.f32.mrb[0].mxu0
        %v2832 = vadd.f32 0.0, %v2831
        %v2833 = vpop.f32.mrb[0].mxu0
        %2834 = vmatprep.mubr.f32.mxu0 %v2628
        %2835 = vmatmul.mubr.f32.gmra.mrb[0].mxu0 %v2627
        %v2836 = vpop.f32.mrb[0].mxu0
        %v2837 = vadd.f32 0.0, %v2836
        %v2838 = vpop.f32.mrb[0].mxu0
        %2839 = vmatprep.mubr.f32.mxu0 %v2632
        %2840 = vmatmul.mubr.f32.gmra.mrb[0].mxu0 %v2631
        %v2841 = vpop.f32.mrb[0].mxu0
        %v2842 = vadd.f32 0.0, %v2841
        %v2843 = vpop.f32.mrb[0].mxu0
        %2844 = vmatprep.mubr.f32.mxu0 %v2636
        %2845 = vmatmul.mubr.f32.gmra.mrb[0].mxu0 %v2635
        %v2846 = vpop.f32.mrb[0].mxu0
        %v2847 = vadd.f32 0.0, %v2846
        %v2848 = vpop.f32.mrb[0].mxu0
        %2849 = vmatprep.mubr.f32.mxu0 %v2640
        %2850 = vmatmul.mubr.f32.gmra.mrb[0].mxu0 %v2639
        %v2851 = vpop.f32.mrb[0].mxu0
        %v2852 = vadd.f32 0.0, %v2851
        %v2853 = vpop.f32.mrb[0].mxu0
        %2854 = vmatprep.mubr.f32.mxu0 %v2644
        %2855 = vmatmul.mubr.f32.gmra.mrb[0].mxu0 %v2643
        %v2856 = vpop.f32.mrb[0].mxu0
        %v2857 = vadd.f32 0.0, %v2856
        %v2858 = vpop.f32.mrb[0].mxu0
        %2859 = vmatprep.mubr.f32.mxu0 %v2648
        %2860 = vmatmul.mubr.f32.gmra.mrb[0].mxu0 %v2647
        %v2861 = vpop.f32.mrb[0].mxu0
        %v2862 = vadd.f32 0.0, %v2861
        %v2863 = vpop.f32.mrb[0].mxu0
        %2864 = vmatprep.mubr.f32.mxu0 %v2652
        %2865 = vmatmul.mubr.f32.gmra.mrb[0].mxu0 %v2651
        %v2866 = vpop.f32.mrb[0].mxu0
        %v2867 = vadd.f32 0.0, %v2866
        %v2868 = vpop.f32.mrb[0].mxu0
        %2869 = vmatprep.mubr.f32.mxu0 %v2656
        %2870 = vmatmul.mubr.f32.gmra.mrb[0].mxu0 %v2655
        %v2871 = vpop.f32.mrb[0].mxu0
        %v2872 = vadd.f32 0.0, %v2871
        %v2873 = vpop.f32.mrb[0].mxu0
        %2874 = vmatprep.mubr.f32.mxu0 %v2660
        %2875 = vmatmul.mubr.f32.gmra.mrb[0].mxu0 %v2659
        %v2876 = vpop.f32.mrb[0].mxu0
        %v2877 = vadd.f32 0.0, %v2876
        %v2878 = vpop.f32.mrb[0].mxu0
        %2879 = vmatprep.mubr.f32.mxu0 %v2664
        %2880 = vmatmul.mubr.f32.gmra.mrb[0].mxu0 %v2663
        %v2881 = vpop.f32.mrb[0].mxu0
        %v2882 = vadd.f32 0.0, %v2881
        %v2883 = vpop.f32.mrb[0].mxu0
        %2884 = vmatprep.mubr.f32.mxu0 %v2668
        %2885 = vmatmul.mubr.f32.gmra.mrb[0].mxu0 %v2667
        %v2886 = vpop.f32.mrb[0].mxu0
        %v2887 = vadd.f32 0.0, %v2886
        %v2888 = vpop.f32.mrb[0].mxu0
        %2889 = vmatprep.mubr.f32.mxu0 %v2672
        %2890 = vmatmul.mubr.f32.gmra.mrb[0].mxu0 %v2671
        %v2891 = vpop.f32.mrb[0].mxu0
        %v2892 = vadd.f32 0.0, %v2891
        %v2893 = vpop.f32.mrb[0].mxu0
        %2894 = vmatprep.mubr.f32.mxu0 %v2676
        %2895 = vmatmul.mubr.f32.gmra.mrb[0].mxu0 %v2675
        %v2896 = vpop.f32.mrb[0].mxu0
        %v2897 = vadd.f32 0.0, %v2896
        %v2898 = vpop.f32.mrb[0].mxu0
        %2899 = vmatprep.mubr.f32.mxu0 %v2680
        %2900 = vmatmul.mubr.f32.gmra.mrb[0].mxu0 %v2679
        %v2901 = vpop.f32.mrb[0].mxu0
        %v2902 = vadd.f32 0.0, %v2901
        %v2903 = vpop.f32.mrb[0].mxu0
        %2904 = vmatprep.mubr.f32.mxu0 %v2684
        %2905 = vmatmul.mubr.f32.gmra.mrb[0].mxu0 %v2683
        %v2906 = vpop.f32.mrb[0].mxu0
        %v2907 = vadd.f32 0.0, %v2906
        %v2908 = vpop.f32.mrb[0].mxu0
        %2909 = vmatprep.mubr.f32.mxu0 %v2688
        %2910 = vmatmul.mubr.f32.gmra.mrb[0].mxu0 %v2687
        %v2911 = vpop.f32.mrb[0].mxu0
        %v2912 = vadd.f32 0.0, %v2911
        %v2913 = vpop.f32.mrb[0].mxu0
        %2914 = vmatprep.mubr.f32.mxu0 %v2692
        %2915 = vmatmul.mubr.f32.gmra.mrb[0].mxu0 %v2691
        %v2916 = vpop.f32.mrb[0].mxu0
        %v2917 = vadd.f32 0.0, %v2916
        %v2918 = vpop.f32.mrb[0].mxu0
        %2919 = vdwg.mxu0
        %2920 = vmatprep.subr.mxu0 0.0
        %2921 = vmatpush1.msra.mxu0 %v361
        %2922 = vmatprep.subr.mxu0 0.0
        %2923 = vmatpush1.msra.mxu0 %v362
        %2924 = vmatprep.subr.mxu0 0.0
        %2925 = vmatpush1.msra.mxu0 %v363
        %2926 = vmatprep.subr.mxu0 0.0
        %2927 = vmatpush1.msra.mxu0 %v364
        %2928 = vmatprep.subr.mxu0 0.0
        %2929 = vmatpush1.msra.mxu0 %v365
        %2930 = vmatprep.subr.mxu0 0.0
        %2931 = vmatpush1.msra.mxu0 %v366
        %2932 = vmatprep.subr.mxu0 0.0
        %2933 = vmatpush1.msra.mxu0 %v367
        %2934 = vmatprep.subr.mxu0 0.0
        %2935 = vmatpush1.msra.mxu0 %v368
        %2936 = vmatprep.subr.mxu0 0.0
        %2937 = vmatpush1.msra.mxu0 %v369
        %2938 = vmatprep.subr.mxu0 0.0
        %2939 = vmatpush1.msra.mxu0 %v370
        %2940 = vmatprep.subr.mxu0 0.0
        %2941 = vmatpush1.msra.mxu0 %v371
        %2942 = vmatprep.subr.mxu0 0.0
        %2943 = vmatpush1.msra.mxu0 %v372
        %2944 = vmatprep.subr.mxu0 0.0
        %2945 = vmatpush1.msra.mxu0 %v373
        %2946 = vmatprep.subr.mxu0 0.0
        %2947 = vmatpush1.msra.mxu0 %v374
        %2948 = vmatprep.subr.mxu0 0.0
        %2949 = vmatpush1.msra.mxu0 %v375
        %2950 = vmatprep.subr.mxu0 0.0
        %2951 = vmatpush1.msra.mxu0 %v376
        %2952 = vmatprep.subr.mxu0 0.0
        %2953 = vmatpush1.msra.mxu0 %v377
        %2954 = vmatprep.subr.mxu0 0.0
        %2955 = vmatpush1.msra.mxu0 %v378
        %2956 = vmatprep.subr.mxu0 0.0
        %2957 = vmatpush1.msra.mxu0 %v379
        %2958 = vmatprep.subr.mxu0 0.0
        %2959 = vmatpush1.msra.mxu0 %v380
        %2960 = vmatprep.subr.mxu0 0.0
        %2961 = vmatpush1.msra.mxu0 %v381
        %2962 = vmatprep.subr.mxu0 0.0
        %2963 = vmatpush1.msra.mxu0 %v382
        %2964 = vmatprep.subr.mxu0 0.0
        %2965 = vmatpush1.msra.mxu0 %v383
        %2966 = vmatprep.subr.mxu0 0.0
        %2967 = vmatpush1.msra.mxu0 %v384
        %2968 = vmatprep.subr.mxu0 0.0
        %2969 = vmatpush1.msra.mxu0 %v385
        %2970 = vmatprep.subr.mxu0 0.0
        %2971 = vmatpush1.msra.mxu0 %v386
        %2972 = vmatprep.subr.mxu0 0.0
        %2973 = vmatpush1.msra.mxu0 %v387
        %2974 = vmatprep.subr.mxu0 0.0
        %2975 = vmatpush1.msra.mxu0 %v388
        %2976 = vmatprep.subr.mxu0 0.0
        %2977 = vmatpush1.msra.mxu0 %v389
        %2978 = vmatprep.subr.mxu0 0.0
        %2979 = vmatpush1.msra.mxu0 %v390
        %2980 = vmatprep.subr.mxu0 0.0
        %2981 = vmatpush1.msra.mxu0 %v391
        %2982 = vmatprep.subr.mxu0 0.0
        %2983 = vmatpush1.msra.mxu0 %v392
        %2984 = vmatprep.mubr.f32.mxu0 %v2570
        %2985 = vmatmul.mubr.f32.gmra.mrb[0].mxu0 %v2569
        %v2986 = vpop.f32.mrb[0].mxu0
        %v2987 = vadd.f32 %v2762, %v2986
        %v2988 = vpop.f32.mrb[0].mxu0
        %2989 = vmatprep.mubr.f32.mxu0 %v2574
        %2990 = vmatmul.mubr.f32.gmra.mrb[0].mxu0 %v2573
        %v2991 = vpop.f32.mrb[0].mxu0
        %v2992 = vadd.f32 %v2767, %v2991
        %v2993 = vpop.f32.mrb[0].mxu0
        %2994 = vmatprep.mubr.f32.mxu0 %v2578
        %2995 = vmatmul.mubr.f32.gmra.mrb[0].mxu0 %v2577
        %v2996 = vpop.f32.mrb[0].mxu0
        %v2997 = vadd.f32 %v2772, %v2996
        %v2998 = vpop.f32.mrb[0].mxu0
        %2999 = vmatprep.mubr.f32.mxu0 %v2582
        %3000 = vmatmul.mubr.f32.gmra.mrb[0].mxu0 %v2581
        %v3001 = vpop.f32.mrb[0].mxu0
        %v3002 = vadd.f32 %v2777, %v3001
        %v3003 = vpop.f32.mrb[0].mxu0
        %3004 = vmatprep.mubr.f32.mxu0 %v2586
        %3005 = vmatmul.mubr.f32.gmra.mrb[0].mxu0 %v2585
        %v3006 = vpop.f32.mrb[0].mxu0
        %v3007 = vadd.f32 %v2782, %v3006
        %v3008 = vpop.f32.mrb[0].mxu0
        %3009 = vmatprep.mubr.f32.mxu0 %v2590
        %3010 = vmatmul.mubr.f32.gmra.mrb[0].mxu0 %v2589
        %v3011 = vpop.f32.mrb[0].mxu0
        %v3012 = vadd.f32 %v2787, %v3011
        %v3013 = vpop.f32.mrb[0].mxu0
        %3014 = vmatprep.mubr.f32.mxu0 %v2594
        %3015 = vmatmul.mubr.f32.gmra.mrb[0].mxu0 %v2593
        %v3016 = vpop.f32.mrb[0].mxu0
        %v3017 = vadd.f32 %v2792, %v3016
        %v3018 = vpop.f32.mrb[0].mxu0
        %3019 = vmatprep.mubr.f32.mxu0 %v2598
        %3020 = vmatmul.mubr.f32.gmra.mrb[0].mxu0 %v2597
        %v3021 = vpop.f32.mrb[0].mxu0
        %v3022 = vadd.f32 %v2797, %v3021
        %v3023 = vpop.f32.mrb[0].mxu0
        %3024 = vmatprep.mubr.f32.mxu0 %v2602
        %3025 = vmatmul.mubr.f32.gmra.mrb[0].mxu0 %v2601
        %v3026 = vpop.f32.mrb[0].mxu0
        %v3027 = vadd.f32 %v2802, %v3026
        %v3028 = vpop.f32.mrb[0].mxu0
        %3029 = vmatprep.mubr.f32.mxu0 %v2606
        %3030 = vmatmul.mubr.f32.gmra.mrb[0].mxu0 %v2605
        %v3031 = vpop.f32.mrb[0].mxu0
        %v3032 = vadd.f32 %v2807, %v3031
        %v3033 = vpop.f32.mrb[0].mxu0
        %3034 = vmatprep.mubr.f32.mxu0 %v2610
        %3035 = vmatmul.mubr.f32.gmra.mrb[0].mxu0 %v2609
        %v3036 = vpop.f32.mrb[0].mxu0
        %v3037 = vadd.f32 %v2812, %v3036
        %v3038 = vpop.f32.mrb[0].mxu0
        %3039 = vmatprep.mubr.f32.mxu0 %v2614
        %3040 = vmatmul.mubr.f32.gmra.mrb[0].mxu0 %v2613
        %v3041 = vpop.f32.mrb[0].mxu0
        %v3042 = vadd.f32 %v2817, %v3041
        %v3043 = vpop.f32.mrb[0].mxu0
        %3044 = vmatprep.mubr.f32.mxu0 %v2618
        %3045 = vmatmul.mubr.f32.gmra.mrb[0].mxu0 %v2617
        %v3046 = vpop.f32.mrb[0].mxu0
        %v3047 = vadd.f32 %v2822, %v3046
        %v3048 = vpop.f32.mrb[0].mxu0
        %3049 = vmatprep.mubr.f32.mxu0 %v2622
        %3050 = vmatmul.mubr.f32.gmra.mrb[0].mxu0 %v2621
        %v3051 = vpop.f32.mrb[0].mxu0
        %v3052 = vadd.f32 %v2827, %v3051
        %v3053 = vpop.f32.mrb[0].mxu0
        %3054 = vmatprep.mubr.f32.mxu0 %v2626
        %3055 = vmatmul.mubr.f32.gmra.mrb[0].mxu0 %v2625
        %v3056 = vpop.f32.mrb[0].mxu0
        %v3057 = vadd.f32 %v2832, %v3056
        %v3058 = vpop.f32.mrb[0].mxu0
        %3059 = vmatprep.mubr.f32.mxu0 %v2630
        %3060 = vmatmul.mubr.f32.gmra.mrb[0].mxu0 %v2629
        %v3061 = vpop.f32.mrb[0].mxu0
        %v3062 = vadd.f32 %v2837, %v3061
        %v3063 = vpop.f32.mrb[0].mxu0
        %3064 = vmatprep.mubr.f32.mxu0 %v2634
        %3065 = vmatmul.mubr.f32.gmra.mrb[0].mxu0 %v2633
        %v3066 = vpop.f32.mrb[0].mxu0
        %v3067 = vadd.f32 %v2842, %v3066
        %v3068 = vpop.f32.mrb[0].mxu0
        %3069 = vmatprep.mubr.f32.mxu0 %v2638
        %3070 = vmatmul.mubr.f32.gmra.mrb[0].mxu0 %v2637
        %v3071 = vpop.f32.mrb[0].mxu0
        %v3072 = vadd.f32 %v2847, %v3071
        %v3073 = vpop.f32.mrb[0].mxu0
        %3074 = vmatprep.mubr.f32.mxu0 %v2642
        %3075 = vmatmul.mubr.f32.gmra.mrb[0].mxu0 %v2641
        %v3076 = vpop.f32.mrb[0].mxu0
        %v3077 = vadd.f32 %v2852, %v3076
        %v3078 = vpop.f32.mrb[0].mxu0
        %3079 = vmatprep.mubr.f32.mxu0 %v2646
        %3080 = vmatmul.mubr.f32.gmra.mrb[0].mxu0 %v2645
        %v3081 = vpop.f32.mrb[0].mxu0
        %v3082 = vadd.f32 %v2857, %v3081
        %v3083 = vpop.f32.mrb[0].mxu0
        %3084 = vmatprep.mubr.f32.mxu0 %v2650
        %3085 = vmatmul.mubr.f32.gmra.mrb[0].mxu0 %v2649
        %v3086 = vpop.f32.mrb[0].mxu0
        %v3087 = vadd.f32 %v2862, %v3086
        %v3088 = vpop.f32.mrb[0].mxu0
        %3089 = vmatprep.mubr.f32.mxu0 %v2654
        %3090 = vmatmul.mubr.f32.gmra.mrb[0].mxu0 %v2653
        %v3091 = vpop.f32.mrb[0].mxu0
        %v3092 = vadd.f32 %v2867, %v3091
        %v3093 = vpop.f32.mrb[0].mxu0
        %3094 = vmatprep.mubr.f32.mxu0 %v2658
        %3095 = vmatmul.mubr.f32.gmra.mrb[0].mxu0 %v2657
        %v3096 = vpop.f32.mrb[0].mxu0
        %v3097 = vadd.f32 %v2872, %v3096
        %v3098 = vpop.f32.mrb[0].mxu0
        %3099 = vmatprep.mubr.f32.mxu0 %v2662
        %3100 = vmatmul.mubr.f32.gmra.mrb[0].mxu0 %v2661
        %v3101 = vpop.f32.mrb[0].mxu0
        %v3102 = vadd.f32 %v2877, %v3101
        %v3103 = vpop.f32.mrb[0].mxu0
        %3104 = vmatprep.mubr.f32.mxu0 %v2666
        %3105 = vmatmul.mubr.f32.gmra.mrb[0].mxu0 %v2665
        %v3106 = vpop.f32.mrb[0].mxu0
        %v3107 = vadd.f32 %v2882, %v3106
        %v3108 = vpop.f32.mrb[0].mxu0
        %3109 = vmatprep.mubr.f32.mxu0 %v2670
        %3110 = vmatmul.mubr.f32.gmra.mrb[0].mxu0 %v2669
        %v3111 = vpop.f32.mrb[0].mxu0
        %v3112 = vadd.f32 %v2887, %v3111
        %v3113 = vpop.f32.mrb[0].mxu0
        %3114 = vmatprep.mubr.f32.mxu0 %v2674
        %3115 = vmatmul.mubr.f32.gmra.mrb[0].mxu0 %v2673
        %v3116 = vpop.f32.mrb[0].mxu0
        %v3117 = vadd.f32 %v2892, %v3116
        %v3118 = vpop.f32.mrb[0].mxu0
        %3119 = vmatprep.mubr.f32.mxu0 %v2678
        %3120 = vmatmul.mubr.f32.gmra.mrb[0].mxu0 %v2677
        %v3121 = vpop.f32.mrb[0].mxu0
        %v3122 = vadd.f32 %v2897, %v3121
        %v3123 = vpop.f32.mrb[0].mxu0
        %3124 = vmatprep.mubr.f32.mxu0 %v2682
        %3125 = vmatmul.mubr.f32.gmra.mrb[0].mxu0 %v2681
        %v3126 = vpop.f32.mrb[0].mxu0
        %v3127 = vadd.f32 %v2902, %v3126
        %v3128 = vpop.f32.mrb[0].mxu0
        %3129 = vmatprep.mubr.f32.mxu0 %v2686
        %3130 = vmatmul.mubr.f32.gmra.mrb[0].mxu0 %v2685
        %v3131 = vpop.f32.mrb[0].mxu0
        %v3132 = vadd.f32 %v2907, %v3131
        %v3133 = vpop.f32.mrb[0].mxu0
        %3134 = vmatprep.mubr.f32.mxu0 %v2690
        %3135 = vmatmul.mubr.f32.gmra.mrb[0].mxu0 %v2689
        %v3136 = vpop.f32.mrb[0].mxu0
        %v3137 = vadd.f32 %v2912, %v3136
        %v3138 = vpop.f32.mrb[0].mxu0
        %3139 = vmatprep.mubr.f32.mxu0 %v2694
        %3140 = vmatmul.mubr.f32.gmra.mrb[0].mxu0 %v2693
        %v3141 = vpop.f32.mrb[0].mxu0
        %v3142 = vadd.f32 %v2917, %v3141
        %v3143 = vpop.f32.mrb[0].mxu0
        %3144 = vdwg.mxu0
        %3145 = vmatprep.subr.mxu0 0.0
        %3146 = vmatpush1.msra.mxu0 1.0
        %3147 = vmatprep.subr.mxu0 0.0
        %3148 = vmatpush1.msra.mxu0 1.0
        %3149 = vmatprep.subr.mxu0 0.0
        %3150 = vmatpush1.msra.mxu0 1.0
        %3151 = vmatprep.subr.mxu0 0.0
        %3152 = vmatpush1.msra.mxu0 1.0
        %3153 = vmatprep.subr.mxu0 0.0
        %3154 = vmatpush1.msra.mxu0 1.0
        %3155 = vmatprep.subr.mxu0 0.0
        %3156 = vmatpush1.msra.mxu0 1.0
        %3157 = vmatprep.subr.mxu0 0.0
        %3158 = vmatpush1.msra.mxu0 1.0
        %3159 = vmatprep.subr.mxu0 0.0
        %3160 = vmatpush1.msra.mxu0 1.0
        %3161 = vmatprep.subr.mxu0 0.0
        %3162 = vmatpush1.msra.mxu0 1.0
        %3163 = vmatprep.subr.mxu0 0.0
        %3164 = vmatpush1.msra.mxu0 1.0
        %3165 = vmatprep.subr.mxu0 0.0
        %3166 = vmatpush1.msra.mxu0 1.0
        %3167 = vmatprep.subr.mxu0 0.0
        %3168 = vmatpush1.msra.mxu0 1.0
        %3169 = vmatprep.subr.mxu0 0.0
        %3170 = vmatpush1.msra.mxu0 1.0
        %3171 = vmatprep.subr.mxu0 0.0
        %3172 = vmatpush1.msra.mxu0 1.0
        %3173 = vmatprep.subr.mxu0 0.0
        %3174 = vmatpush1.msra.mxu0 1.0
        %3175 = vmatprep.subr.mxu0 0.0
        %3176 = vmatpush1.msra.mxu0 1.0
        %3177 = vmatprep.subr.mxu0 0.0
        %3178 = vmatpush1.msra.mxu0 1.0
        %3179 = vmatprep.subr.mxu0 0.0
        %3180 = vmatpush1.msra.mxu0 1.0
        %3181 = vmatprep.subr.mxu0 0.0
        %3182 = vmatpush1.msra.mxu0 1.0
        %3183 = vmatprep.subr.mxu0 0.0
        %3184 = vmatpush1.msra.mxu0 1.0
        %3185 = vmatprep.subr.mxu0 0.0
        %3186 = vmatpush1.msra.mxu0 1.0
        %3187 = vmatprep.subr.mxu0 0.0
        %3188 = vmatpush1.msra.mxu0 1.0
        %3189 = vmatprep.subr.mxu0 0.0
        %3190 = vmatpush1.msra.mxu0 1.0
        %3191 = vmatprep.subr.mxu0 0.0
        %3192 = vmatpush1.msra.mxu0 1.0
        %3193 = vmatprep.subr.mxu0 0.0
        %3194 = vmatpush1.msra.mxu0 1.0
        %3195 = vmatprep.subr.mxu0 0.0
        %3196 = vmatpush1.msra.mxu0 1.0
        %3197 = vmatprep.subr.mxu0 0.0
        %3198 = vmatpush1.msra.mxu0 1.0
        %3199 = vmatprep.subr.mxu0 0.0
        %3200 = vmatpush1.msra.mxu0 1.0
        %3201 = vmatprep.subr.mxu0 0.0
        %3202 = vmatpush1.msra.mxu0 1.0
        %3203 = vmatprep.subr.mxu0 0.0
        %3204 = vmatpush1.msra.mxu0 1.0
        %3205 = vmatprep.subr.mxu0 0.0
        %3206 = vmatpush1.msra.mxu0 1.0
        %3207 = vmatprep.subr.mxu0 0.0
        %3208 = vmatpush1.msra.mxu0 1.0
        %3209 = vmatprep.mubr.f32.mxu0 %v2568
        %3210 = vmatmul.mubr.f32.gmra.mrb[0].mxu0 %v2567
        %v3211 = vpop.f32.mrb[0].mxu0
        %v3212 = vadd.f32 0.0, %v3211
        %v3213 = vpop.f32.mrb[0].mxu0
        %3214 = vmatprep.mubr.f32.mxu0 %v2572
        %3215 = vmatmul.mubr.f32.gmra.mrb[0].mxu0 %v2571
        %v3216 = vpop.f32.mrb[0].mxu0
        %v3217 = vadd.f32 0.0, %v3216
        %v3218 = vpop.f32.mrb[0].mxu0
        %3219 = vmatprep.mubr.f32.mxu0 %v2576
        %3220 = vmatmul.mubr.f32.gmra.mrb[0].mxu0 %v2575
        %v3221 = vpop.f32.mrb[0].mxu0
        %v3222 = vadd.f32 0.0, %v3221
        %v3223 = vpop.f32.mrb[0].mxu0
        %3224 = vmatprep.mubr.f32.mxu0 %v2580
        %3225 = vmatmul.mubr.f32.gmra.mrb[0].mxu0 %v2579
        %v3226 = vpop.f32.mrb[0].mxu0
        %v3227 = vadd.f32 0.0, %v3226
        %v3228 = vpop.f32.mrb[0].mxu0
        %3229 = vmatprep.mubr.f32.mxu0 %v2584
        %3230 = vmatmul.mubr.f32.gmra.mrb[0].mxu0 %v2583
        %v3231 = vpop.f32.mrb[0].mxu0
        %v3232 = vadd.f32 0.0, %v3231
        %v3233 = vpop.f32.mrb[0].mxu0
        %3234 = vmatprep.mubr.f32.mxu0 %v2588
        %3235 = vmatmul.mubr.f32.gmra.mrb[0].mxu0 %v2587
        %v3236 = vpop.f32.mrb[0].mxu0
        %v3237 = vadd.f32 0.0, %v3236
        %v3238 = vpop.f32.mrb[0].mxu0
        %3239 = vmatprep.mubr.f32.mxu0 %v2592
        %3240 = vmatmul.mubr.f32.gmra.mrb[0].mxu0 %v2591
        %v3241 = vpop.f32.mrb[0].mxu0
        %v3242 = vadd.f32 0.0, %v3241
        %v3243 = vpop.f32.mrb[0].mxu0
        %3244 = vmatprep.mubr.f32.mxu0 %v2596
        %3245 = vmatmul.mubr.f32.gmra.mrb[0].mxu0 %v2595
        %v3246 = vpop.f32.mrb[0].mxu0
        %v3247 = vadd.f32 0.0, %v3246
        %v3248 = vpop.f32.mrb[0].mxu0
        %3249 = vmatprep.mubr.f32.mxu0 %v2600
        %3250 = vmatmul.mubr.f32.gmra.mrb[0].mxu0 %v2599
        %v3251 = vpop.f32.mrb[0].mxu0
        %v3252 = vadd.f32 0.0, %v3251
        %v3253 = vpop.f32.mrb[0].mxu0
        %3254 = vmatprep.mubr.f32.mxu0 %v2604
        %3255 = vmatmul.mubr.f32.gmra.mrb[0].mxu0 %v2603
        %v3256 = vpop.f32.mrb[0].mxu0
        %v3257 = vadd.f32 0.0, %v3256
        %v3258 = vpop.f32.mrb[0].mxu0
        %3259 = vmatprep.mubr.f32.mxu0 %v2608
        %3260 = vmatmul.mubr.f32.gmra.mrb[0].mxu0 %v2607
        %v3261 = vpop.f32.mrb[0].mxu0
        %v3262 = vadd.f32 0.0, %v3261
        %v3263 = vpop.f32.mrb[0].mxu0
        %3264 = vmatprep.mubr.f32.mxu0 %v2612
        %3265 = vmatmul.mubr.f32.gmra.mrb[0].mxu0 %v2611
        %v3266 = vpop.f32.mrb[0].mxu0
        %v3267 = vadd.f32 0.0, %v3266
        %v3268 = vpop.f32.mrb[0].mxu0
        %3269 = vmatprep.mubr.f32.mxu0 %v2616
        %3270 = vmatmul.mubr.f32.gmra.mrb[0].mxu0 %v2615
        %v3271 = vpop.f32.mrb[0].mxu0
        %v3272 = vadd.f32 0.0, %v3271
        %v3273 = vpop.f32.mrb[0].mxu0
        %3274 = vmatprep.mubr.f32.mxu0 %v2620
        %3275 = vmatmul.mubr.f32.gmra.mrb[0].mxu0 %v2619
        %v3276 = vpop.f32.mrb[0].mxu0
        %v3277 = vadd.f32 0.0, %v3276
        %v3278 = vpop.f32.mrb[0].mxu0
        %3279 = vmatprep.mubr.f32.mxu0 %v2624
        %3280 = vmatmul.mubr.f32.gmra.mrb[0].mxu0 %v2623
        %v3281 = vpop.f32.mrb[0].mxu0
        %v3282 = vadd.f32 0.0, %v3281
        %v3283 = vpop.f32.mrb[0].mxu0
        %3284 = vmatprep.mubr.f32.mxu0 %v2628
        %3285 = vmatmul.mubr.f32.gmra.mrb[0].mxu0 %v2627
        %v3286 = vpop.f32.mrb[0].mxu0
        %v3287 = vadd.f32 0.0, %v3286
        %v3288 = vpop.f32.mrb[0].mxu0
        %3289 = vmatprep.mubr.f32.mxu0 %v2632
        %3290 = vmatmul.mubr.f32.gmra.mrb[0].mxu0 %v2631
        %v3291 = vpop.f32.mrb[0].mxu0
        %v3292 = vadd.f32 0.0, %v3291
        %v3293 = vpop.f32.mrb[0].mxu0
        %3294 = vmatprep.mubr.f32.mxu0 %v2636
        %3295 = vmatmul.mubr.f32.gmra.mrb[0].mxu0 %v2635
        %v3296 = vpop.f32.mrb[0].mxu0
        %v3297 = vadd.f32 0.0, %v3296
        %v3298 = vpop.f32.mrb[0].mxu0
        %3299 = vmatprep.mubr.f32.mxu0 %v2640
        %3300 = vmatmul.mubr.f32.gmra.mrb[0].mxu0 %v2639
        %v3301 = vpop.f32.mrb[0].mxu0
        %v3302 = vadd.f32 0.0, %v3301
        %v3303 = vpop.f32.mrb[0].mxu0
        %3304 = vmatprep.mubr.f32.mxu0 %v2644
        %3305 = vmatmul.mubr.f32.gmra.mrb[0].mxu0 %v2643
        %v3306 = vpop.f32.mrb[0].mxu0
        %v3307 = vadd.f32 0.0, %v3306
        %v3308 = vpop.f32.mrb[0].mxu0
        %3309 = vmatprep.mubr.f32.mxu0 %v2648
        %3310 = vmatmul.mubr.f32.gmra.mrb[0].mxu0 %v2647
        %v3311 = vpop.f32.mrb[0].mxu0
        %v3312 = vadd.f32 0.0, %v3311
        %v3313 = vpop.f32.mrb[0].mxu0
        %3314 = vmatprep.mubr.f32.mxu0 %v2652
        %3315 = vmatmul.mubr.f32.gmra.mrb[0].mxu0 %v2651
        %v3316 = vpop.f32.mrb[0].mxu0
        %v3317 = vadd.f32 0.0, %v3316
        %v3318 = vpop.f32.mrb[0].mxu0
        %3319 = vmatprep.mubr.f32.mxu0 %v2656
        %3320 = vmatmul.mubr.f32.gmra.mrb[0].mxu0 %v2655
        %v3321 = vpop.f32.mrb[0].mxu0
        %v3322 = vadd.f32 0.0, %v3321
        %v3323 = vpop.f32.mrb[0].mxu0
        %3324 = vmatprep.mubr.f32.mxu0 %v2660
        %3325 = vmatmul.mubr.f32.gmra.mrb[0].mxu0 %v2659
        %v3326 = vpop.f32.mrb[0].mxu0
        %v3327 = vadd.f32 0.0, %v3326
        %v3328 = vpop.f32.mrb[0].mxu0
        %3329 = vmatprep.mubr.f32.mxu0 %v2664
        %3330 = vmatmul.mubr.f32.gmra.mrb[0].mxu0 %v2663
        %v3331 = vpop.f32.mrb[0].mxu0
        %v3332 = vadd.f32 0.0, %v3331
        %v3333 = vpop.f32.mrb[0].mxu0
        %3334 = vmatprep.mubr.f32.mxu0 %v2668
        %3335 = vmatmul.mubr.f32.gmra.mrb[0].mxu0 %v2667
        %v3336 = vpop.f32.mrb[0].mxu0
        %v3337 = vadd.f32 0.0, %v3336
        %v3338 = vpop.f32.mrb[0].mxu0
        %3339 = vmatprep.mubr.f32.mxu0 %v2672
        %3340 = vmatmul.mubr.f32.gmra.mrb[0].mxu0 %v2671
        %v3341 = vpop.f32.mrb[0].mxu0
        %v3342 = vadd.f32 0.0, %v3341
        %v3343 = vpop.f32.mrb[0].mxu0
        %3344 = vmatprep.mubr.f32.mxu0 %v2676
        %3345 = vmatmul.mubr.f32.gmra.mrb[0].mxu0 %v2675
        %v3346 = vpop.f32.mrb[0].mxu0
        %v3347 = vadd.f32 0.0, %v3346
        %v3348 = vpop.f32.mrb[0].mxu0
        %3349 = vmatprep.mubr.f32.mxu0 %v2680
        %3350 = vmatmul.mubr.f32.gmra.mrb[0].mxu0 %v2679
        %v3351 = vpop.f32.mrb[0].mxu0
        %v3352 = vadd.f32 0.0, %v3351
        %v3353 = vpop.f32.mrb[0].mxu0
        %3354 = vmatprep.mubr.f32.mxu0 %v2684
        %3355 = vmatmul.mubr.f32.gmra.mrb[0].mxu0 %v2683
        %v3356 = vpop.f32.mrb[0].mxu0
        %v3357 = vadd.f32 0.0, %v3356
        %v3358 = vpop.f32.mrb[0].mxu0
        %3359 = vmatprep.mubr.f32.mxu0 %v2688
        %3360 = vmatmul.mubr.f32.gmra.mrb[0].mxu0 %v2687
        %v3361 = vpop.f32.mrb[0].mxu0
        %v3362 = vadd.f32 0.0, %v3361
        %v3363 = vpop.f32.mrb[0].mxu0
        %3364 = vmatprep.mubr.f32.mxu0 %v2692
        %3365 = vmatmul.mubr.f32.gmra.mrb[0].mxu0 %v2691
        %v3366 = vpop.f32.mrb[0].mxu0
        %v3367 = vadd.f32 0.0, %v3366
        %v3368 = vpop.f32.mrb[0].mxu0
        %3369 = vdwg.mxu0
        %3370 = vmatprep.subr.mxu0 0.0
        %3371 = vmatpush1.msra.mxu0 1.0
        %3372 = vmatprep.subr.mxu0 0.0
        %3373 = vmatpush1.msra.mxu0 1.0
        %3374 = vmatprep.subr.mxu0 0.0
        %3375 = vmatpush1.msra.mxu0 1.0
        %3376 = vmatprep.subr.mxu0 0.0
        %3377 = vmatpush1.msra.mxu0 1.0
        %3378 = vmatprep.subr.mxu0 0.0
        %3379 = vmatpush1.msra.mxu0 1.0
        %3380 = vmatprep.subr.mxu0 0.0
        %3381 = vmatpush1.msra.mxu0 1.0
        %3382 = vmatprep.subr.mxu0 0.0
        %3383 = vmatpush1.msra.mxu0 1.0
        %3384 = vmatprep.subr.mxu0 0.0
        %3385 = vmatpush1.msra.mxu0 1.0
        %3386 = vmatprep.subr.mxu0 0.0
        %3387 = vmatpush1.msra.mxu0 1.0
        %3388 = vmatprep.subr.mxu0 0.0
        %3389 = vmatpush1.msra.mxu0 1.0
        %3390 = vmatprep.subr.mxu0 0.0
        %3391 = vmatpush1.msra.mxu0 1.0
        %3392 = vmatprep.subr.mxu0 0.0
        %3393 = vmatpush1.msra.mxu0 1.0
        %3394 = vmatprep.subr.mxu0 0.0
        %3395 = vmatpush1.msra.mxu0 1.0
        %3396 = vmatprep.subr.mxu0 0.0
        %3397 = vmatpush1.msra.mxu0 1.0
        %3398 = vmatprep.subr.mxu0 0.0
        %3399 = vmatpush1.msra.mxu0 1.0
        %3400 = vmatprep.subr.mxu0 0.0
        %3401 = vmatpush1.msra.mxu0 1.0
        %3402 = vmatprep.subr.mxu0 0.0
        %3403 = vmatpush1.msra.mxu0 1.0
        %3404 = vmatprep.subr.mxu0 0.0
        %3405 = vmatpush1.msra.mxu0 1.0
        %3406 = vmatprep.subr.mxu0 0.0
        %3407 = vmatpush1.msra.mxu0 1.0
        %3408 = vmatprep.subr.mxu0 0.0
        %3409 = vmatpush1.msra.mxu0 1.0
        %3410 = vmatprep.subr.mxu0 0.0
        %3411 = vmatpush1.msra.mxu0 1.0
        %3412 = vmatprep.subr.mxu0 0.0
        %3413 = vmatpush1.msra.mxu0 1.0
        %3414 = vmatprep.subr.mxu0 0.0
        %3415 = vmatpush1.msra.mxu0 1.0
        %3416 = vmatprep.subr.mxu0 0.0
        %3417 = vmatpush1.msra.mxu0 1.0
        %3418 = vmatprep.subr.mxu0 0.0
        %3419 = vmatpush1.msra.mxu0 1.0
        %3420 = vmatprep.subr.mxu0 0.0
        %3421 = vmatpush1.msra.mxu0 1.0
        %3422 = vmatprep.subr.mxu0 0.0
        %3423 = vmatpush1.msra.mxu0 1.0
        %3424 = vmatprep.subr.mxu0 0.0
        %3425 = vmatpush1.msra.mxu0 1.0
        %3426 = vmatprep.subr.mxu0 0.0
        %3427 = vmatpush1.msra.mxu0 1.0
        %3428 = vmatprep.subr.mxu0 0.0
        %3429 = vmatpush1.msra.mxu0 1.0
        %3430 = vmatprep.subr.mxu0 0.0
        %3431 = vmatpush1.msra.mxu0 1.0
        %3432 = vmatprep.subr.mxu0 0.0
        %3433 = vmatpush1.msra.mxu0 1.0
        %3434 = vmatprep.mubr.f32.mxu0 %v2570
        %3435 = vmatmul.mubr.f32.gmra.mrb[0].mxu0 %v2569
        %v3436 = vpop.f32.mrb[0].mxu0
        %v3437 = vadd.f32 %v3212, %v3436
        %v3438 = vpop.f32.mrb[0].mxu0
        %3439 = vmatprep.mubr.f32.mxu0 %v2574
        %3440 = vmatmul.mubr.f32.gmra.mrb[0].mxu0 %v2573
        %v3441 = vpop.f32.mrb[0].mxu0
        %v3442 = vadd.f32 %v3217, %v3441
        %v3443 = vpop.f32.mrb[0].mxu0
        %3444 = vmatprep.mubr.f32.mxu0 %v2578
        %3445 = vmatmul.mubr.f32.gmra.mrb[0].mxu0 %v2577
        %v3446 = vpop.f32.mrb[0].mxu0
        %v3447 = vadd.f32 %v3222, %v3446
        %v3448 = vpop.f32.mrb[0].mxu0
        %3449 = vmatprep.mubr.f32.mxu0 %v2582
        %3450 = vmatmul.mubr.f32.gmra.mrb[0].mxu0 %v2581
        %v3451 = vpop.f32.mrb[0].mxu0
        %v3452 = vadd.f32 %v3227, %v3451
        %v3453 = vpop.f32.mrb[0].mxu0
        %3454 = vmatprep.mubr.f32.mxu0 %v2586
        %3455 = vmatmul.mubr.f32.gmra.mrb[0].mxu0 %v2585
        %v3456 = vpop.f32.mrb[0].mxu0
        %v3457 = vadd.f32 %v3232, %v3456
        %v3458 = vpop.f32.mrb[0].mxu0
        %3459 = vmatprep.mubr.f32.mxu0 %v2590
        %3460 = vmatmul.mubr.f32.gmra.mrb[0].mxu0 %v2589
        %v3461 = vpop.f32.mrb[0].mxu0
        %v3462 = vadd.f32 %v3237, %v3461
        %v3463 = vpop.f32.mrb[0].mxu0
        %3464 = vmatprep.mubr.f32.mxu0 %v2594
        %3465 = vmatmul.mubr.f32.gmra.mrb[0].mxu0 %v2593
        %v3466 = vpop.f32.mrb[0].mxu0
        %v3467 = vadd.f32 %v3242, %v3466
        %v3468 = vpop.f32.mrb[0].mxu0
        %3469 = vmatprep.mubr.f32.mxu0 %v2598
        %3470 = vmatmul.mubr.f32.gmra.mrb[0].mxu0 %v2597
        %v3471 = vpop.f32.mrb[0].mxu0
        %v3472 = vadd.f32 %v3247, %v3471
        %v3473 = vpop.f32.mrb[0].mxu0
        %3474 = vmatprep.mubr.f32.mxu0 %v2602
        %3475 = vmatmul.mubr.f32.gmra.mrb[0].mxu0 %v2601
        %v3476 = vpop.f32.mrb[0].mxu0
        %v3477 = vadd.f32 %v3252, %v3476
        %v3478 = vpop.f32.mrb[0].mxu0
        %3479 = vmatprep.mubr.f32.mxu0 %v2606
        %3480 = vmatmul.mubr.f32.gmra.mrb[0].mxu0 %v2605
        %v3481 = vpop.f32.mrb[0].mxu0
        %v3482 = vadd.f32 %v3257, %v3481
        %v3483 = vpop.f32.mrb[0].mxu0
        %3484 = vmatprep.mubr.f32.mxu0 %v2610
        %3485 = vmatmul.mubr.f32.gmra.mrb[0].mxu0 %v2609
        %v3486 = vpop.f32.mrb[0].mxu0
        %v3487 = vadd.f32 %v3262, %v3486
        %v3488 = vpop.f32.mrb[0].mxu0
        %3489 = vmatprep.mubr.f32.mxu0 %v2614
        %3490 = vmatmul.mubr.f32.gmra.mrb[0].mxu0 %v2613
        %v3491 = vpop.f32.mrb[0].mxu0
        %v3492 = vadd.f32 %v3267, %v3491
        %v3493 = vpop.f32.mrb[0].mxu0
        %3494 = vmatprep.mubr.f32.mxu0 %v2618
        %3495 = vmatmul.mubr.f32.gmra.mrb[0].mxu0 %v2617
        %v3496 = vpop.f32.mrb[0].mxu0
        %v3497 = vadd.f32 %v3272, %v3496
        %v3498 = vpop.f32.mrb[0].mxu0
        %3499 = vmatprep.mubr.f32.mxu0 %v2622
        %3500 = vmatmul.mubr.f32.gmra.mrb[0].mxu0 %v2621
        %v3501 = vpop.f32.mrb[0].mxu0
        %v3502 = vadd.f32 %v3277, %v3501
        %v3503 = vpop.f32.mrb[0].mxu0
        %3504 = vmatprep.mubr.f32.mxu0 %v2626
        %3505 = vmatmul.mubr.f32.gmra.mrb[0].mxu0 %v2625
        %v3506 = vpop.f32.mrb[0].mxu0
        %v3507 = vadd.f32 %v3282, %v3506
        %v3508 = vpop.f32.mrb[0].mxu0
        %3509 = vmatprep.mubr.f32.mxu0 %v2630
        %3510 = vmatmul.mubr.f32.gmra.mrb[0].mxu0 %v2629
        %v3511 = vpop.f32.mrb[0].mxu0
        %v3512 = vadd.f32 %v3287, %v3511
        %v3513 = vpop.f32.mrb[0].mxu0
        %3514 = vmatprep.mubr.f32.mxu0 %v2634
        %3515 = vmatmul.mubr.f32.gmra.mrb[0].mxu0 %v2633
        %v3516 = vpop.f32.mrb[0].mxu0
        %v3517 = vadd.f32 %v3292, %v3516
        %v3518 = vpop.f32.mrb[0].mxu0
        %3519 = vmatprep.mubr.f32.mxu0 %v2638
        %3520 = vmatmul.mubr.f32.gmra.mrb[0].mxu0 %v2637
        %v3521 = vpop.f32.mrb[0].mxu0
        %v3522 = vadd.f32 %v3297, %v3521
        %v3523 = vpop.f32.mrb[0].mxu0
        %3524 = vmatprep.mubr.f32.mxu0 %v2642
        %3525 = vmatmul.mubr.f32.gmra.mrb[0].mxu0 %v2641
        %v3526 = vpop.f32.mrb[0].mxu0
        %v3527 = vadd.f32 %v3302, %v3526
        %v3528 = vpop.f32.mrb[0].mxu0
        %3529 = vmatprep.mubr.f32.mxu0 %v2646
        %3530 = vmatmul.mubr.f32.gmra.mrb[0].mxu0 %v2645
        %v3531 = vpop.f32.mrb[0].mxu0
        %v3532 = vadd.f32 %v3307, %v3531
        %v3533 = vpop.f32.mrb[0].mxu0
        %3534 = vmatprep.mubr.f32.mxu0 %v2650
        %3535 = vmatmul.mubr.f32.gmra.mrb[0].mxu0 %v2649
        %v3536 = vpop.f32.mrb[0].mxu0
        %v3537 = vadd.f32 %v3312, %v3536
        %v3538 = vpop.f32.mrb[0].mxu0
        %3539 = vmatprep.mubr.f32.mxu0 %v2654
        %3540 = vmatmul.mubr.f32.gmra.mrb[0].mxu0 %v2653
        %v3541 = vpop.f32.mrb[0].mxu0
        %v3542 = vadd.f32 %v3317, %v3541
        %v3543 = vpop.f32.mrb[0].mxu0
        %3544 = vmatprep.mubr.f32.mxu0 %v2658
        %3545 = vmatmul.mubr.f32.gmra.mrb[0].mxu0 %v2657
        %v3546 = vpop.f32.mrb[0].mxu0
        %v3547 = vadd.f32 %v3322, %v3546
        %v3548 = vpop.f32.mrb[0].mxu0
        %3549 = vmatprep.mubr.f32.mxu0 %v2662
        %3550 = vmatmul.mubr.f32.gmra.mrb[0].mxu0 %v2661
        %v3551 = vpop.f32.mrb[0].mxu0
        %v3552 = vadd.f32 %v3327, %v3551
        %v3553 = vpop.f32.mrb[0].mxu0
        %3554 = vmatprep.mubr.f32.mxu0 %v2666
        %3555 = vmatmul.mubr.f32.gmra.mrb[0].mxu0 %v2665
        %v3556 = vpop.f32.mrb[0].mxu0
        %v3557 = vadd.f32 %v3332, %v3556
        %v3558 = vpop.f32.mrb[0].mxu0
        %3559 = vmatprep.mubr.f32.mxu0 %v2670
        %3560 = vmatmul.mubr.f32.gmra.mrb[0].mxu0 %v2669
        %v3561 = vpop.f32.mrb[0].mxu0
        %v3562 = vadd.f32 %v3337, %v3561
        %v3563 = vpop.f32.mrb[0].mxu0
        %3564 = vmatprep.mubr.f32.mxu0 %v2674
        %3565 = vmatmul.mubr.f32.gmra.mrb[0].mxu0 %v2673
        %v3566 = vpop.f32.mrb[0].mxu0
        %v3567 = vadd.f32 %v3342, %v3566
        %v3568 = vpop.f32.mrb[0].mxu0
        %3569 = vmatprep.mubr.f32.mxu0 %v2678
        %3570 = vmatmul.mubr.f32.gmra.mrb[0].mxu0 %v2677
        %v3571 = vpop.f32.mrb[0].mxu0
        %v3572 = vadd.f32 %v3347, %v3571
        %v3573 = vpop.f32.mrb[0].mxu0
        %3574 = vmatprep.mubr.f32.mxu0 %v2682
        %3575 = vmatmul.mubr.f32.gmra.mrb[0].mxu0 %v2681
        %v3576 = vpop.f32.mrb[0].mxu0
        %v3577 = vadd.f32 %v3352, %v3576
        %v3578 = vpop.f32.mrb[0].mxu0
        %3579 = vmatprep.mubr.f32.mxu0 %v2686
        %3580 = vmatmul.mubr.f32.gmra.mrb[0].mxu0 %v2685
        %v3581 = vpop.f32.mrb[0].mxu0
        %v3582 = vadd.f32 %v3357, %v3581
        %v3583 = vpop.f32.mrb[0].mxu0
        %3584 = vmatprep.mubr.f32.mxu0 %v2690
        %3585 = vmatmul.mubr.f32.gmra.mrb[0].mxu0 %v2689
        %v3586 = vpop.f32.mrb[0].mxu0
        %v3587 = vadd.f32 %v3362, %v3586
        %v3588 = vpop.f32.mrb[0].mxu0
        %3589 = vmatprep.mubr.f32.mxu0 %v2694
        %3590 = vmatmul.mubr.f32.gmra.mrb[0].mxu0 %v2693
        %v3591 = vpop.f32.mrb[0].mxu0
        %v3592 = vadd.f32 %v3367, %v3591
        %v3593 = vpop.f32.mrb[0].mxu0
        %3594 = vdwg.mxu0
        %3596 = vset.pattern.permute.xlu0 0
        %3597 = vperm.xlu0 %3596, %v3437
        %v3598 = vpop.permute.xlu0 %3597
        %3601 = vset.pattern.permute.xlu0 0
        %3602 = vperm.xlu0 %3601, %v3442
        %v3603 = vpop.permute.xlu0 %3602
        %3606 = vset.pattern.permute.xlu0 0
        %3607 = vperm.xlu0 %3606, %v3447
        %v3608 = vpop.permute.xlu0 %3607
        %3611 = vset.pattern.permute.xlu0 0
        %3612 = vperm.xlu0 %3611, %v3452
        %v3613 = vpop.permute.xlu0 %3612
        %3616 = vset.pattern.permute.xlu0 0
        %3617 = vperm.xlu0 %3616, %v3457
        %v3618 = vpop.permute.xlu0 %3617
        %3621 = vset.pattern.permute.xlu0 0
        %3622 = vperm.xlu0 %3621, %v3462
        %v3623 = vpop.permute.xlu0 %3622
        %3626 = vset.pattern.permute.xlu0 0
        %3627 = vperm.xlu0 %3626, %v3467
        %v3628 = vpop.permute.xlu0 %3627
        %3631 = vset.pattern.permute.xlu0 0
        %3632 = vperm.xlu0 %3631, %v3472
        %v3633 = vpop.permute.xlu0 %3632
        %3636 = vset.pattern.permute.xlu0 0
        %3637 = vperm.xlu0 %3636, %v3477
        %v3638 = vpop.permute.xlu0 %3637
        %3641 = vset.pattern.permute.xlu0 0
        %3642 = vperm.xlu0 %3641, %v3482
        %v3643 = vpop.permute.xlu0 %3642
        %3646 = vset.pattern.permute.xlu0 0
        %3647 = vperm.xlu0 %3646, %v3487
        %v3648 = vpop.permute.xlu0 %3647
        %3651 = vset.pattern.permute.xlu0 0
        %3652 = vperm.xlu0 %3651, %v3492
        %v3653 = vpop.permute.xlu0 %3652
        %3656 = vset.pattern.permute.xlu0 0
        %3657 = vperm.xlu0 %3656, %v3497
        %v3658 = vpop.permute.xlu0 %3657
        %3661 = vset.pattern.permute.xlu0 0
        %3662 = vperm.xlu0 %3661, %v3502
        %v3663 = vpop.permute.xlu0 %3662
        %3666 = vset.pattern.permute.xlu0 0
        %3667 = vperm.xlu0 %3666, %v3507
        %v3668 = vpop.permute.xlu0 %3667
        %3671 = vset.pattern.permute.xlu0 0
        %3672 = vperm.xlu0 %3671, %v3512
        %v3673 = vpop.permute.xlu0 %3672
        %3676 = vset.pattern.permute.xlu0 0
        %3677 = vperm.xlu0 %3676, %v3517
        %v3678 = vpop.permute.xlu0 %3677
        %3681 = vset.pattern.permute.xlu0 0
        %3682 = vperm.xlu0 %3681, %v3522
        %v3683 = vpop.permute.xlu0 %3682
        %3686 = vset.pattern.permute.xlu0 0
        %3687 = vperm.xlu0 %3686, %v3527
        %v3688 = vpop.permute.xlu0 %3687
        %3691 = vset.pattern.permute.xlu0 0
        %3692 = vperm.xlu0 %3691, %v3532
        %v3693 = vpop.permute.xlu0 %3692
        %3696 = vset.pattern.permute.xlu0 0
        %3697 = vperm.xlu0 %3696, %v3537
        %v3698 = vpop.permute.xlu0 %3697
        %3701 = vset.pattern.permute.xlu0 0
        %3702 = vperm.xlu0 %3701, %v3542
        %v3703 = vpop.permute.xlu0 %3702
        %3706 = vset.pattern.permute.xlu0 0
        %3707 = vperm.xlu0 %3706, %v3547
        %v3708 = vpop.permute.xlu0 %3707
        %3711 = vset.pattern.permute.xlu0 0
        %3712 = vperm.xlu0 %3711, %v3552
        %v3713 = vpop.permute.xlu0 %3712
        %3716 = vset.pattern.permute.xlu0 0
        %3717 = vperm.xlu0 %3716, %v3557
        %v3718 = vpop.permute.xlu0 %3717
        %3721 = vset.pattern.permute.xlu0 0
        %3722 = vperm.xlu0 %3721, %v3562
        %v3723 = vpop.permute.xlu0 %3722
        %3726 = vset.pattern.permute.xlu0 0
        %3727 = vperm.xlu0 %3726, %v3567
        %v3728 = vpop.permute.xlu0 %3727
        %3731 = vset.pattern.permute.xlu0 0
        %3732 = vperm.xlu0 %3731, %v3572
        %v3733 = vpop.permute.xlu0 %3732
        %3736 = vset.pattern.permute.xlu0 0
        %3737 = vperm.xlu0 %3736, %v3577
        %v3738 = vpop.permute.xlu0 %3737
        %3741 = vset.pattern.permute.xlu0 0
        %3742 = vperm.xlu0 %3741, %v3582
        %v3743 = vpop.permute.xlu0 %3742
        %3746 = vset.pattern.permute.xlu0 0
        %3747 = vperm.xlu0 %3746, %v3587
        %v3748 = vpop.permute.xlu0 %3747
        %3751 = vset.pattern.permute.xlu0 0
        %3752 = vperm.xlu0 %3751, %v3592
        %v3753 = vpop.permute.xlu0 %3752
        %v3755 = vrcp.pop %v3598
        %v3756 = vmul.f32 %v2987, %v3755
        %v3757 = vrcp.pop %v3603
        %v3758 = vmul.f32 %v2992, %v3757
        %v3759 = vrcp.pop %v3608
        %v3760 = vmul.f32 %v2997, %v3759
        %v3761 = vrcp.pop %v3613
        %v3762 = vmul.f32 %v3002, %v3761
        %v3763 = vrcp.pop %v3618
        %v3764 = vmul.f32 %v3007, %v3763
        %v3765 = vrcp.pop %v3623
        %v3766 = vmul.f32 %v3012, %v3765
        %v3767 = vrcp.pop %v3628
        %v3768 = vmul.f32 %v3017, %v3767
        %v3769 = vrcp.pop %v3633
        %v3770 = vmul.f32 %v3022, %v3769
        %v3771 = vrcp.pop %v3638
        %v3772 = vmul.f32 %v3027, %v3771
        %v3773 = vrcp.pop %v3643
        %v3774 = vmul.f32 %v3032, %v3773
        %v3775 = vrcp.pop %v3648
        %v3776 = vmul.f32 %v3037, %v3775
        %v3777 = vrcp.pop %v3653
        %v3778 = vmul.f32 %v3042, %v3777
        %v3779 = vrcp.pop %v3658
        %v3780 = vmul.f32 %v3047, %v3779
        %v3781 = vrcp.pop %v3663
        %v3782 = vmul.f32 %v3052, %v3781
        %v3783 = vrcp.pop %v3668
        %v3784 = vmul.f32 %v3057, %v3783
        %v3785 = vrcp.pop %v3673
        %v3786 = vmul.f32 %v3062, %v3785
        %v3787 = vrcp.pop %v3678
        %v3788 = vmul.f32 %v3067, %v3787
        %v3789 = vrcp.pop %v3683
        %v3790 = vmul.f32 %v3072, %v3789
        %v3791 = vrcp.pop %v3688
        %v3792 = vmul.f32 %v3077, %v3791
        %v3793 = vrcp.pop %v3693
        %v3794 = vmul.f32 %v3082, %v3793
        %v3795 = vrcp.pop %v3698
        %v3796 = vmul.f32 %v3087, %v3795
        %v3797 = vrcp.pop %v3703
        %v3798 = vmul.f32 %v3092, %v3797
        %v3799 = vrcp.pop %v3708
        %v3800 = vmul.f32 %v3097, %v3799
        %v3801 = vrcp.pop %v3713
        %v3802 = vmul.f32 %v3102, %v3801
        %v3803 = vrcp.pop %v3718
        %v3804 = vmul.f32 %v3107, %v3803
        %v3805 = vrcp.pop %v3723
        %v3806 = vmul.f32 %v3112, %v3805
        %v3807 = vrcp.pop %v3728
        %v3808 = vmul.f32 %v3117, %v3807
        %v3809 = vrcp.pop %v3733
        %v3810 = vmul.f32 %v3122, %v3809
        %v3811 = vrcp.pop %v3738
        %v3812 = vmul.f32 %v3127, %v3811
        %v3813 = vrcp.pop %v3743
        %v3814 = vmul.f32 %v3132, %v3813
        %v3815 = vrcp.pop %v3748
        %v3816 = vmul.f32 %v3137, %v3815
        %v3817 = vrcp.pop %v3753
        %v3818 = vmul.f32 %v3142, %v3817
        %3819 = vst.msk [vmem:[%s255] sm:$0xff] %vm393, %v3756
        %3820 = vst.msk [vmem:[%s255 + $0x8] sm:$0xff] %vm393, %v3758
        %3821 = vst.msk [vmem:[%s255 + $0x10] sm:$0xff] %vm393, %v3760
        %3822 = vst.msk [vmem:[%s255 + $0x18] sm:$0xff] %vm393, %v3762
        %3823 = vst.msk [vmem:[%s255 + $0x20] sm:$0xff] %vm393, %v3764
        %3824 = vst.msk [vmem:[%s255 + $0x28] sm:$0xff] %vm393, %v3766
        %3825 = vst.msk [vmem:[%s255 + $0x30] sm:$0xff] %vm393, %v3768
        %3826 = vst.msk [vmem:[%s255 + $0x38] sm:$0xff] %vm393, %v3770
        %3827 = vst.msk [vmem:[%s255 + $0x40] sm:$0xff] %vm393, %v3772
        %3828 = vst.msk [vmem:[%s255 + $0x48] sm:$0xff] %vm393, %v3774
        %3829 = vst.msk [vmem:[%s255 + $0x50] sm:$0xff] %vm393, %v3776
        %3830 = vst.msk [vmem:[%s255 + $0x58] sm:$0xff] %vm393, %v3778
        %3831 = vst.msk [vmem:[%s255 + $0x60] sm:$0xff] %vm393, %v3780
        %3832 = vst.msk [vmem:[%s255 + $0x68] sm:$0xff] %vm393, %v3782
        %3833 = vst.msk [vmem:[%s255 + $0x70] sm:$0xff] %vm393, %v3784
        %3834 = vst.msk [vmem:[%s255 + $0x78] sm:$0xff] %vm393, %v3786
        %3835 = vst.msk [vmem:[%s255 + $0x80] sm:$0xff] %vm393, %v3788
        %3836 = vst.msk [vmem:[%s255 + $0x88] sm:$0xff] %vm393, %v3790
        %3837 = vst.msk [vmem:[%s255 + $0x90] sm:$0xff] %vm393, %v3792
        %3838 = vst.msk [vmem:[%s255 + $0x98] sm:$0xff] %vm393, %v3794
        %3839 = vst.msk [vmem:[%s255 + $0xa0] sm:$0xff] %vm393, %v3796
        %3840 = vst.msk [vmem:[%s255 + $0xa8] sm:$0xff] %vm393, %v3798
        %3841 = vst.msk [vmem:[%s255 + $0xb0] sm:$0xff] %vm393, %v3800
        %3842 = vst.msk [vmem:[%s255 + $0xb8] sm:$0xff] %vm393, %v3802
        %3843 = vst.msk [vmem:[%s255 + $0xc0] sm:$0xff] %vm393, %v3804
        %3844 = vst.msk [vmem:[%s255 + $0xc8] sm:$0xff] %vm393, %v3806
        %3845 = vst.msk [vmem:[%s255 + $0xd0] sm:$0xff] %vm393, %v3808
        %3846 = vst.msk [vmem:[%s255 + $0xd8] sm:$0xff] %vm393, %v3810
        %3847 = vst.msk [vmem:[%s255 + $0xe0] sm:$0xff] %vm393, %v3812
        %3848 = vst.msk [vmem:[%s255 + $0xe8] sm:$0xff] %vm393, %v3814
        %3849 = vst.msk [vmem:[%s255 + $0xf0] sm:$0xff] %vm393, %v3816
        %3850 = vst.msk [vmem:[%s255 + $0xf8] sm:$0xff] %vm393, %v3818
        %s3851 = smul.u32 %s17, 256
        %v3852 = vlaneseq
        %v3853 = vshrl.u32 %v3852, 7
        %v3854 = vadd.s32 %v3853, 8
        %v3855 = vadd.s32 %v3853, 16
        %v3856 = vadd.s32 %v3853, 24
        %v3857 = vadd.s32 %v3853, 32
        %v3858 = vadd.s32 %v3853, 40
        %v3859 = vadd.s32 %v3853, 48
        %v3860 = vadd.s32 %v3853, 56
        %v3861 = vadd.s32 %v3853, 64
        %v3862 = vadd.s32 %v3853, 72
        %v3863 = vadd.s32 %v3853, 80
        %v3864 = vadd.s32 %v3853, 88
        %v3865 = vadd.s32 %v3853, 96
        %v3866 = vadd.s32 %v3853, 104
        %v3867 = vadd.s32 %v3853, 112
        %v3868 = vadd.s32 %v3853, 120
        %v3869 = vadd.s32 %v3853, 128
        %v3870 = vadd.s32 %v3853, 136
        %v3871 = vadd.s32 %v3853, 144
        %v3872 = vadd.s32 %v3853, 152
        %v3873 = vadd.s32 %v3853, 160
        %v3874 = vadd.s32 %v3853, 168
        %v3875 = vadd.s32 %v3853, 176
        %v3876 = vadd.s32 %v3853, 184
        %v3877 = vadd.s32 %v3853, 192
        %v3878 = vadd.s32 %v3853, 200
        %v3879 = vadd.s32 %v3853, 208
        %v3880 = vadd.s32 %v3853, 216
        %v3881 = vadd.s32 %v3853, 224
        %v3882 = vadd.s32 %v3853, 232
        %v3883 = vadd.s32 %v3853, 240
        %v3884 = vadd.s32 %v3853, 248
        %v3885 = vstv %s3851
        %v3886 = vadd.s32 %v3885, %v3853
        %v3887 = vadd.s32 %v3885, %v3854
        %v3888 = vadd.s32 %v3885, %v3855
        %v3889 = vadd.s32 %v3885, %v3856
        %v3890 = vadd.s32 %v3885, %v3857
        %v3891 = vadd.s32 %v3885, %v3858
        %v3892 = vadd.s32 %v3885, %v3859
        %v3893 = vadd.s32 %v3885, %v3860
        %v3894 = vadd.s32 %v3885, %v3861
        %v3895 = vadd.s32 %v3885, %v3862
        %v3896 = vadd.s32 %v3885, %v3863
        %v3897 = vadd.s32 %v3885, %v3864
        %v3898 = vadd.s32 %v3885, %v3865
        %v3899 = vadd.s32 %v3885, %v3866
        %v3900 = vadd.s32 %v3885, %v3867
        %v3901 = vadd.s32 %v3885, %v3868
        %v3902 = vadd.s32 %v3885, %v3869
        %v3903 = vadd.s32 %v3885, %v3870
        %v3904 = vadd.s32 %v3885, %v3871
        %v3905 = vadd.s32 %v3885, %v3872
        %v3906 = vadd.s32 %v3885, %v3873
        %v3907 = vadd.s32 %v3885, %v3874
        %v3908 = vadd.s32 %v3885, %v3875
        %v3909 = vadd.s32 %v3885, %v3876
        %v3910 = vadd.s32 %v3885, %v3877
        %v3911 = vadd.s32 %v3885, %v3878
        %v3912 = vadd.s32 %v3885, %v3879
        %v3913 = vadd.s32 %v3885, %v3880
        %v3914 = vadd.s32 %v3885, %v3881
        %v3915 = vadd.s32 %v3885, %v3882
        %v3916 = vadd.s32 %v3885, %v3883
        %v3917 = vadd.s32 %v3885, %v3884
        %v3918 = vsub.f32 %v3756, %v297
        %v3919 = vsub.f32 %v3758, %v298
        %v3920 = vsub.f32 %v3760, %v299
        %v3921 = vsub.f32 %v3762, %v300
        %v3922 = vsub.f32 %v3764, %v301
        %v3923 = vsub.f32 %v3766, %v302
        %v3924 = vsub.f32 %v3768, %v303
        %v3925 = vsub.f32 %v3770, %v304
        %v3926 = vsub.f32 %v3772, %v305
        %v3927 = vsub.f32 %v3774, %v306
        %v3928 = vsub.f32 %v3776, %v307
        %v3929 = vsub.f32 %v3778, %v308
        %v3930 = vsub.f32 %v3780, %v309
        %v3931 = vsub.f32 %v3782, %v310
        %v3932 = vsub.f32 %v3784, %v311
        %v3933 = vsub.f32 %v3786, %v312
        %v3934 = vsub.f32 %v3788, %v313
        %v3935 = vsub.f32 %v3790, %v314
        %v3936 = vsub.f32 %v3792, %v315
        %v3937 = vsub.f32 %v3794, %v316
        %v3938 = vsub.f32 %v3796, %v317
        %v3939 = vsub.f32 %v3798, %v318
        %v3940 = vsub.f32 %v3800, %v319
        %v3941 = vsub.f32 %v3802, %v320
        %v3942 = vsub.f32 %v3804, %v321
        %v3943 = vsub.f32 %v3806, %v322
        %v3944 = vsub.f32 %v3808, %v323
        %v3945 = vsub.f32 %v3810, %v324
        %v3946 = vsub.f32 %v3812, %v325
        %v3947 = vsub.f32 %v3814, %v326
        %v3948 = vsub.f32 %v3816, %v327
        %v3949 = vsub.f32 %v3818, %v328
        %vm3950 = vcmp.lt.s32.totalorder %v3886, 300
        %vm3951 = vcmp.lt.s32.totalorder %v3887, 300
        %vm3952 = vcmp.lt.s32.totalorder %v3888, 300
        %vm3953 = vcmp.lt.s32.totalorder %v3889, 300
        %vm3954 = vcmp.lt.s32.totalorder %v3890, 300
        %vm3955 = vcmp.lt.s32.totalorder %v3891, 300
        %vm3956 = vcmp.lt.s32.totalorder %v3892, 300
        %vm3957 = vcmp.lt.s32.totalorder %v3893, 300
        %vm3958 = vcmp.lt.s32.totalorder %v3894, 300
        %vm3959 = vcmp.lt.s32.totalorder %v3895, 300
        %vm3960 = vcmp.lt.s32.totalorder %v3896, 300
        %vm3961 = vcmp.lt.s32.totalorder %v3897, 300
        %vm3962 = vcmp.lt.s32.totalorder %v3898, 300
        %vm3963 = vcmp.lt.s32.totalorder %v3899, 300
        %vm3964 = vcmp.lt.s32.totalorder %v3900, 300
        %vm3965 = vcmp.lt.s32.totalorder %v3901, 300
        %vm3966 = vcmp.lt.s32.totalorder %v3902, 300
        %vm3967 = vcmp.lt.s32.totalorder %v3903, 300
        %vm3968 = vcmp.lt.s32.totalorder %v3904, 300
        %vm3969 = vcmp.lt.s32.totalorder %v3905, 300
        %vm3970 = vcmp.lt.s32.totalorder %v3906, 300
        %vm3971 = vcmp.lt.s32.totalorder %v3907, 300
        %vm3972 = vcmp.lt.s32.totalorder %v3908, 300
        %vm3973 = vcmp.lt.s32.totalorder %v3909, 300
        %vm3974 = vcmp.lt.s32.totalorder %v3910, 300
        %vm3975 = vcmp.lt.s32.totalorder %v3911, 300
        %vm3976 = vcmp.lt.s32.totalorder %v3912, 300
        %vm3977 = vcmp.lt.s32.totalorder %v3913, 300
        %vm3978 = vcmp.lt.s32.totalorder %v3914, 300
        %vm3979 = vcmp.lt.s32.totalorder %v3915, 300
        %vm3980 = vcmp.lt.s32.totalorder %v3916, 300
        %vm3981 = vcmp.lt.s32.totalorder %v3917, 300
        %v3982 = vmul.f32 %v3918, %v3918
        %v3983 = vmul.f32 %v3919, %v3919
        %v3984 = vmul.f32 %v3920, %v3920
        %v3985 = vmul.f32 %v3921, %v3921
        %v3986 = vmul.f32 %v3922, %v3922
        %v3987 = vmul.f32 %v3923, %v3923
        %v3988 = vmul.f32 %v3924, %v3924
        %v3989 = vmul.f32 %v3925, %v3925
        %v3990 = vmul.f32 %v3926, %v3926
        %v3991 = vmul.f32 %v3927, %v3927
        %v3992 = vmul.f32 %v3928, %v3928
        %v3993 = vmul.f32 %v3929, %v3929
        %v3994 = vmul.f32 %v3930, %v3930
        %v3995 = vmul.f32 %v3931, %v3931
        %v3996 = vmul.f32 %v3932, %v3932
        %v3997 = vmul.f32 %v3933, %v3933
        %v3998 = vmul.f32 %v3934, %v3934
        %v3999 = vmul.f32 %v3935, %v3935
        %v4000 = vmul.f32 %v3936, %v3936
        %v4001 = vmul.f32 %v3937, %v3937
        %v4002 = vmul.f32 %v3938, %v3938
        %v4003 = vmul.f32 %v3939, %v3939
        %v4004 = vmul.f32 %v3940, %v3940
        %v4005 = vmul.f32 %v3941, %v3941
        %v4006 = vmul.f32 %v3942, %v3942
        %v4007 = vmul.f32 %v3943, %v3943
        %v4008 = vmul.f32 %v3944, %v3944
        %v4009 = vmul.f32 %v3945, %v3945
        %v4010 = vmul.f32 %v3946, %v3946
        %v4011 = vmul.f32 %v3947, %v3947
        %v4012 = vmul.f32 %v3948, %v3948
        %v4013 = vmul.f32 %v3949, %v3949
        %v4014 = vsel %vm393, %v3982, 0.0
        %4015 = vadd.xlane.f32.xlu0 %v4014
        %v4016 = vpop.xlane.xlu0 %4015
        %v4017 = vsel %vm393, %v3983, 0.0
        %4018 = vadd.xlane.f32.xlu0 %v4017
        %v4019 = vpop.xlane.xlu0 %4018
        %v4020 = vsel %vm393, %v3984, 0.0
        %4021 = vadd.xlane.f32.xlu0 %v4020
        %v4022 = vpop.xlane.xlu0 %4021
        %v4023 = vsel %vm393, %v3985, 0.0
        %4024 = vadd.xlane.f32.xlu0 %v4023
        %v4025 = vpop.xlane.xlu0 %4024
        %v4026 = vsel %vm393, %v3986, 0.0
        %4027 = vadd.xlane.f32.xlu0 %v4026
        %v4028 = vpop.xlane.xlu0 %4027
        %v4029 = vsel %vm393, %v3987, 0.0
        %4030 = vadd.xlane.f32.xlu0 %v4029
        %v4031 = vpop.xlane.xlu0 %4030
        %v4032 = vsel %vm393, %v3988, 0.0
        %4033 = vadd.xlane.f32.xlu0 %v4032
        %v4034 = vpop.xlane.xlu0 %4033
        %v4035 = vsel %vm393, %v3989, 0.0
        %4036 = vadd.xlane.f32.xlu0 %v4035
        %v4037 = vpop.xlane.xlu0 %4036
        %v4038 = vsel %vm393, %v3990, 0.0
        %4039 = vadd.xlane.f32.xlu0 %v4038
        %v4040 = vpop.xlane.xlu0 %4039
        %v4041 = vsel %vm393, %v3991, 0.0
        %4042 = vadd.xlane.f32.xlu0 %v4041
        %v4043 = vpop.xlane.xlu0 %4042
        %v4044 = vsel %vm393, %v3992, 0.0
        %4045 = vadd.xlane.f32.xlu0 %v4044
        %v4046 = vpop.xlane.xlu0 %4045
        %v4047 = vsel %vm393, %v3993, 0.0
        %4048 = vadd.xlane.f32.xlu0 %v4047
        %v4049 = vpop.xlane.xlu0 %4048
        %v4050 = vsel %vm393, %v3994, 0.0
        %4051 = vadd.xlane.f32.xlu0 %v4050
        %v4052 = vpop.xlane.xlu0 %4051
        %v4053 = vsel %vm393, %v3995, 0.0
        %4054 = vadd.xlane.f32.xlu0 %v4053
        %v4055 = vpop.xlane.xlu0 %4054
        %v4056 = vsel %vm393, %v3996, 0.0
        %4057 = vadd.xlane.f32.xlu0 %v4056
        %v4058 = vpop.xlane.xlu0 %4057
        %v4059 = vsel %vm393, %v3997, 0.0
        %4060 = vadd.xlane.f32.xlu0 %v4059
        %v4061 = vpop.xlane.xlu0 %4060
        %v4062 = vsel %vm393, %v3998, 0.0
        %4063 = vadd.xlane.f32.xlu0 %v4062
        %v4064 = vpop.xlane.xlu0 %4063
        %v4065 = vsel %vm393, %v3999, 0.0
        %4066 = vadd.xlane.f32.xlu0 %v4065
        %v4067 = vpop.xlane.xlu0 %4066
        %v4068 = vsel %vm393, %v4000, 0.0
        %4069 = vadd.xlane.f32.xlu0 %v4068
        %v4070 = vpop.xlane.xlu0 %4069
        %v4071 = vsel %vm393, %v4001, 0.0
        %4072 = vadd.xlane.f32.xlu0 %v4071
        %v4073 = vpop.xlane.xlu0 %4072
        %v4074 = vsel %vm393, %v4002, 0.0
        %4075 = vadd.xlane.f32.xlu0 %v4074
        %v4076 = vpop.xlane.xlu0 %4075
        %v4077 = vsel %vm393, %v4003, 0.0
        %4078 = vadd.xlane.f32.xlu0 %v4077
        %v4079 = vpop.xlane.xlu0 %4078
        %v4080 = vsel %vm393, %v4004, 0.0
        %4081 = vadd.xlane.f32.xlu0 %v4080
        %v4082 = vpop.xlane.xlu0 %4081
        %v4083 = vsel %vm393, %v4005, 0.0
        %4084 = vadd.xlane.f32.xlu0 %v4083
        %v4085 = vpop.xlane.xlu0 %4084
        %v4086 = vsel %vm393, %v4006, 0.0
        %4087 = vadd.xlane.f32.xlu0 %v4086
        %v4088 = vpop.xlane.xlu0 %4087
        %v4089 = vsel %vm393, %v4007, 0.0
        %4090 = vadd.xlane.f32.xlu0 %v4089
        %v4091 = vpop.xlane.xlu0 %4090
        %v4092 = vsel %vm393, %v4008, 0.0
        %4093 = vadd.xlane.f32.xlu0 %v4092
        %v4094 = vpop.xlane.xlu0 %4093
        %v4095 = vsel %vm393, %v4009, 0.0
        %4096 = vadd.xlane.f32.xlu0 %v4095
        %v4097 = vpop.xlane.xlu0 %4096
        %v4098 = vsel %vm393, %v4010, 0.0
        %4099 = vadd.xlane.f32.xlu0 %v4098
        %v4100 = vpop.xlane.xlu0 %4099
        %v4101 = vsel %vm393, %v4011, 0.0
        %4102 = vadd.xlane.f32.xlu0 %v4101
        %v4103 = vpop.xlane.xlu0 %4102
        %v4104 = vsel %vm393, %v4012, 0.0
        %4105 = vadd.xlane.f32.xlu0 %v4104
        %v4106 = vpop.xlane.xlu0 %4105
        %v4107 = vsel %vm393, %v4013, 0.0
        %4108 = vadd.xlane.f32.xlu0 %v4107
        %v4109 = vpop.xlane.xlu0 %4108
        %v4110 = vsel %vm3950, %v4016, 0.0
        %v4111 = vsel %vm3951, %v4019, 0.0
        %v4112 = vsel %vm3952, %v4022, 0.0
        %v4113 = vsel %vm3953, %v4025, 0.0
        %v4114 = vsel %vm3954, %v4028, 0.0
        %v4115 = vsel %vm3955, %v4031, 0.0
        %v4116 = vsel %vm3956, %v4034, 0.0
        %v4117 = vsel %vm3957, %v4037, 0.0
        %v4118 = vsel %vm3958, %v4040, 0.0
        %v4119 = vsel %vm3959, %v4043, 0.0
        %v4120 = vsel %vm3960, %v4046, 0.0
        %v4121 = vsel %vm3961, %v4049, 0.0
        %v4122 = vsel %vm3962, %v4052, 0.0
        %v4123 = vsel %vm3963, %v4055, 0.0
        %v4124 = vsel %vm3964, %v4058, 0.0
        %v4125 = vsel %vm3965, %v4061, 0.0
        %v4126 = vsel %vm3966, %v4064, 0.0
        %v4127 = vsel %vm3967, %v4067, 0.0
        %v4128 = vsel %vm3968, %v4070, 0.0
        %v4129 = vsel %vm3969, %v4073, 0.0
        %v4130 = vsel %vm3970, %v4076, 0.0
        %v4131 = vsel %vm3971, %v4079, 0.0
        %v4132 = vsel %vm3972, %v4082, 0.0
        %v4133 = vsel %vm3973, %v4085, 0.0
        %v4134 = vsel %vm3974, %v4088, 0.0
        %v4135 = vsel %vm3975, %v4091, 0.0
        %v4136 = vsel %vm3976, %v4094, 0.0
        %v4137 = vsel %vm3977, %v4097, 0.0
        %v4138 = vsel %vm3978, %v4100, 0.0
        %v4139 = vsel %vm3979, %v4103, 0.0
        %v4140 = vsel %vm3980, %v4106, 0.0
        %v4141 = vsel %vm3981, %v4109, 0.0
        %v4142 = vadd.f32 %v4110, %v4111
        %v4143 = vadd.f32 %v4142, %v4112
        %v4144 = vadd.f32 %v4143, %v4113
        %v4145 = vadd.f32 %v4144, %v4114
        %v4146 = vadd.f32 %v4145, %v4115
        %v4147 = vadd.f32 %v4146, %v4116
        %v4148 = vadd.f32 %v4147, %v4117
        %v4149 = vadd.f32 %v4148, %v4118
        %v4150 = vadd.f32 %v4149, %v4119
        %v4151 = vadd.f32 %v4150, %v4120
        %v4152 = vadd.f32 %v4151, %v4121
        %v4153 = vadd.f32 %v4152, %v4122
        %v4154 = vadd.f32 %v4153, %v4123
        %v4155 = vadd.f32 %v4154, %v4124
        %v4156 = vadd.f32 %v4155, %v4125
        %v4157 = vadd.f32 %v4156, %v4126
        %v4158 = vadd.f32 %v4157, %v4127
        %v4159 = vadd.f32 %v4158, %v4128
        %v4160 = vadd.f32 %v4159, %v4129
        %v4161 = vadd.f32 %v4160, %v4130
        %v4162 = vadd.f32 %v4161, %v4131
        %v4163 = vadd.f32 %v4162, %v4132
        %v4164 = vadd.f32 %v4163, %v4133
        %v4165 = vadd.f32 %v4164, %v4134
        %v4166 = vadd.f32 %v4165, %v4135
        %v4167 = vadd.f32 %v4166, %v4136
        %v4168 = vadd.f32 %v4167, %v4137
        %v4169 = vadd.f32 %v4168, %v4138
        %v4170 = vadd.f32 %v4169, %v4139
        %v4171 = vadd.f32 %v4170, %v4140
        %v4172 = vadd.f32 %v4171, %v4141
        %v4173 = vrot.slane %v4172, 4
        %v4174 = vadd.f32 %v4172, %v4173
        %v4175 = vrot.slane %v4174, 2
        %v4176 = vadd.f32 %v4174, %v4175
        %v4177 = vrot.slane %v4176, 1
        %v4178 = vadd.f32 %v4176, %v4177
        %vm4179 = vcmask 0
        %4180 = vst.msk [vmem:[%s296] sm:$0x1] %vm4179, %v4178
        %s4181 = sand.u32 %s119, 1
        %s4182 = sand.u32 %s119, 1
        %s4183 = smul.addr %s4182, 256
        %s4184 = scalar_lea.vmem [#allocation2], %s4183
        %p4185 = scmp.lt.s32.totalorder %s17, 1
        %s4186 = scalar_select %p4185, %s17, 1
        %s4187 = scalar_lea.vmem %s5, %s4186
        // Predicated region
        $region37: #{tpu_custom_call.1} parent=35 // pred_check
          %p4188 = pneg %p129
        $region38: #{tpu_custom_call.1} parent=35 // pred_check_branch
          %4190 = sbr.rel (%p4188) target = $region40
        $region39: #{tpu_custom_call.1} parent=35 // pred_region
          %s4191 = smul.u32 32, %s17
          %s4192 = ssub.s32 38, %s4191
          %p4193 = scmp.lt.s32.totalorder %s4192, 32
          %s4194 = scalar_select %p4193, %s4192, 32
          %s4195 = smul.u32 128, %s4194
          %p4196 = scmp.ne.s32.totalorder 0, %s4195
          %s4197 = smul.addr %s4191, 8
          %s4198 = scalar_lea.vmem %s4, %s4197
          // Predicated region
          $region41: #{tpu_custom_call.1} parent=39 // pred_check
            %p4199 = pneg %p4196
          $region42: #{tpu_custom_call.1} parent=39 // pred_check_branch
            %4201 = sbr.rel (%p4199) target = $region44
          $region43: #{tpu_custom_call.1} parent=39 // pred_region
            // Predicated region
            $region45: #{tpu_custom_call.1} parent=43 // pred_check
              _
            $region46: #{tpu_custom_call.1} parent=43 // pred_check_branch
              %4203 = sbr.rel (0) target = $region48
            $region47: #{tpu_custom_call.1} parent=43 // pred_region
              // Predicated region
              $region67: #{tpu_custom_call.1} parent=47 // pred_check
                _
              $region68: #{tpu_custom_call.1} parent=47 // pred_check_branch
                %4314 = sbr.rel (0) target = $region70
              $region69: #{tpu_custom_call.1} parent=47 // pred_region
                %s4315 = sshrl.u32 %s4194, 5
                // While loop
                $region71: #{tpu_custom_call.1} parent=69 // loop_pre_header
                  _
                $region72: #{tpu_custom_call.1} parent=69 // loop_header
                  %s4317 = sphi 0, %s4319
                  %p4318 = scmp.ge.s32.totalorder %s4317, %s4315
                  %s4322 = sphi 0, %s4391
                  %s4323 = sphi %s4184, %s4394
                  %s4324 = sphi %s4198, %s4395
                $region73: #{tpu_custom_call.1} parent=69 // loop_header_branch
                  %4321 = sbr.rel (%p4318) target = $region77
                $region74: #{tpu_custom_call.1} parent=69 // loop_body
                  %v4325 = vld [vmem:[%s4323] sm:$0xff]
                  %4326 = vst [vmem:[%s4324] sm:$0xff] %v4325
                  %v4327 = vld [vmem:[%s4323 + $0x8] sm:$0xff]
                  %4328 = vst [vmem:[%s4324 + $0x8] sm:$0xff] %v4327
                  %v4329 = vld [vmem:[%s4323 + $0x10] sm:$0xff]
                  %4330 = vst [vmem:[%s4324 + $0x10] sm:$0xff] %v4329
                  %v4331 = vld [vmem:[%s4323 + $0x18] sm:$0xff]
                  %4332 = vst [vmem:[%s4324 + $0x18] sm:$0xff] %v4331
                  %v4333 = vld [vmem:[%s4323 + $0x20] sm:$0xff]
                  %4334 = vst [vmem:[%s4324 + $0x20] sm:$0xff] %v4333
                  %v4335 = vld [vmem:[%s4323 + $0x28] sm:$0xff]
                  %4336 = vst [vmem:[%s4324 + $0x28] sm:$0xff] %v4335
                  %v4337 = vld [vmem:[%s4323 + $0x30] sm:$0xff]
                  %4338 = vst [vmem:[%s4324 + $0x30] sm:$0xff] %v4337
                  %v4339 = vld [vmem:[%s4323 + $0x38] sm:$0xff]
                  %4340 = vst [vmem:[%s4324 + $0x38] sm:$0xff] %v4339
                  %v4341 = vld [vmem:[%s4323 + $0x40] sm:$0xff]
                  %4342 = vst [vmem:[%s4324 + $0x40] sm:$0xff] %v4341
                  %v4343 = vld [vmem:[%s4323 + $0x48] sm:$0xff]
                  %4344 = vst [vmem:[%s4324 + $0x48] sm:$0xff] %v4343
                  %v4345 = vld [vmem:[%s4323 + $0x50] sm:$0xff]
                  %4346 = vst [vmem:[%s4324 + $0x50] sm:$0xff] %v4345
                  %v4347 = vld [vmem:[%s4323 + $0x58] sm:$0xff]
                  %4348 = vst [vmem:[%s4324 + $0x58] sm:$0xff] %v4347
                  %v4349 = vld [vmem:[%s4323 + $0x60] sm:$0xff]
                  %4350 = vst [vmem:[%s4324 + $0x60] sm:$0xff] %v4349
                  %v4351 = vld [vmem:[%s4323 + $0x68] sm:$0xff]
                  %4352 = vst [vmem:[%s4324 + $0x68] sm:$0xff] %v4351
                  %v4353 = vld [vmem:[%s4323 + $0x70] sm:$0xff]
                  %4354 = vst [vmem:[%s4324 + $0x70] sm:$0xff] %v4353
                  %v4355 = vld [vmem:[%s4323 + $0x78] sm:$0xff]
                  %4356 = vst [vmem:[%s4324 + $0x78] sm:$0xff] %v4355
                  %v4357 = vld [vmem:[%s4323 + $0x80] sm:$0xff]
                  %4358 = vst [vmem:[%s4324 + $0x80] sm:$0xff] %v4357
                  %v4359 = vld [vmem:[%s4323 + $0x88] sm:$0xff]
                  %4360 = vst [vmem:[%s4324 + $0x88] sm:$0xff] %v4359
                  %v4361 = vld [vmem:[%s4323 + $0x90] sm:$0xff]
                  %4362 = vst [vmem:[%s4324 + $0x90] sm:$0xff] %v4361
                  %v4363 = vld [vmem:[%s4323 + $0x98] sm:$0xff]
                  %4364 = vst [vmem:[%s4324 + $0x98] sm:$0xff] %v4363
                  %v4365 = vld [vmem:[%s4323 + $0xa0] sm:$0xff]
                  %4366 = vst [vmem:[%s4324 + $0xa0] sm:$0xff] %v4365
                  %v4367 = vld [vmem:[%s4323 + $0xa8] sm:$0xff]
                  %4368 = vst [vmem:[%s4324 + $0xa8] sm:$0xff] %v4367
                  %v4369 = vld [vmem:[%s4323 + $0xb0] sm:$0xff]
                  %4370 = vst [vmem:[%s4324 + $0xb0] sm:$0xff] %v4369
                  %v4371 = vld [vmem:[%s4323 + $0xb8] sm:$0xff]
                  %4372 = vst [vmem:[%s4324 + $0xb8] sm:$0xff] %v4371
                  %v4373 = vld [vmem:[%s4323 + $0xc0] sm:$0xff]
                  %4374 = vst [vmem:[%s4324 + $0xc0] sm:$0xff] %v4373
                  %v4375 = vld [vmem:[%s4323 + $0xc8] sm:$0xff]
                  %4376 = vst [vmem:[%s4324 + $0xc8] sm:$0xff] %v4375
                  %v4377 = vld [vmem:[%s4323 + $0xd0] sm:$0xff]
                  %4378 = vst [vmem:[%s4324 + $0xd0] sm:$0xff] %v4377
                  %v4379 = vld [vmem:[%s4323 + $0xd8] sm:$0xff]
                  %4380 = vst [vmem:[%s4324 + $0xd8] sm:$0xff] %v4379
                  %v4381 = vld [vmem:[%s4323 + $0xe0] sm:$0xff]
                  %4382 = vst [vmem:[%s4324 + $0xe0] sm:$0xff] %v4381
                  %v4383 = vld [vmem:[%s4323 + $0xe8] sm:$0xff]
                  %4384 = vst [vmem:[%s4324 + $0xe8] sm:$0xff] %v4383
                  %v4385 = vld [vmem:[%s4323 + $0xf0] sm:$0xff]
                  %4386 = vst [vmem:[%s4324 + $0xf0] sm:$0xff] %v4385
                  %v4387 = vld [vmem:[%s4323 + $0xf8] sm:$0xff]
                  %4388 = vst [vmem:[%s4324 + $0xf8] sm:$0xff] %v4387
                  %s4389 = sadd.s32 1, %s4322
                  %p4390 = scmp.ge.s32.totalorder %s4389, %s4315
                  %s4391 = scalar_select %p4390, 0, %s4389
                  %s4392 = smul.u32 %s4391, 256
                  %s4393 = smul.u32 %s4391, 256
                  %s4394 = scalar_lea.vmem %s4184, %s4392 [#allocation2]
                  %s4395 = scalar_lea.vmem %s4198, %s4393
                $region75: #{tpu_custom_call.1} parent=69 // loop_footer
                  %s4319 = sadd.s32 %s4317, 1
                $region76: #{tpu_custom_call.1} parent=69 // loop_footer_branch
                  %4316 = sbr.rel target = $region72
                $region77: #{tpu_custom_call.1} parent=69 // loop_exit
                  _
                %s4396 = sshrl.u32 %s4194, 5
                %s4397 = sand.u32 %s4194, 31
                %s4398 = smul.u32 %s4396, 32
                %s4399 = smul.u32 8, %s4398
                %s4400 = scalar_lea.vmem %s4184, %s4399 [#allocation2]
                %s4401 = smul.u32 8, %s4398
                %s4402 = scalar_lea.vmem %s4198, %s4401
                // While loop
                $region78: #{tpu_custom_call.1} parent=69 // loop_pre_header
                  _
                $region79: #{tpu_custom_call.1} parent=69 // loop_header
                  %s4404 = sphi 0, %s4406
                  %p4405 = scmp.ge.s32.totalorder %s4404, %s4397
                  %s4409 = sphi 0, %s4416
                  %s4410 = sphi %s4400, %s4419
                  %s4411 = sphi %s4402, %s4420
                $region80: #{tpu_custom_call.1} parent=69 // loop_header_branch
                  %4408 = sbr.rel (%p4405) target = $region84
                $region81: #{tpu_custom_call.1} parent=69 // loop_body
                  %v4412 = vld [vmem:[%s4410] sm:$0xff]
                  %4413 = vst [vmem:[%s4411] sm:$0xff] %v4412
                  %s4414 = sadd.s32 1, %s4409
                  %p4415 = scmp.ge.s32.totalorder %s4414, %s4397
                  %s4416 = scalar_select %p4415, 0, %s4414
                  %s4417 = smul.u32 %s4416, 8
                  %s4418 = smul.u32 %s4416, 8
                  %s4419 = scalar_lea.vmem %s4400, %s4417 [#allocation2]
                  %s4420 = scalar_lea.vmem %s4402, %s4418
                $region82: #{tpu_custom_call.1} parent=69 // loop_footer
                  %s4406 = sadd.s32 %s4404, 1
                $region83: #{tpu_custom_call.1} parent=69 // loop_footer_branch
                  %4403 = sbr.rel target = $region79
                $region84: #{tpu_custom_call.1} parent=69 // loop_exit
                  _
              $region70: #{tpu_custom_call.1} parent=47 // pred_fallthru
                _
              // Predicated region
              $region85: #{tpu_custom_call.1} parent=47 // pred_check
                _
              $region86: #{tpu_custom_call.1} parent=47 // pred_check_branch
                %4422 = sbr.rel target = $region88
              $region87: #{tpu_custom_call.1} parent=47 // pred_region
                _
              $region88: #{tpu_custom_call.1} parent=47 // pred_fallthru
                _
            $region48: #{tpu_custom_call.1} parent=43 // pred_fallthru
              _
            // Predicated region
            $region49: #{tpu_custom_call.1} parent=43 // pred_check
              _
            $region50: #{tpu_custom_call.1} parent=43 // pred_check_branch
              %4205 = sbr.rel target = $region52
            $region51: #{tpu_custom_call.1} parent=43 // pred_region
              %s4207 = sshrl.u32 %s4194, 5
              // While loop
              $region53: #{tpu_custom_call.1} parent=51 // loop_pre_header
                _
              $region54: #{tpu_custom_call.1} parent=51 // loop_header
                %s4209 = sphi 0, %s4211
                %p4210 = scmp.ge.s32.totalorder %s4209, %s4207
                %s4214 = sphi 0, %s4283
                %s4215 = sphi %s4184, %s4286
                %s4216 = sphi %s4198, %s4287
              $region55: #{tpu_custom_call.1} parent=51 // loop_header_branch
                %4213 = sbr.rel (%p4210) target = $region59
              $region56: #{tpu_custom_call.1} parent=51 // loop_body
                %v4217 = vld [vmem:[%s4215] sm:$0xff]
                %4218 = vst [vmem:[%s4216] sm:$0xff] %v4217
                %v4219 = vld [vmem:[%s4215 + $0x8] sm:$0xff]
                %4220 = vst [vmem:[%s4216 + $0x8] sm:$0xff] %v4219
                %v4221 = vld [vmem:[%s4215 + $0x10] sm:$0xff]
                %4222 = vst [vmem:[%s4216 + $0x10] sm:$0xff] %v4221
                %v4223 = vld [vmem:[%s4215 + $0x18] sm:$0xff]
                %4224 = vst [vmem:[%s4216 + $0x18] sm:$0xff] %v4223
                %v4225 = vld [vmem:[%s4215 + $0x20] sm:$0xff]
                %4226 = vst [vmem:[%s4216 + $0x20] sm:$0xff] %v4225
                %v4227 = vld [vmem:[%s4215 + $0x28] sm:$0xff]
                %4228 = vst [vmem:[%s4216 + $0x28] sm:$0xff] %v4227
                %v4229 = vld [vmem:[%s4215 + $0x30] sm:$0xff]
                %4230 = vst [vmem:[%s4216 + $0x30] sm:$0xff] %v4229
                %v4231 = vld [vmem:[%s4215 + $0x38] sm:$0xff]
                %4232 = vst [vmem:[%s4216 + $0x38] sm:$0xff] %v4231
                %v4233 = vld [vmem:[%s4215 + $0x40] sm:$0xff]
                %4234 = vst [vmem:[%s4216 + $0x40] sm:$0xff] %v4233
                %v4235 = vld [vmem:[%s4215 + $0x48] sm:$0xff]
                %4236 = vst [vmem:[%s4216 + $0x48] sm:$0xff] %v4235
                %v4237 = vld [vmem:[%s4215 + $0x50] sm:$0xff]
                %4238 = vst [vmem:[%s4216 + $0x50] sm:$0xff] %v4237
                %v4239 = vld [vmem:[%s4215 + $0x58] sm:$0xff]
                %4240 = vst [vmem:[%s4216 + $0x58] sm:$0xff] %v4239
                %v4241 = vld [vmem:[%s4215 + $0x60] sm:$0xff]
                %4242 = vst [vmem:[%s4216 + $0x60] sm:$0xff] %v4241
                %v4243 = vld [vmem:[%s4215 + $0x68] sm:$0xff]
                %4244 = vst [vmem:[%s4216 + $0x68] sm:$0xff] %v4243
                %v4245 = vld [vmem:[%s4215 + $0x70] sm:$0xff]
                %4246 = vst [vmem:[%s4216 + $0x70] sm:$0xff] %v4245
                %v4247 = vld [vmem:[%s4215 + $0x78] sm:$0xff]
                %4248 = vst [vmem:[%s4216 + $0x78] sm:$0xff] %v4247
                %v4249 = vld [vmem:[%s4215 + $0x80] sm:$0xff]
                %4250 = vst [vmem:[%s4216 + $0x80] sm:$0xff] %v4249
                %v4251 = vld [vmem:[%s4215 + $0x88] sm:$0xff]
                %4252 = vst [vmem:[%s4216 + $0x88] sm:$0xff] %v4251
                %v4253 = vld [vmem:[%s4215 + $0x90] sm:$0xff]
                %4254 = vst [vmem:[%s4216 + $0x90] sm:$0xff] %v4253
                %v4255 = vld [vmem:[%s4215 + $0x98] sm:$0xff]
                %4256 = vst [vmem:[%s4216 + $0x98] sm:$0xff] %v4255
                %v4257 = vld [vmem:[%s4215 + $0xa0] sm:$0xff]
                %4258 = vst [vmem:[%s4216 + $0xa0] sm:$0xff] %v4257
                %v4259 = vld [vmem:[%s4215 + $0xa8] sm:$0xff]
                %4260 = vst [vmem:[%s4216 + $0xa8] sm:$0xff] %v4259
                %v4261 = vld [vmem:[%s4215 + $0xb0] sm:$0xff]
                %4262 = vst [vmem:[%s4216 + $0xb0] sm:$0xff] %v4261
                %v4263 = vld [vmem:[%s4215 + $0xb8] sm:$0xff]
                %4264 = vst [vmem:[%s4216 + $0xb8] sm:$0xff] %v4263
                %v4265 = vld [vmem:[%s4215 + $0xc0] sm:$0xff]
                %4266 = vst [vmem:[%s4216 + $0xc0] sm:$0xff] %v4265
                %v4267 = vld [vmem:[%s4215 + $0xc8] sm:$0xff]
                %4268 = vst [vmem:[%s4216 + $0xc8] sm:$0xff] %v4267
                %v4269 = vld [vmem:[%s4215 + $0xd0] sm:$0xff]
                %4270 = vst [vmem:[%s4216 + $0xd0] sm:$0xff] %v4269
                %v4271 = vld [vmem:[%s4215 + $0xd8] sm:$0xff]
                %4272 = vst [vmem:[%s4216 + $0xd8] sm:$0xff] %v4271
                %v4273 = vld [vmem:[%s4215 + $0xe0] sm:$0xff]
                %4274 = vst [vmem:[%s4216 + $0xe0] sm:$0xff] %v4273
                %v4275 = vld [vmem:[%s4215 + $0xe8] sm:$0xff]
                %4276 = vst [vmem:[%s4216 + $0xe8] sm:$0xff] %v4275
                %v4277 = vld [vmem:[%s4215 + $0xf0] sm:$0xff]
                %4278 = vst [vmem:[%s4216 + $0xf0] sm:$0xff] %v4277
                %v4279 = vld [vmem:[%s4215 + $0xf8] sm:$0xff]
                %4280 = vst [vmem:[%s4216 + $0xf8] sm:$0xff] %v4279
                %s4281 = sadd.s32 1, %s4214
                %p4282 = scmp.ge.s32.totalorder %s4281, %s4207
                %s4283 = scalar_select %p4282, 0, %s4281
                %s4284 = smul.u32 %s4283, 256
                %s4285 = smul.u32 %s4283, 256
                %s4286 = scalar_lea.vmem %s4184, %s4284 [#allocation2]
                %s4287 = scalar_lea.vmem %s4198, %s4285
              $region57: #{tpu_custom_call.1} parent=51 // loop_footer
                %s4211 = sadd.s32 %s4209, 1
              $region58: #{tpu_custom_call.1} parent=51 // loop_footer_branch
                %4208 = sbr.rel target = $region54
              $region59: #{tpu_custom_call.1} parent=51 // loop_exit
                _
              %s4288 = sshrl.u32 %s4194, 5
              %s4289 = sand.u32 %s4194, 31
              %s4290 = smul.u32 %s4288, 32
              %s4291 = smul.u32 8, %s4290
              %s4292 = scalar_lea.vmem %s4184, %s4291 [#allocation2]
              %s4293 = smul.u32 8, %s4290
              %s4294 = scalar_lea.vmem %s4198, %s4293
              // While loop
              $region60: #{tpu_custom_call.1} parent=51 // loop_pre_header
                _
              $region61: #{tpu_custom_call.1} parent=51 // loop_header
                %s4296 = sphi 0, %s4298
                %p4297 = scmp.ge.s32.totalorder %s4296, %s4289
                %s4301 = sphi 0, %s4308
                %s4302 = sphi %s4292, %s4311
                %s4303 = sphi %s4294, %s4312
              $region62: #{tpu_custom_call.1} parent=51 // loop_header_branch
                %4300 = sbr.rel (%p4297) target = $region66
              $region63: #{tpu_custom_call.1} parent=51 // loop_body
                %v4304 = vld [vmem:[%s4302] sm:$0xff]
                %4305 = vst [vmem:[%s4303] sm:$0xff] %v4304
                %s4306 = sadd.s32 1, %s4301
                %p4307 = scmp.ge.s32.totalorder %s4306, %s4289
                %s4308 = scalar_select %p4307, 0, %s4306
                %s4309 = smul.u32 %s4308, 8
                %s4310 = smul.u32 %s4308, 8
                %s4311 = scalar_lea.vmem %s4292, %s4309 [#allocation2]
                %s4312 = scalar_lea.vmem %s4294, %s4310
              $region64: #{tpu_custom_call.1} parent=51 // loop_footer
                %s4298 = sadd.s32 %s4296, 1
              $region65: #{tpu_custom_call.1} parent=51 // loop_footer_branch
                %4295 = sbr.rel target = $region61
              $region66: #{tpu_custom_call.1} parent=51 // loop_exit
                _
            $region52: #{tpu_custom_call.1} parent=43 // pred_fallthru
              _
          $region44: #{tpu_custom_call.1} parent=39 // pred_fallthru
            _
          %4423 = vnop
        $region40: #{tpu_custom_call.1} parent=35 // pred_fallthru
          _
        // Predicated region
        $region89: #{tpu_custom_call.1} parent=35 // pred_check
          %p4424 = pneg %p155
        $region90: #{tpu_custom_call.1} parent=35 // pred_check_branch
          %4426 = sbr.rel (%p4424) target = $region92
        $region91: #{tpu_custom_call.1} parent=35 // pred_region
          _
        $region92: #{tpu_custom_call.1} parent=35 // pred_fallthru
          _
      $region36: #{tpu_custom_call.1} parent=5 // pred_fallthru
        _
      %p4427 = scmp.le.s32.totalorder 2, %s12
      // Predicated region
      $region93: #{tpu_custom_call.1} parent=5 // pred_check
        %p4428 = pneg %p4427
      $region94: #{tpu_custom_call.1} parent=5 // pred_check_branch
        %4430 = sbr.rel (%p4428) target = $region96
      $region95: #{tpu_custom_call.1} parent=5 // pred_region
        %s4431 = ssub.s32 %s12, 2
        // Predicated region
        $region97: #{tpu_custom_call.1} parent=95 // pred_check
          %p4432 = pneg %p135
        $region98: #{tpu_custom_call.1} parent=95 // pred_check_branch
          %4434 = sbr.rel (%p4432) target = $region100
        $region99: #{tpu_custom_call.1} parent=95 // pred_region
          %s4435 = sand.u32 %s120, 1
          %s4436 = sand.u32 %s120, 1
          %s4437 = smul.addr %s4436, 256
          %s4438 = scalar_lea.vmem [#allocation2], %s4437
        $region100: #{tpu_custom_call.1} parent=95 // pred_fallthru
          _
        // Predicated region
        $region101: #{tpu_custom_call.1} parent=95 // pred_check
          %p4439 = pneg %p161
        $region102: #{tpu_custom_call.1} parent=95 // pred_check_branch
          %4441 = sbr.rel (%p4439) target = $region104
        $region103: #{tpu_custom_call.1} parent=95 // pred_region
          %p4442 = scmp.lt.s32.totalorder %s18, 1
          %s4443 = scalar_select %p4442, %s18, 1
          %s4444 = scalar_lea.vmem %s5, %s4443
        $region104: #{tpu_custom_call.1} parent=95 // pred_fallthru
          _
      $region96: #{tpu_custom_call.1} parent=5 // pred_fallthru
        _
    $region6: #{tpu_custom_call.1} parent=1 // loop_footer
      %s16 = sadd.s32 1, %s12
    $region7: #{tpu_custom_call.1} parent=1 // loop_footer_branch
      %11 = sbr.rel target = $region3
    $region8: #{tpu_custom_call.1} parent=1 // loop_exit
      _

</llo_original>
